<compile_context>
chip_gen: v6e
topology: v6e:2x2x1
jax: 0.10.0
libtpu: 0.0.40
codegen_flags: <defaults>
</compile_context>

<pallas_src>
import jax
import jax.numpy as jnp
from jax.experimental import pallas as pl
from jax.experimental.pallas import tpu as pltpu

# ----------------------------- model dims -----------------------------------
EMBED_SIZE = 256
HIDDEN_SIZE = 128
C_FEAT = 2048            # inception.fc.in_features
KH = KW = 3              # conv-stem kernel
STRIDE = 2               # conv-stem stride
K_RAW = KH * KW * 3      # 27 (RGB input)
K_PAD = 32               # padded contraction dim; column K_RAW carries the folded bias
OUT_PAD = 128            # lane-dense output width (real output is column 0)
N_CHUNK = 512            # conv output columns computed per in-kernel chunk


def _round_up(x, m):
    return ((x + m - 1) // m) * m


# ------------------------------- JAX glue ------------------------------------
def im2col(x, kh, kw, stride):
    """x: (B, H, W, C) NHWC -> (B, OH*OW, kh*kw*C) patches (dtype preserved)."""
    B, H, W, C = x.shape
    oh = (H - kh) // stride + 1
    ow = (W - kw) // stride + 1
    cols = []
    for i in range(kh):
        for j in range(kw):
            cols.append(x[:, i:i + oh * stride:stride,
                            j:j + ow * stride:stride, :])        # (B, oh, ow, C)
    patches = jnp.stack(cols, axis=3)                            # (B, oh, ow, kh*kw, C)
    return patches.reshape(B, oh * ow, kh * kw * C)


def pawpularity_forward(images, params, *, b_tile=8, p_tile=512):
    """images: (B, H, W, C) float32 NHWC. Returns (B, 1) float32."""
    B = images.shape[0]

    # --- host prologue entirely in bf16 (im2col + pads) -----------------------
    patches = im2col(images.astype(jnp.bfloat16), KH, KW, STRIDE)  # (B, P, 27)
    P = patches.shape[1]

    # Bias-fold column: real patch rows get 1.0 at column K_RAW, rest zero.
    patches = jnp.concatenate(
        [patches,
         jnp.ones((B, P, 1), jnp.bfloat16),
         jnp.zeros((B, P, K_PAD - K_RAW - 1), jnp.bfloat16)], axis=-1)  # (B, P, 32)

    # --- tile sizing: >=2 batch tiles for megacore, P innermost reduction -----
    b_tile = max(1, min(b_tile, B, max(1, B // 2)))
    p_tile = max(16, min(_round_up(p_tile, 16), _round_up(P, 16)))
    b_pad = _round_up(B, b_tile)
    p_pad = _round_up(P, p_tile)
    nb, n_p = b_pad // b_tile, p_pad // p_tile
    m = b_tile * p_tile
    n_chunk = min(N_CHUNK, C_FEAT)
    # TODO(synk): for tiny B on v7x, split the P axis across cores (per-core
    # partial accumulators + wrapper add) instead of shrinking b_tile.

    patches = jnp.pad(patches, ((0, b_pad - B), (0, p_pad - P), (0, 0)))  # bf16

    # Weights: conv bias folded into row K_RAW of wconv; w2/b2 padded to 128 lanes.
    wconv = jnp.concatenate(
        [params["wconv"], params["bconv"],
         jnp.zeros((K_PAD - K_RAW - 1, C_FEAT), jnp.float32)],
        axis=0).astype(jnp.bfloat16)                                     # (32, 2048)
    wfc = params["wfc"].astype(jnp.bfloat16)
    w1 = params["w1"].astype(jnp.bfloat16)
    w2 = jnp.pad(params["w2"], ((0, 0), (0, OUT_PAD - 1))).astype(jnp.bfloat16)
    bfc, b1 = params["bfc"], params["b1"]
    b2 = jnp.pad(params["b2"], ((0, 0), (0, OUT_PAD - 1)))

    inv_p = 1.0 / P

    # ------------------------------ kernel ------------------------------------
    def kernel(patches_ref, wconv_ref, wfc_ref, bfc_ref,
               w1_ref, b1_ref, w2_ref, b2_ref, out_ref, acc_ref):
        pi = pl.program_id(1)

        @pl.when(pi == 0)
        def _init():
            acc_ref[...] = jnp.zeros_like(acc_ref)

        lhs = patches_ref[...].reshape(m, K_PAD)                   # (M, 32) bf16

        # Backbone stand-in chunk: bf16 MXU matmul + ReLU, N-chunked so the
        # only live f32 temp is (M, n_chunk) — never the full (M, 2048) slab.
        # The conv bias arrives via the ones column x wconv row K_RAW, so
        # zero-padded patch rows are exactly 0 after ReLU: no mask needed.
        for c0 in range(0, C_FEAT, n_chunk):
            conv = jnp.dot(lhs, wconv_ref[:, c0:c0 + n_chunk],
                           preferred_element_type=jnp.float32)     # (M, nc) f32
            conv = jnp.maximum(conv, 0.0)
            acc_ref[:, c0:c0 + n_chunk] += jnp.sum(
                conv.reshape(b_tile, p_tile, n_chunk), axis=1)
        # TODO(synk): the patch-sum above could ride the idle MXU via a constant
        # selector matmul (review item); kept on the VPU for clarity.

        @pl.when(pi == pl.num_programs(1) - 1)
        def _finalize():
            feat = acc_ref[...] * inv_p                            # GAP (B_t, 2048) f32
            # EncoderCNN head: fc -> ReLU -> Dropout (identity, eval mode)
            emb = jnp.dot(feat.astype(jnp.bfloat16), wfc_ref[...],
                          preferred_element_type=jnp.float32) + bfc_ref[...]
            emb = jnp.maximum(emb, 0.0)
            # PawpularityNN head: linear -> Dropout (identity) -> output
            hid = jnp.dot(emb.astype(jnp.bfloat16), w1_ref[...],
                          preferred_element_type=jnp.float32) + b1_ref[...]
            out = jnp.dot(hid.astype(jnp.bfloat16), w2_ref[...],
                          preferred_element_type=jnp.float32) + b2_ref[...]
            out_ref[0] = out.astype(out_ref.dtype)

    # --------------------------- VMEM / cost hints -----------------------------
    conv_temp_bytes = 2 * m * n_chunk * 4            # ~2 live N-chunk f32 temps
    patch_bytes = 2 * m * K_PAD * 2                  # double-buffered bf16 patch tile
    weight_bytes = 2 * (K_PAD * C_FEAT + C_FEAT * EMBED_SIZE
                        + EMBED_SIZE * HIDDEN_SIZE + HIDDEN_SIZE * OUT_PAD)
    bias_bytes = 4 * (EMBED_SIZE + HIDDEN_SIZE + OUT_PAD)
    acc_bytes = b_tile * C_FEAT * 4                  # f32 accumulator scratch
    head_bytes = b_tile * (2 * C_FEAT + 2 * EMBED_SIZE
                           + 2 * HIDDEN_SIZE + OUT_PAD) * 4
    out_bytes = 2 * b_tile * OUT_PAD * 4
    tile_bytes = (conv_temp_bytes + patch_bytes + weight_bytes + bias_bytes
                  + acc_bytes + head_bytes + out_bytes)
    try:
        vmem_cap = int(pltpu.get_tpu_info().vmem_capacity_bytes)
    except Exception:                                # pragma: no cover
        vmem_cap = 64 << 20                          # conservative (v7x) fallback
    vmem_limit = int(min(int(vmem_cap * 0.75), max(2 * tile_bytes, 32 << 20)))

    flops = (2 * b_pad * p_pad * K_PAD * C_FEAT
             + 2 * b_pad * (C_FEAT * EMBED_SIZE
                            + EMBED_SIZE * HIDDEN_SIZE
                            + HIDDEN_SIZE * OUT_PAD))
    bytes_accessed = (patches.size * 2 + weight_bytes + bias_bytes
                      + b_pad * OUT_PAD * 4)

    def const_spec(shape):
        # Constant operand: same block every grid step -> single-buffered
        # (double-buffering these is pure VMEM waste).
        return pl.BlockSpec(shape, lambda bi, pi: (0,) * len(shape),
                            pipeline_mode=pl.Buffered(1))

    grid_spec = pltpu.PrefetchScalarGridSpec(
        num_scalar_prefetch=0,
        grid=(nb, n_p),
        in_specs=[
            pl.BlockSpec((b_tile, p_tile, K_PAD), lambda bi, pi: (bi, pi, 0)),
            const_spec((K_PAD, C_FEAT)),
            const_spec((C_FEAT, EMBED_SIZE)),
            const_spec((1, EMBED_SIZE)),
            const_spec((EMBED_SIZE, HIDDEN_SIZE)),
            const_spec((1, HIDDEN_SIZE)),
            const_spec((HIDDEN_SIZE, OUT_PAD)),
            const_spec((1, OUT_PAD)),
        ],
        out_specs=pl.BlockSpec((1, b_tile, OUT_PAD), lambda bi, pi: (bi, 0, 0)),
        scratch_shapes=[pltpu.VMEM((b_tile, C_FEAT), jnp.float32)],
    )

    out = pl.pallas_call(
        kernel,
        out_shape=jax.ShapeDtypeStruct((nb, b_tile, OUT_PAD), jnp.float32),
        grid_spec=grid_spec,
        compiler_params=pltpu.CompilerParams(
            dimension_semantics=("parallel", "arbitrary"),
            vmem_limit_bytes=vmem_limit,
        ),
        cost_estimate=pl.CostEstimate(
            flops=int(flops), transcendentals=0,
            bytes_accessed=int(bytes_accessed)),
    )(patches, wconv, wfc, bfc, w1, b1, w2, b2)

    return out.reshape(b_pad, OUT_PAD)[:B, :1]


# --------------------------- pure-JAX reference -------------------------------
def reference_forward(images, params):
    patches = im2col(images.astype(jnp.bfloat16), KH, KW, STRIDE)
    conv = jnp.einsum("bpk,kc->bpc", patches,
                      params["wconv"].astype(jnp.bfloat16),
                      preferred_element_type=jnp.float32)
    conv = jnp.maximum(conv + params["bconv"], 0.0)
    feat = jnp.mean(conv, axis=1)
    emb = jnp.maximum(
        jnp.dot(feat.astype(jnp.bfloat16), params["wfc"].astype(jnp.bfloat16),
                preferred_element_type=jnp.float32) + params["bfc"], 0.0)
    hid = jnp.dot(emb.astype(jnp.bfloat16), params["w1"].astype(jnp.bfloat16),
                  preferred_element_type=jnp.float32) + params["b1"]
    out = jnp.dot(hid.astype(jnp.bfloat16), params["w2"].astype(jnp.bfloat16),
                  preferred_element_type=jnp.float32) + params["b2"]
    return out


def init_params(key):
    ks = jax.random.split(key, 8)
    def lin(k, fan_in, shape):
        return jax.random.normal(k, shape, jnp.float32) / jnp.sqrt(fan_in)
    return {
        "wconv": lin(ks[0], K_RAW, (K_RAW, C_FEAT)),
        "bconv": lin(ks[1], 1.0, (1, C_FEAT)) * 0.01,
        "wfc":   lin(ks[2], C_FEAT, (C_FEAT, EMBED_SIZE)),
        "bfc":   lin(ks[3], 1.0, (1, EMBED_SIZE)) * 0.01,
        "w1":    lin(ks[4], EMBED_SIZE, (EMBED_SIZE, HIDDEN_SIZE)),
        "b1":    lin(ks[5], 1.0, (1, HIDDEN_SIZE)) * 0.01,
        "w2":    lin(ks[6], HIDDEN_SIZE, (HIDDEN_SIZE, 1)),
        "b2":    lin(ks[7], 1.0, (1, 1)) * 0.01,
    }


if __name__ == "__main__":
    key = jax.random.PRNGKey(0)
    k_img, k_par = jax.random.split(key)

    B, H, W, C = 2, 16, 16, 3          # small NHWC images (PyTorch would be NCHW)
    images = jax.random.normal(k_img, (B, H, W, C), jnp.float32)
    params = init_params(k_par)

    # Small tiles so both the megacore batch split (nb=2) and the multi-step
    # "arbitrary" P reduction are exercised.
    out = pawpularity_forward(images, params, b_tile=2, p_tile=16)
    out = jax.block_until_ready(out)
    assert out.shape == (B, 1) and out.dtype == jnp.float32

    ref = jax.block_until_ready(reference_forward(images, params))
    assert jnp.allclose(out, ref, rtol=5e-2, atol=5e-2)
    print("KERNEL_OK")
</pallas_src>

<mosaic_0001>
module attributes {stable_mosaic.version = 11 : i64} {
  func.func @kernel(%arg0: i32, %arg1: i32, %arg2: memref<1x16x32xbf16, #tpu.memory_space<vmem>>, %arg3: memref<32x2048xbf16, #tpu.memory_space<vmem>>, %arg4: memref<2048x256xbf16, #tpu.memory_space<vmem>>, %arg5: memref<1x256xf32, #tpu.memory_space<vmem>>, %arg6: memref<256x128xbf16, #tpu.memory_space<vmem>>, %arg7: memref<1x128xf32, #tpu.memory_space<vmem>>, %arg8: memref<128x128xbf16, #tpu.memory_space<vmem>>, %arg9: memref<1x128xf32, #tpu.memory_space<vmem>>, %arg10: memref<1x1x128xf32, #tpu.memory_space<vmem>>, %arg11: memref<1x2048xf32, #tpu.memory_space<vmem>>) attributes {dimension_semantics = [#tpu.dimension_semantics<parallel>, #tpu.dimension_semantics<arbitrary>], iteration_bounds = array<i64: 2, 4>, scalar_prefetch = 0 : i64, scratch_operands = 1 : i64, tpu.core_type = #tpu.core_type<tc>, window_params = [{transform_indices = @transform_0, window_bounds = array<i64: 1, 16, 32>}, {pipeline_mode = #tpu.pipeline_mode<synchronous>, transform_indices = @transform_1, window_bounds = array<i64: 32, 2048>}, {pipeline_mode = #tpu.pipeline_mode<synchronous>, transform_indices = @transform_2, window_bounds = array<i64: 2048, 256>}, {pipeline_mode = #tpu.pipeline_mode<synchronous>, transform_indices = @transform_3, window_bounds = array<i64: 1, 256>}, {pipeline_mode = #tpu.pipeline_mode<synchronous>, transform_indices = @transform_4, window_bounds = array<i64: 256, 128>}, {pipeline_mode = #tpu.pipeline_mode<synchronous>, transform_indices = @transform_5, window_bounds = array<i64: 1, 128>}, {pipeline_mode = #tpu.pipeline_mode<synchronous>, transform_indices = @transform_6, window_bounds = array<i64: 128, 128>}, {pipeline_mode = #tpu.pipeline_mode<synchronous>, transform_indices = @transform_7, window_bounds = array<i64: 1, 128>}, {transform_indices = @transform_8, window_bounds = array<i64: 1, 1, 128>}]} {
    %c0_i32 = arith.constant 0 : i32
    %0 = arith.cmpi eq, %arg1, %c0_i32 : i32
    %1 = arith.extui %0 : i1 to i32
    %c0_i32_0 = arith.constant 0 : i32
    %2 = arith.cmpi ne, %1, %c0_i32_0 : i32
    scf.if %2 {
      %cst_36 = arith.constant 0.000000e+00 : f32
      %44 = vector.broadcast %cst_36 : f32 to vector<1x2048xf32>
      %c0_37 = arith.constant 0 : index
      %c0_38 = arith.constant 0 : index
      %45 = vector.load %arg11[%c0_37, %c0_38] : memref<1x2048xf32, #tpu.memory_space<vmem>>, vector<1x2048xf32>
      tpu.vector_store %arg11[%c0_37, %c0_38], %44 {strides = array<i32>} : memref<1x2048xf32, #tpu.memory_space<vmem>>, vector<1x2048xf32>,
    } else {
    }
    %c0 = arith.constant 0 : index
    %c0_1 = arith.constant 0 : index
    %c0_2 = arith.constant 0 : index
    %3 = vector.load %arg2[%c0, %c0_1, %c0_2] : memref<1x16x32xbf16, #tpu.memory_space<vmem>>, vector<1x16x32xbf16>
    %4 = vector.shape_cast %3 : vector<1x16x32xbf16> to vector<16x32xbf16>
    %c0_3 = arith.constant 0 : index
    %c0_4 = arith.constant 0 : index
    %5 = vector.load %arg3[%c0_3, %c0_4] : memref<32x2048xbf16, #tpu.memory_space<vmem>>, vector<32x512xbf16>
    %cst = arith.constant dense<0.000000e+00> : vector<16x512xf32>
    %6 = tpu.matmul %4, %5, %cst {dimension_numbers = #tpu.dot_dimension_numbers<[1], [0], [0], [1], [0, 0, 1, 1], [], []>} : vector<16x32xbf16>, vector<32x512xbf16>, vector<16x512xf32> -> vector<16x512xf32>
    %cst_5 = arith.constant 0.000000e+00 : f32
    %7 = vector.broadcast %cst_5 : f32 to vector<16x512xf32>
    %8 = arith.maximumf %6, %7 : vector<16x512xf32>
    %c0_6 = arith.constant 0 : index
    %c0_7 = arith.constant 0 : index
    %9 = vector.load %arg11[%c0_6, %c0_7] : memref<1x2048xf32, #tpu.memory_space<vmem>>, vector<1x512xf32>
    %10 = vector.shape_cast %8 : vector<16x512xf32> to vector<1x16x512xf32>
    %cst_8 = arith.constant dense<0.000000e+00> : vector<1x512xf32>
    %11 = vector.multi_reduction <add>, %10, %cst_8 [1] : vector<1x16x512xf32> to vector<1x512xf32>
    %12 = arith.addf %9, %11 : vector<1x512xf32>
    %c0_9 = arith.constant 0 : index
    %c0_10 = arith.constant 0 : index
    %13 = vector.load %arg11[%c0_9, %c0_10] : memref<1x2048xf32, #tpu.memory_space<vmem>>, vector<1x512xf32>
    tpu.vector_store %arg11[%c0_9, %c0_10], %12 {strides = array<i32>} : memref<1x2048xf32, #tpu.memory_space<vmem>>, vector<1x512xf32>,
    %c0_11 = arith.constant 0 : index
    %c512 = arith.constant 512 : index
    %14 = vector.load %arg3[%c0_11, %c512] : memref<32x2048xbf16, #tpu.memory_space<vmem>>, vector<32x512xbf16>
    %cst_12 = arith.constant dense<0.000000e+00> : vector<16x512xf32>
    %15 = tpu.matmul %4, %14, %cst_12 {dimension_numbers = #tpu.dot_dimension_numbers<[1], [0], [0], [1], [0, 0, 1, 1], [], []>} : vector<16x32xbf16>, vector<32x512xbf16>, vector<16x512xf32> -> vector<16x512xf32>
    %cst_13 = arith.constant 0.000000e+00 : f32
    %16 = vector.broadcast %cst_13 : f32 to vector<16x512xf32>
    %17 = arith.maximumf %15, %16 : vector<16x512xf32>
    %c0_14 = arith.constant 0 : index
    %c512_15 = arith.constant 512 : index
    %18 = vector.load %arg11[%c0_14, %c512_15] : memref<1x2048xf32, #tpu.memory_space<vmem>>, vector<1x512xf32>
    %19 = vector.shape_cast %17 : vector<16x512xf32> to vector<1x16x512xf32>
    %cst_16 = arith.constant dense<0.000000e+00> : vector<1x512xf32>
    %20 = vector.multi_reduction <add>, %19, %cst_16 [1] : vector<1x16x512xf32> to vector<1x512xf32>
    %21 = arith.addf %18, %20 : vector<1x512xf32>
    %c0_17 = arith.constant 0 : index
    %c512_18 = arith.constant 512 : index
    %22 = vector.load %arg11[%c0_17, %c512_18] : memref<1x2048xf32, #tpu.memory_space<vmem>>, vector<1x512xf32>
    tpu.vector_store %arg11[%c0_17, %c512_18], %21 {strides = array<i32>} : memref<1x2048xf32, #tpu.memory_space<vmem>>, vector<1x512xf32>,
    %c0_19 = arith.constant 0 : index
    %c1024 = arith.constant 1024 : index
    %23 = vector.load %arg3[%c0_19, %c1024] : memref<32x2048xbf16, #tpu.memory_space<vmem>>, vector<32x512xbf16>
    %cst_20 = arith.constant dense<0.000000e+00> : vector<16x512xf32>
    %24 = tpu.matmul %4, %23, %cst_20 {dimension_numbers = #tpu.dot_dimension_numbers<[1], [0], [0], [1], [0, 0, 1, 1], [], []>} : vector<16x32xbf16>, vector<32x512xbf16>, vector<16x512xf32> -> vector<16x512xf32>
    %cst_21 = arith.constant 0.000000e+00 : f32
    %25 = vector.broadcast %cst_21 : f32 to vector<16x512xf32>
    %26 = arith.maximumf %24, %25 : vector<16x512xf32>
    %c0_22 = arith.constant 0 : index
    %c1024_23 = arith.constant 1024 : index
    %27 = vector.load %arg11[%c0_22, %c1024_23] : memref<1x2048xf32, #tpu.memory_space<vmem>>, vector<1x512xf32>
    %28 = vector.shape_cast %26 : vector<16x512xf32> to vector<1x16x512xf32>
    %cst_24 = arith.constant dense<0.000000e+00> : vector<1x512xf32>
    %29 = vector.multi_reduction <add>, %28, %cst_24 [1] : vector<1x16x512xf32> to vector<1x512xf32>
    %30 = arith.addf %27, %29 : vector<1x512xf32>
    %c0_25 = arith.constant 0 : index
    %c1024_26 = arith.constant 1024 : index
    %31 = vector.load %arg11[%c0_25, %c1024_26] : memref<1x2048xf32, #tpu.memory_space<vmem>>, vector<1x512xf32>
    tpu.vector_store %arg11[%c0_25, %c1024_26], %30 {strides = array<i32>} : memref<1x2048xf32, #tpu.memory_space<vmem>>, vector<1x512xf32>,
    %c0_27 = arith.constant 0 : index
    %c1536 = arith.constant 1536 : index
    %32 = vector.load %arg3[%c0_27, %c1536] : memref<32x2048xbf16, #tpu.memory_space<vmem>>, vector<32x512xbf16>
    %cst_28 = arith.constant dense<0.000000e+00> : vector<16x512xf32>
    %33 = tpu.matmul %4, %32, %cst_28 {dimension_numbers = #tpu.dot_dimension_numbers<[1], [0], [0], [1], [0, 0, 1, 1], [], []>} : vector<16x32xbf16>, vector<32x512xbf16>, vector<16x512xf32> -> vector<16x512xf32>
    %cst_29 = arith.constant 0.000000e+00 : f32
    %34 = vector.broadcast %cst_29 : f32 to vector<16x512xf32>
    %35 = arith.maximumf %33, %34 : vector<16x512xf32>
    %c0_30 = arith.constant 0 : index
    %c1536_31 = arith.constant 1536 : index
    %36 = vector.load %arg11[%c0_30, %c1536_31] : memref<1x2048xf32, #tpu.memory_space<vmem>>, vector<1x512xf32>
    %37 = vector.shape_cast %35 : vector<16x512xf32> to vector<1x16x512xf32>
    %cst_32 = arith.constant dense<0.000000e+00> : vector<1x512xf32>
    %38 = vector.multi_reduction <add>, %37, %cst_32 [1] : vector<1x16x512xf32> to vector<1x512xf32>
    %39 = arith.addf %36, %38 : vector<1x512xf32>
    %c0_33 = arith.constant 0 : index
    %c1536_34 = arith.constant 1536 : index
    %40 = vector.load %arg11[%c0_33, %c1536_34] : memref<1x2048xf32, #tpu.memory_space<vmem>>, vector<1x512xf32>
    tpu.vector_store %arg11[%c0_33, %c1536_34], %39 {strides = array<i32>} : memref<1x2048xf32, #tpu.memory_space<vmem>>, vector<1x512xf32>,
    %c3_i32 = arith.constant 3 : i32
    %41 = arith.cmpi eq, %arg1, %c3_i32 : i32
    %42 = arith.extui %41 : i1 to i32
    %c0_i32_35 = arith.constant 0 : i32
    %43 = arith.cmpi ne, %42, %c0_i32_35 : i32
    scf.if %43 {
      %c0_36 = arith.constant 0 : index
      %c0_37 = arith.constant 0 : index
      %44 = vector.load %arg11[%c0_36, %c0_37] : memref<1x2048xf32, #tpu.memory_space<vmem>>, vector<1x2048xf32>
      %cst_38 = arith.constant 0.0204081628 : f32
      %45 = vector.broadcast %cst_38 : f32 to vector<1x2048xf32>
      %46 = arith.mulf %44, %45 : vector<1x2048xf32>
      %47 = arith.truncf %46 : vector<1x2048xf32> to vector<1x2048xbf16>
      %c0_39 = arith.constant 0 : index
      %c0_40 = arith.constant 0 : index
      %48 = vector.load %arg4[%c0_39, %c0_40] : memref<2048x256xbf16, #tpu.memory_space<vmem>>, vector<2048x256xbf16>
      %cst_41 = arith.constant dense<0.000000e+00> : vector<1x256xf32>
      %49 = tpu.matmul %47, %48, %cst_41 {dimension_numbers = #tpu.dot_dimension_numbers<[1], [0], [0], [1], [0, 0, 1, 1], [], []>} : vector<1x2048xbf16>, vector<2048x256xbf16>, vector<1x256xf32> -> vector<1x256xf32>
      %c0_42 = arith.constant 0 : index
      %c0_43 = arith.constant 0 : index
      %50 = vector.load %arg5[%c0_42, %c0_43] : memref<1x256xf32, #tpu.memory_space<vmem>>, vector<1x256xf32>
      %51 = arith.addf %49, %50 : vector<1x256xf32>
      %cst_44 = arith.constant 0.000000e+00 : f32
      %52 = vector.broadcast %cst_44 : f32 to vector<1x256xf32>
      %53 = arith.maximumf %51, %52 : vector<1x256xf32>
      %54 = arith.truncf %53 : vector<1x256xf32> to vector<1x256xbf16>
      %c0_45 = arith.constant 0 : index
      %c0_46 = arith.constant 0 : index
      %55 = vector.load %arg6[%c0_45, %c0_46] : memref<256x128xbf16, #tpu.memory_space<vmem>>, vector<256x128xbf16>
      %cst_47 = arith.constant dense<0.000000e+00> : vector<1x128xf32>
      %56 = tpu.matmul %54, %55, %cst_47 {dimension_numbers = #tpu.dot_dimension_numbers<[1], [0], [0], [1], [0, 0, 1, 1], [], []>} : vector<1x256xbf16>, vector<256x128xbf16>, vector<1x128xf32> -> vector<1x128xf32>
      %c0_48 = arith.constant 0 : index
      %c0_49 = arith.constant 0 : index
      %57 = vector.load %arg7[%c0_48, %c0_49] : memref<1x128xf32, #tpu.memory_space<vmem>>, vector<1x128xf32>
      %58 = arith.addf %56, %57 : vector<1x128xf32>
      %59 = arith.truncf %58 : vector<1x128xf32> to vector<1x128xbf16>
      %c0_50 = arith.constant 0 : index
      %c0_51 = arith.constant 0 : index
      %60 = vector.load %arg8[%c0_50, %c0_51] : memref<128x128xbf16, #tpu.memory_space<vmem>>, vector<128x128xbf16>
      %cst_52 = arith.constant dense<0.000000e+00> : vector<1x128xf32>
      %61 = tpu.matmul %59, %60, %cst_52 {dimension_numbers = #tpu.dot_dimension_numbers<[1], [0], [0], [1], [0, 0, 1, 1], [], []>} : vector<1x128xbf16>, vector<128x128xbf16>, vector<1x128xf32> -> vector<1x128xf32>
      %c0_53 = arith.constant 0 : index
      %c0_54 = arith.constant 0 : index
      %62 = vector.load %arg9[%c0_53, %c0_54] : memref<1x128xf32, #tpu.memory_space<vmem>>, vector<1x128xf32>
      %63 = arith.addf %61, %62 : vector<1x128xf32>
      %c0_55 = arith.constant 0 : index
      %c0_56 = arith.constant 0 : index
      %c0_57 = arith.constant 0 : index
      %64 = vector.load %arg10[%c0_55, %c0_56, %c0_57] : memref<1x1x128xf32, #tpu.memory_space<vmem>>, vector<1x1x128xf32>
      %65 = vector.shape_cast %64 : vector<1x1x128xf32> to vector<1x128xf32>
      %66 = vector.shape_cast %63 : vector<1x128xf32> to vector<1x1x128xf32>
      tpu.vector_store %arg10[%c0_55, %c0_56, %c0_57], %66 {strides = array<i32>} : memref<1x1x128xf32, #tpu.memory_space<vmem>>, vector<1x1x128xf32>,
    } else {
    }
    return
  }
  func.func @transform_0(%arg0: i32, %arg1: i32) -> (i32, i32, i32) {
    %c0_i32 = arith.constant 0 : i32
    %c0_i32_0 = arith.constant 0 : i32
    return %arg0, %arg1, %c0_i32 : i32, i32, i32
  }
  func.func @transform_1(%arg0: i32, %arg1: i32) -> (i32, i32) {
    %c0_i32 = arith.constant 0 : i32
    %c0_i32_0 = arith.constant 0 : i32
    %c0_i32_1 = arith.constant 0 : i32
    return %c0_i32, %c0_i32_0 : i32, i32
  }
  func.func @transform_2(%arg0: i32, %arg1: i32) -> (i32, i32) {
    %c0_i32 = arith.constant 0 : i32
    %c0_i32_0 = arith.constant 0 : i32
    %c0_i32_1 = arith.constant 0 : i32
    return %c0_i32, %c0_i32_0 : i32, i32
  }
  func.func @transform_3(%arg0: i32, %arg1: i32) -> (i32, i32) {
    %c0_i32 = arith.constant 0 : i32
    %c0_i32_0 = arith.constant 0 : i32
    %c0_i32_1 = arith.constant 0 : i32
    return %c0_i32, %c0_i32_0 : i32, i32
  }
  func.func @transform_4(%arg0: i32, %arg1: i32) -> (i32, i32) {
    %c0_i32 = arith.constant 0 : i32
    %c0_i32_0 = arith.constant 0 : i32
    %c0_i32_1 = arith.constant 0 : i32
    return %c0_i32, %c0_i32_0 : i32, i32
  }
  func.func @transform_5(%arg0: i32, %arg1: i32) -> (i32, i32) {
    %c0_i32 = arith.constant 0 : i32
    %c0_i32_0 = arith.constant 0 : i32
    %c0_i32_1 = arith.constant 0 : i32
    return %c0_i32, %c0_i32_0 : i32, i32
  }
  func.func @transform_6(%arg0: i32, %arg1: i32) -> (i32, i32) {
    %c0_i32 = arith.constant 0 : i32
    %c0_i32_0 = arith.constant 0 : i32
    %c0_i32_1 = arith.constant 0 : i32
    return %c0_i32, %c0_i32_0 : i32, i32
  }
  func.func @transform_7(%arg0: i32, %arg1: i32) -> (i32, i32) {
    %c0_i32 = arith.constant 0 : i32
    %c0_i32_0 = arith.constant 0 : i32
    %c0_i32_1 = arith.constant 0 : i32
    return %c0_i32, %c0_i32_0 : i32, i32
  }
  func.func @transform_8(%arg0: i32, %arg1: i32) -> (i32, i32, i32) {
    %c0_i32 = arith.constant 0 : i32
    %c0_i32_0 = arith.constant 0 : i32
    %c0_i32_1 = arith.constant 0 : i32
    return %arg0, %c0_i32, %c0_i32_0 : i32, i32, i32
  }
}

</mosaic_0001>

<llo_original>
// kernel: tpu_custom_call.1
$region0: #{tpu_custom_call.1}
  #allocation0 [shape = 'u32[]', space=smem, size = 0x4, offset = 0x4, fixed_abs, tag = 'smem constant byte address 0x4 - core index']
  #allocation1 [shape = 'u32[144,128]{1,0:T(1,128)}', space=vmem, size = 0x12000, scoped, tag = 'internal scratch']
  #allocation2 [shape = 'f32[1,2048]{1,0:T(1,128)}', space=vmem, size = 0x2000, scoped, tag = 'scratch operand']
  %s0 = inlined_call_operand.vmem [shape: bf16[2,64,32], index: 0, kind: input, shape index: {}]
  %s1 = inlined_call_operand.hbm [shape: bf16[32,2048], index: 1, kind: input, shape index: {}]
  %s2 = inlined_call_operand.hbm [shape: bf16[2048,256], index: 2, kind: input, shape index: {}]
  %s3 = inlined_call_operand.vmem [shape: f32[1,256], index: 3, kind: input, shape index: {}]
  %s4 = inlined_call_operand.hbm [shape: bf16[256,128], index: 4, kind: input, shape index: {}]
  %s5 = inlined_call_operand.vmem [shape: f32[1,128], index: 5, kind: input, shape index: {}]
  %s6 = inlined_call_operand.vmem [shape: bf16[128,128], index: 6, kind: input, shape index: {}]
  %s7 = inlined_call_operand.vmem [shape: f32[1,128], index: 7, kind: input, shape index: {}]
  %s8 = inlined_call_operand.hbm [shape: f32[2,1,128], index: 8, kind: output, shape index: {}]
  %s9 = sld [smem:[#allocation0]]
  $region85: #{tpu_custom_call.1} parent=0
    _
  %s11 = ssub.s32 1, %s9
  %s12 = scalar_select 0, %s11, %s9
  $region1: #{tpu_custom_call.1} parent=0
    #allocation3 [shape = 'u8[131072]{0}', space=vmem, size = 0x20000, scoped, tag = 'input window, operand 1, single buffered']
    #allocation4 [shape = 's32[2]{0}', space=sflag, size = 0x8, scoped, tag = 'scoped memory for tpu_custom_call.1']
    #allocation5 [shape = 's32[2]{0}', space=sflag, size = 0x8, scoped, tag = 'scoped memory for tpu_custom_call.1']
    #allocation6 [shape = 'u8[1048576]{0}', space=vmem, size = 0x100000, scoped, tag = 'input window, operand 2, single buffered']
    #allocation7 [shape = 's32[1]{0}', space=sflag, size = 0x4, scoped, tag = 'scoped memory for tpu_custom_call.1']
    #allocation8 [shape = 'u8[65536]{0}', space=vmem, size = 0x10000, scoped, tag = 'input window, operand 4, single buffered']
    #allocation9 [shape = 'u8[1024]{0}', space=vmem, size = 0x400, scoped, tag = 'output window, operand 0']
    %13 = vsyncpa [#allocation4], 0
    %14 = vsyncpa [#allocation7], 0
    %15 = vsyncpa [#allocation5], 0
    %s16 = scalar_lea.sflag [#allocation5], 1
    %17 = vsyncpa %s16, 0
    loop: start=0, step=1, limit=10
    $region2: #{tpu_custom_call.1} parent=1 // loop_pre_header
      _
    $region3: #{tpu_custom_call.1} parent=1 // loop_header
      %s19 = sphi 0, %s23
      %p20 = scmp.ge.s32.totalorder %s19, 10
      %s26 = sphi 0, %s38
      %s27 = sphi 0, %s34
      %s28 = sphi 0, %s26
      %s29 = sphi 0, %s27
      %s30 = sphi 0, %s28
      %s31 = sphi 0, %s29
      %s43 = sphi 0, %s45
      %s46 = sphi 0, %s43
      %s47 = sphi 0, %s46
      %s63 = sphi 0, %s47
      %s67 = sphi 0, %s67
      %s69 = sphi 0, %s67
      %s70 = sphi 0, %s69
      %s84 = sphi 0, %s70
      %s88 = sphi 0, %s88
      %s90 = sphi 0, %s88
      %s91 = sphi 0, %s90
      %s105 = sphi 0, %s91
      %s109 = sphi 0, %s109
      %s111 = sphi 0, %s109
      %s112 = sphi 0, %s111
      %s126 = sphi 0, %s112
      %s130 = sphi 0, %s130
      %s132 = sphi 0, %s130
      %s133 = sphi 0, %s132
      %s147 = sphi 0, %s133
      %s151 = sphi 0, %s151
      %s153 = sphi 0, %s151
      %s154 = sphi 0, %s153
      %s168 = sphi 0, %s154
      %s172 = sphi 0, %s172
      %s174 = sphi 0, %s172
      %s175 = sphi 0, %s174
      %s189 = sphi 0, %s175
      %s193 = sphi 0, %s193
      %s195 = sphi 0, %s193
      %s196 = sphi 0, %s195
      %s210 = sphi 0, %s196
      %s216 = sphi 0, %s218
      %s219 = sphi 0, %s216
      %s220 = sphi 0, %s219
      %s236 = sphi 0, %s220
    $region4: #{tpu_custom_call.1} parent=1 // loop_header_branch
      %22 = sbr.rel (%p20) target = $region8
    $region5: #{tpu_custom_call.1} parent=1 // loop_body
      %s24 = ssub.s32 %s19, 1
      %s25 = ssub.s32 %s19, 2
      %s32 = sadd.s32 1, %s27
      %p33 = scmp.ge.s32.totalorder %s32, 4
      %s34 = scalar_select %p33, 0, %s32
      %s35 = sadd.s32 1, %s26
      %s36 = scalar_select %p33, %s35, %s26
      %p37 = scmp.ge.s32.totalorder %s36, 2
      %s38 = scalar_select %p37, 0, %s36
      %s39 = ssub.s32 %s26, %s38
      %s40 = ssub.s32 %s27, %s34
      %s41 = sor.u32 %s39, %s40
      %p42 = scmp.eq.s32.totalorder %s41, 0
      %s44 = sadd.s32 %s43, 1
      %s45 = scalar_select %p42, %s43, %s44
      %p48 = pneg %p42
      %p49 = scmp.eq.s32.totalorder %s19, 7
      %p50 = por %p48, %p49
      %p51 = scmp.ne.s32.totalorder %s43, %s46
      %p52 = scmp.eq.s32.totalorder %s19, 0
      %p53 = por %p51, %p52
      %p54 = scmp.ne.s32.totalorder %s43, %s46
      %p55 = scmp.eq.s32.totalorder %s24, 7
      %p56 = por %p54, %p55
      %p57 = scmp.ne.s32.totalorder %s46, %s47
      %p58 = scmp.eq.s32.totalorder %s24, 0
      %p59 = por %p57, %p58
      %p60 = scmp.ne.s32.totalorder %s46, %s47
      %p61 = scmp.eq.s32.totalorder %s25, 7
      %p62 = por %p60, %p61
      %p64 = scmp.ne.s32.totalorder %s47, %s63
      %p65 = scmp.eq.s32.totalorder %s25, 0
      %p66 = por %p64, %p65
      %s68 = sadd.s32 %s67, 1
      %p71 = scmp.eq.s32.totalorder %s19, 7
      %p72 = scmp.ne.s32.totalorder %s67, %s69
      %p73 = scmp.eq.s32.totalorder %s19, 0
      %p74 = por %p72, %p73
      %p75 = scmp.ne.s32.totalorder %s67, %s69
      %p76 = scmp.eq.s32.totalorder %s24, 7
      %p77 = por %p75, %p76
      %p78 = scmp.ne.s32.totalorder %s69, %s70
      %p79 = scmp.eq.s32.totalorder %s24, 0
      %p80 = por %p78, %p79
      %p81 = scmp.ne.s32.totalorder %s69, %s70
      %p82 = scmp.eq.s32.totalorder %s25, 7
      %p83 = por %p81, %p82
      %p85 = scmp.ne.s32.totalorder %s70, %s84
      %p86 = scmp.eq.s32.totalorder %s25, 0
      %p87 = por %p85, %p86
      %s89 = sadd.s32 %s88, 1
      %p92 = scmp.eq.s32.totalorder %s19, 7
      %p93 = scmp.ne.s32.totalorder %s88, %s90
      %p94 = scmp.eq.s32.totalorder %s19, 0
      %p95 = por %p93, %p94
      %p96 = scmp.ne.s32.totalorder %s88, %s90
      %p97 = scmp.eq.s32.totalorder %s24, 7
      %p98 = por %p96, %p97
      %p99 = scmp.ne.s32.totalorder %s90, %s91
      %p100 = scmp.eq.s32.totalorder %s24, 0
      %p101 = por %p99, %p100
      %p102 = scmp.ne.s32.totalorder %s90, %s91
      %p103 = scmp.eq.s32.totalorder %s25, 7
      %p104 = por %p102, %p103
      %p106 = scmp.ne.s32.totalorder %s91, %s105
      %p107 = scmp.eq.s32.totalorder %s25, 0
      %p108 = por %p106, %p107
      %s110 = sadd.s32 %s109, 1
      %p113 = scmp.eq.s32.totalorder %s19, 7
      %p114 = scmp.ne.s32.totalorder %s109, %s111
      %p115 = scmp.eq.s32.totalorder %s19, 0
      %p116 = por %p114, %p115
      %p117 = scmp.ne.s32.totalorder %s109, %s111
      %p118 = scmp.eq.s32.totalorder %s24, 7
      %p119 = por %p117, %p118
      %p120 = scmp.ne.s32.totalorder %s111, %s112
      %p121 = scmp.eq.s32.totalorder %s24, 0
      %p122 = por %p120, %p121
      %p123 = scmp.ne.s32.totalorder %s111, %s112
      %p124 = scmp.eq.s32.totalorder %s25, 7
      %p125 = por %p123, %p124
      %p127 = scmp.ne.s32.totalorder %s112, %s126
      %p128 = scmp.eq.s32.totalorder %s25, 0
      %p129 = por %p127, %p128
      %s131 = sadd.s32 %s130, 1
      %p134 = scmp.eq.s32.totalorder %s19, 7
      %p135 = scmp.ne.s32.totalorder %s130, %s132
      %p136 = scmp.eq.s32.totalorder %s19, 0
      %p137 = por %p135, %p136
      %p138 = scmp.ne.s32.totalorder %s130, %s132
      %p139 = scmp.eq.s32.totalorder %s24, 7
      %p140 = por %p138, %p139
      %p141 = scmp.ne.s32.totalorder %s132, %s133
      %p142 = scmp.eq.s32.totalorder %s24, 0
      %p143 = por %p141, %p142
      %p144 = scmp.ne.s32.totalorder %s132, %s133
      %p145 = scmp.eq.s32.totalorder %s25, 7
      %p146 = por %p144, %p145
      %p148 = scmp.ne.s32.totalorder %s133, %s147
      %p149 = scmp.eq.s32.totalorder %s25, 0
      %p150 = por %p148, %p149
      %s152 = sadd.s32 %s151, 1
      %p155 = scmp.eq.s32.totalorder %s19, 7
      %p156 = scmp.ne.s32.totalorder %s151, %s153
      %p157 = scmp.eq.s32.totalorder %s19, 0
      %p158 = por %p156, %p157
      %p159 = scmp.ne.s32.totalorder %s151, %s153
      %p160 = scmp.eq.s32.totalorder %s24, 7
      %p161 = por %p159, %p160
      %p162 = scmp.ne.s32.totalorder %s153, %s154
      %p163 = scmp.eq.s32.totalorder %s24, 0
      %p164 = por %p162, %p163
      %p165 = scmp.ne.s32.totalorder %s153, %s154
      %p166 = scmp.eq.s32.totalorder %s25, 7
      %p167 = por %p165, %p166
      %p169 = scmp.ne.s32.totalorder %s154, %s168
      %p170 = scmp.eq.s32.totalorder %s25, 0
      %p171 = por %p169, %p170
      %s173 = sadd.s32 %s172, 1
      %p176 = scmp.eq.s32.totalorder %s19, 7
      %p177 = scmp.ne.s32.totalorder %s172, %s174
      %p178 = scmp.eq.s32.totalorder %s19, 0
      %p179 = por %p177, %p178
      %p180 = scmp.ne.s32.totalorder %s172, %s174
      %p181 = scmp.eq.s32.totalorder %s24, 7
      %p182 = por %p180, %p181
      %p183 = scmp.ne.s32.totalorder %s174, %s175
      %p184 = scmp.eq.s32.totalorder %s24, 0
      %p185 = por %p183, %p184
      %p186 = scmp.ne.s32.totalorder %s174, %s175
      %p187 = scmp.eq.s32.totalorder %s25, 7
      %p188 = por %p186, %p187
      %p190 = scmp.ne.s32.totalorder %s175, %s189
      %p191 = scmp.eq.s32.totalorder %s25, 0
      %p192 = por %p190, %p191
      %s194 = sadd.s32 %s193, 1
      %p197 = scmp.eq.s32.totalorder %s19, 7
      %p198 = scmp.ne.s32.totalorder %s193, %s195
      %p199 = scmp.eq.s32.totalorder %s19, 0
      %p200 = por %p198, %p199
      %p201 = scmp.ne.s32.totalorder %s193, %s195
      %p202 = scmp.eq.s32.totalorder %s24, 7
      %p203 = por %p201, %p202
      %p204 = scmp.ne.s32.totalorder %s195, %s196
      %p205 = scmp.eq.s32.totalorder %s24, 0
      %p206 = por %p204, %p205
      %p207 = scmp.ne.s32.totalorder %s195, %s196
      %p208 = scmp.eq.s32.totalorder %s25, 7
      %p209 = por %p207, %p208
      %p211 = scmp.ne.s32.totalorder %s196, %s210
      %p212 = scmp.eq.s32.totalorder %s25, 0
      %p213 = por %p211, %p212
      %s214 = ssub.s32 %s26, %s38
      %p215 = scmp.eq.s32.totalorder %s214, 0
      %s217 = sadd.s32 %s216, 1
      %s218 = scalar_select %p215, %s216, %s217
      %p221 = pneg %p215
      %p222 = scmp.eq.s32.totalorder %s19, 7
      %p223 = por %p221, %p222
      %p224 = scmp.ne.s32.totalorder %s216, %s219
      %p225 = scmp.eq.s32.totalorder %s19, 0
      %p226 = por %p224, %p225
      %p227 = scmp.ne.s32.totalorder %s216, %s219
      %p228 = scmp.eq.s32.totalorder %s24, 7
      %p229 = por %p227, %p228
      %p230 = scmp.ne.s32.totalorder %s219, %s220
      %p231 = scmp.eq.s32.totalorder %s24, 0
      %p232 = por %p230, %p231
      %p233 = scmp.ne.s32.totalorder %s219, %s220
      %p234 = scmp.eq.s32.totalorder %s25, 7
      %p235 = por %p233, %p234
      %p237 = scmp.ne.s32.totalorder %s220, %s236
      %p238 = scmp.eq.s32.totalorder %s25, 0
      %p239 = por %p237, %p238
      %p240 = scmp.le.s32.totalorder 1, %s19
      %p241 = scmp.lt.s32.totalorder %s19, 9
      %p242 = pnand %p240, %p241
      %p243 = pneg %p242
      // Predicated region
      $region9: #{tpu_custom_call.1} parent=5 // pred_check
        _
      $region10: #{tpu_custom_call.1} parent=5 // pred_check_branch
        %245 = sbr.rel (%p242) target = $region12
      $region11: #{tpu_custom_call.1} parent=5 // pred_region
        %s246 = ssub.s32 %s19, 1
        // Predicated region
        $region13: #{tpu_custom_call.1} parent=11 // pred_check
          %p247 = pneg %p80
        $region14: #{tpu_custom_call.1} parent=11 // pred_check_branch
          %249 = sbr.rel (%p247) target = $region16
        $region15: #{tpu_custom_call.1} parent=11 // pred_region
          %s251 = ssub.s32 4096, 4096
          %252 = vsyncadd [#allocation4], %s251
          %s253 = sshll.u32 [#allocation3], 4
          %s254 = int_to_ptr.vmem [resolvable:$true] %s253
          %259 = dma.hbm_to_vmem [thread:$0]  %s1, 4096, %s254, [#allocation4], 1024, 1024, 64
        $region16: #{tpu_custom_call.1} parent=11 // pred_fallthru
          _
        // Predicated region
        $region17: #{tpu_custom_call.1} parent=11 // pred_check
          %p260 = pneg %p101
        $region18: #{tpu_custom_call.1} parent=11 // pred_check_branch
          %262 = sbr.rel (%p260) target = $region20
        $region19: #{tpu_custom_call.1} parent=11 // pred_region
          %s264 = ssub.s32 32768, 32768
          %265 = vsyncadd [#allocation7], %s264
          %s266 = sshll.u32 [#allocation6], 4
          %s267 = int_to_ptr.vmem [resolvable:$true] %s266
          %272 = dma.hbm_to_vmem [thread:$0]  %s2, 32768, %s267, [#allocation7], 128, 128, 8
        $region20: #{tpu_custom_call.1} parent=11 // pred_fallthru
          _
        // Predicated region
        $region21: #{tpu_custom_call.1} parent=11 // pred_check
          %p273 = pneg %p122
        $region22: #{tpu_custom_call.1} parent=11 // pred_check_branch
          %275 = sbr.rel (%p273) target = $region24
        $region23: #{tpu_custom_call.1} parent=11 // pred_region
          _
        $region24: #{tpu_custom_call.1} parent=11 // pred_fallthru
          _
        // Predicated region
        $region25: #{tpu_custom_call.1} parent=11 // pred_check
          %p276 = pneg %p143
        $region26: #{tpu_custom_call.1} parent=11 // pred_check_branch
          %278 = sbr.rel (%p276) target = $region28
        $region27: #{tpu_custom_call.1} parent=11 // pred_region
          %s280 = ssub.s32 2048, 2048
          %281 = vsyncadd [#allocation7], %s280
          %s282 = sshll.u32 [#allocation8], 4
          %s283 = int_to_ptr.vmem [resolvable:$true] %s282
          %288 = dma.hbm_to_vmem [thread:$0]  %s4, 2048, %s283, [#allocation7], 64, 64, 4
        $region28: #{tpu_custom_call.1} parent=11 // pred_fallthru
          _
        // Predicated region
        $region29: #{tpu_custom_call.1} parent=11 // pred_check
          %p289 = pneg %p164
        $region30: #{tpu_custom_call.1} parent=11 // pred_check_branch
          %291 = sbr.rel (%p289) target = $region32
        $region31: #{tpu_custom_call.1} parent=11 // pred_region
          _
        $region32: #{tpu_custom_call.1} parent=11 // pred_fallthru
          _
        // Predicated region
        $region33: #{tpu_custom_call.1} parent=11 // pred_check
          %p292 = pneg %p185
        $region34: #{tpu_custom_call.1} parent=11 // pred_check_branch
          %294 = sbr.rel (%p292) target = $region36
        $region35: #{tpu_custom_call.1} parent=11 // pred_region
          _
        $region36: #{tpu_custom_call.1} parent=11 // pred_fallthru
          _
        // Predicated region
        $region37: #{tpu_custom_call.1} parent=11 // pred_check
          %p295 = pneg %p206
        $region38: #{tpu_custom_call.1} parent=11 // pred_check_branch
          %297 = sbr.rel (%p295) target = $region40
        $region39: #{tpu_custom_call.1} parent=11 // pred_region
          _
        $region40: #{tpu_custom_call.1} parent=11 // pred_fallthru
          _
      $region12: #{tpu_custom_call.1} parent=5 // pred_fallthru
        _
      %p298 = scmp.lt.s32.totalorder %s19, 8
      // Predicated region
      $region41: #{tpu_custom_call.1} parent=5 // pred_check
        %p299 = pneg %p298
      $region42: #{tpu_custom_call.1} parent=5 // pred_check_branch
        %301 = sbr.rel (%p299) target = $region44
      $region43: #{tpu_custom_call.1} parent=5 // pred_region
        // Predicated region
        $region45: #{tpu_custom_call.1} parent=43 // pred_check
          %p302 = pneg %p53
        $region46: #{tpu_custom_call.1} parent=43 // pred_check_branch
          %304 = sbr.rel (%p302) target = $region48
        $region47: #{tpu_custom_call.1} parent=43 // pred_region
          %s305 = smul.u32 2, %s27
          %p306 = scmp.lt.s32.totalorder %s26, 1
          %s307 = scalar_select %p306, %s26, 1
          %p308 = scmp.lt.s32.totalorder %s305, 7
          %s309 = scalar_select %p308, %s305, 7
          %s310 = smul.addr %s307, 8
          %s311 = sadd.s32 %s309, %s310
          %s312 = smul.addr %s311, 4
          %s313 = scalar_lea.vmem %s0, %s312
          %s314 = smul.u32 2, %s27
        $region48: #{tpu_custom_call.1} parent=43 // pred_fallthru
          _
      $region44: #{tpu_custom_call.1} parent=5 // pred_fallthru
        _
      %p315 = scmp.le.s32.totalorder 1, %s19
      %p316 = scmp.lt.s32.totalorder %s19, 9
      %p317 = pnand %p315, %p316
      %p318 = pneg %p317
      // Predicated region
      $region49: #{tpu_custom_call.1} parent=5 // pred_check
        _
      $region50: #{tpu_custom_call.1} parent=5 // pred_check_branch
        %320 = sbr.rel (%p317) target = $region52
      $region51: #{tpu_custom_call.1} parent=5 // pred_region
        %s321 = ssub.s32 %s19, 1
        // Predicated region
        $region53: #{tpu_custom_call.1} parent=51 // pred_check
          %p322 = pneg %p80
        $region54: #{tpu_custom_call.1} parent=51 // pred_check_branch
          %324 = sbr.rel (%p322) target = $region56
        $region55: #{tpu_custom_call.1} parent=51 // pred_region
          %325 = dma.done [#allocation4], 4096
        $region56: #{tpu_custom_call.1} parent=51 // pred_fallthru
          _
        // Predicated region
        $region57: #{tpu_custom_call.1} parent=51 // pred_check
          %p326 = pneg %p101
        $region58: #{tpu_custom_call.1} parent=51 // pred_check_branch
          %328 = sbr.rel (%p326) target = $region60
        $region59: #{tpu_custom_call.1} parent=51 // pred_region
          %329 = dma.done [#allocation7], 32768
        $region60: #{tpu_custom_call.1} parent=51 // pred_fallthru
          _
        // Predicated region
        $region61: #{tpu_custom_call.1} parent=51 // pred_check
          %p330 = pneg %p143
        $region62: #{tpu_custom_call.1} parent=51 // pred_check_branch
          %332 = sbr.rel (%p330) target = $region64
        $region63: #{tpu_custom_call.1} parent=51 // pred_region
          %333 = dma.done [#allocation7], 2048
        $region64: #{tpu_custom_call.1} parent=51 // pred_fallthru
          _
        %s334 = smul.u32 2, %s29
        %p335 = scmp.lt.s32.totalorder %s28, 1
        %s336 = scalar_select %p335, %s28, 1
        %p337 = scmp.lt.s32.totalorder %s334, 7
        %s338 = scalar_select %p337, %s334, 7
        %s339 = smul.addr %s336, 8
        %s340 = sadd.s32 %s338, %s339
        %s341 = smul.addr %s340, 4
        %s342 = scalar_lea.vmem %s0, %s341
        %p343 = pneg %p59
        %p344 = pneg %p56
        %p345 = pneg %p80
        %p346 = pneg %p77
        %p347 = pneg %p101
        %p348 = pneg %p98
        %p349 = pneg %p122
        %p350 = pneg %p119
        %p351 = pneg %p143
        %p352 = pneg %p140
        %p353 = pneg %p164
        %p354 = pneg %p161
        %p355 = pneg %p185
        %p356 = pneg %p182
        %p357 = pneg %p206
        %p358 = pneg %p203
        %p359 = pneg %p232
        %p360 = pneg %p229
        %s361 = sand.u32 %s219, 1
        %s362 = scalar_lea.sflag [#allocation5], %s361
        %s363 = sand.u32 %s219, 1
        %s364 = scalar_lea.vmem [#allocation9], %s363
        %s365 = smul.u32 2, %s29
        %p366 = scmp.lt.s32.totalorder %s28, 1
        %s367 = scalar_select %p366, %s28, 1
        %p368 = scmp.lt.s32.totalorder %s365, 7
        %s369 = scalar_select %p368, %s365, 7
        %s370 = smul.addr %s367, 8
        %s371 = sadd.s32 %s369, %s370
        %s372 = smul.addr %s371, 4
        %s373 = scalar_lea.vmem %s0, %s372
        %s374 = smul.u32 2, %s29
        %p376 = scmp.eq.s32.totalorder %s29, 0
        // Predicated region
        $region65: #{tpu_custom_call.1} parent=51 // pred_check
          %p377 = pneg %p376
        $region66: #{tpu_custom_call.1} parent=51 // pred_check_branch
          %379 = sbr.rel (%p377) target = $region68
        $region67: #{tpu_custom_call.1} parent=51 // pred_region
          %380 = vst [vmem:[#allocation2] sm:$0xff] 0.0
          %381 = vst [vmem:[#allocation2 + $0x8] sm:$0xff] 0.0
        $region68: #{tpu_custom_call.1} parent=51 // pred_fallthru
          _
        %v382 = vld [vmem:[%s373] sm:$0xf]
        %v383 = vld [vmem:[%s373 + $0x4] sm:$0xf]
        %v384 = vld [vmem:[#allocation3] sm:$0xff]
        %v385 = vld [vmem:[#allocation3 + $0x8] sm:$0xff]
        %v386 = vld [vmem:[#allocation3 + $0x40] sm:$0xff]
        %v387 = vld [vmem:[#allocation3 + $0x48] sm:$0xff]
        %v388 = vld [vmem:[#allocation3 + $0x80] sm:$0xff]
        %v389 = vld [vmem:[#allocation3 + $0x88] sm:$0xff]
        %v390 = vld [vmem:[#allocation3 + $0xc0] sm:$0xff]
        %v391 = vld [vmem:[#allocation3 + $0xc8] sm:$0xff]
        %v394 = vunpack.c.l.b16 %v382
        %v395 = vunpack.c.l.b16 %v383
        %v396 = vpack.c.b16 %v395, %v394
        %v405 = vunpack.c.l.b16 %v384
        %v406 = vunpack.c.h.b16 %v384
        %v407 = vunpack.c.l.b16 %v385
        %v408 = vunpack.c.h.b16 %v385
        %v409 = vunpack.c.l.b16 %v386
        %v410 = vunpack.c.h.b16 %v386
        %v411 = vunpack.c.l.b16 %v387
        %v412 = vunpack.c.h.b16 %v387
        %v413 = vunpack.c.l.b16 %v388
        %v414 = vunpack.c.h.b16 %v388
        %v415 = vunpack.c.l.b16 %v389
        %v416 = vunpack.c.h.b16 %v389
        %v417 = vunpack.c.l.b16 %v390
        %v418 = vunpack.c.h.b16 %v390
        %v419 = vunpack.c.l.b16 %v391
        %v420 = vunpack.c.h.b16 %v391
        %v421 = vpack.c.b16 %v409, %v405
        %v422 = vpack.c.b16 %v410, %v406
        %v423 = vpack.c.b16 %v411, %v407
        %v424 = vpack.c.b16 %v412, %v408
        %v425 = vpack.c.b16 %v417, %v413
        %v426 = vpack.c.b16 %v418, %v414
        %v427 = vpack.c.b16 %v419, %v415
        %v428 = vpack.c.b16 %v420, %v416
        %vm437 = vcmask 261120
        %v439 = vsel %vm437, %v396, 0
        %441 = vmatprep.subr.bf16.mxu0 0
        %442 = vmatpush1.bf16.msra.mxu0 0
        %443 = vmatprep.subr.bf16.mxu0 0
        %444 = vmatpush1.bf16.msra.mxu0 0
        %445 = vmatprep.subr.bf16.mxu0 0
        %446 = vmatpush1.bf16.msra.mxu0 0
        %447 = vmatprep.subr.bf16.mxu0 0
        %448 = vmatpush1.bf16.msra.mxu0 0
        %449 = vmatprep.subr.bf16.mxu0 0
        %450 = vmatpush1.bf16.msra.mxu0 0
        %451 = vmatprep.subr.bf16.mxu0 0
        %452 = vmatpush1.bf16.msra.mxu0 0
        %453 = vmatprep.subr.bf16.mxu0 %v426
        %454 = vmatpush1.bf16.msra.mxu0 %v425
        %455 = vmatprep.subr.bf16.mxu0 %v422
        %456 = vmatpush1.bf16.msra.mxu0 %v421
        %457 = vmatprep.subr.bf16.mxu0 0
        %458 = vmatpush2.bf16.msra.mxu0 0
        %459 = vmatprep.subr.bf16.mxu0 0
        %460 = vmatpush2.bf16.msra.mxu0 0
        %461 = vmatprep.subr.bf16.mxu0 0
        %462 = vmatpush2.bf16.msra.mxu0 0
        %463 = vmatprep.subr.bf16.mxu0 0
        %464 = vmatpush2.bf16.msra.mxu0 0
        %465 = vmatprep.subr.bf16.mxu0 0
        %466 = vmatpush2.bf16.msra.mxu0 0
        %467 = vmatprep.subr.bf16.mxu0 0
        %468 = vmatpush2.bf16.msra.mxu0 0
        %469 = vmatprep.subr.bf16.mxu0 0
        %470 = vmatpush2.bf16.msra.mxu0 0
        %471 = vmatprep.subr.bf16.mxu0 0
        %472 = vmatpush2.bf16.msra.mxu0 0
        %473 = vmatprep.mubr.bf16.mxu0 0
        %474 = vmatmul.mubr.bf16.gmra.mxu0 %v439
        %v475 = vpop.f32.mrf.mxu0
        %v476 = vadd.f32 0.0, %v475
        %v477 = vpop.f32.mrf.mxu0
        %v478 = vadd.f32 0.0, %v477
        %v479 = vpop.f32.mrf.mxu0
        %v480 = vadd.f32 0.0, %v479
        %v481 = vpop.f32.mrf.mxu0
        %v482 = vadd.f32 0.0, %v481
        %483 = vdwg.mxu0
        %484 = vmatprep.subr.bf16.mxu0 0
        %485 = vmatpush1.bf16.msra.mxu0 0
        %486 = vmatprep.subr.bf16.mxu0 0
        %487 = vmatpush1.bf16.msra.mxu0 0
        %488 = vmatprep.subr.bf16.mxu0 0
        %489 = vmatpush1.bf16.msra.mxu0 0
        %490 = vmatprep.subr.bf16.mxu0 0
        %491 = vmatpush1.bf16.msra.mxu0 0
        %492 = vmatprep.subr.bf16.mxu0 0
        %493 = vmatpush1.bf16.msra.mxu0 0
        %494 = vmatprep.subr.bf16.mxu0 0
        %495 = vmatpush1.bf16.msra.mxu0 0
        %496 = vmatprep.subr.bf16.mxu0 %v428
        %497 = vmatpush1.bf16.msra.mxu0 %v427
        %498 = vmatprep.subr.bf16.mxu0 %v424
        %499 = vmatpush1.bf16.msra.mxu0 %v423
        %500 = vmatprep.subr.bf16.mxu0 0
        %501 = vmatpush2.bf16.msra.mxu0 0
        %502 = vmatprep.subr.bf16.mxu0 0
        %503 = vmatpush2.bf16.msra.mxu0 0
        %504 = vmatprep.subr.bf16.mxu0 0
        %505 = vmatpush2.bf16.msra.mxu0 0
        %506 = vmatprep.subr.bf16.mxu0 0
        %507 = vmatpush2.bf16.msra.mxu0 0
        %508 = vmatprep.subr.bf16.mxu0 0
        %509 = vmatpush2.bf16.msra.mxu0 0
        %510 = vmatprep.subr.bf16.mxu0 0
        %511 = vmatpush2.bf16.msra.mxu0 0
        %512 = vmatprep.subr.bf16.mxu0 0
        %513 = vmatpush2.bf16.msra.mxu0 0
        %514 = vmatprep.subr.bf16.mxu0 0
        %515 = vmatpush2.bf16.msra.mxu0 0
        %516 = vmatprep.mubr.bf16.mxu0 0
        %517 = vmatmul.mubr.bf16.gmra.mxu0 %v439
        %v518 = vpop.f32.mrf.mxu0
        %v519 = vadd.f32 0.0, %v518
        %v520 = vpop.f32.mrf.mxu0
        %v521 = vadd.f32 0.0, %v520
        %v522 = vpop.f32.mrf.mxu0
        %v523 = vadd.f32 0.0, %v522
        %v524 = vpop.f32.mrf.mxu0
        %v525 = vadd.f32 0.0, %v524
        %526 = vdwg.mxu0
        %v527 = vmax.f32 %v476, 0.0
        %v528 = vmax.f32 %v478, 0.0
        %v529 = vmax.f32 %v519, 0.0
        %v530 = vmax.f32 %v521, 0.0
        %v531 = vmax.f32 %v480, 0.0
        %v532 = vmax.f32 %v482, 0.0
        %v533 = vmax.f32 %v523, 0.0
        %v534 = vmax.f32 %v525, 0.0
        %v535 = vld [vmem:[#allocation2] sm:$0xf]
        %v536 = vadd.f32 %v527, %v531
        %v537 = vrot.slane %v536, 4
        %v538 = vadd.f32 %v536, %v537
        %v539 = vrot.slane %v538, 2
        %v540 = vadd.f32 %v538, %v539
        %v541 = vrot.slane %v540, 1
        %v542 = vadd.f32 %v540, %v541
        %v543 = vadd.f32 %v528, %v532
        %v544 = vrot.slane %v543, 4
        %v545 = vadd.f32 %v543, %v544
        %v546 = vrot.slane %v545, 2
        %v547 = vadd.f32 %v545, %v546
        %v548 = vrot.slane %v547, 1
        %v549 = vadd.f32 %v547, %v548
        %v550 = vadd.f32 %v529, %v533
        %v551 = vrot.slane %v550, 4
        %v552 = vadd.f32 %v550, %v551
        %v553 = vrot.slane %v552, 2
        %v554 = vadd.f32 %v552, %v553
        %v555 = vrot.slane %v554, 1
        %v556 = vadd.f32 %v554, %v555
        %v557 = vadd.f32 %v530, %v534
        %v558 = vrot.slane %v557, 4
        %v559 = vadd.f32 %v557, %v558
        %v560 = vrot.slane %v559, 2
        %v561 = vadd.f32 %v559, %v560
        %v562 = vrot.slane %v561, 1
        %v563 = vadd.f32 %v561, %v562
        %v568 = vcombine.low %v542, %v549
        %v569 = vcombine.low %v556, %v563
        %v571 = vunpack.c.l.s4 1966171168
        %v572 = vunpack.c.0.s8 %v571
        %v573 = vlaneseq
        %v574 = vshrl.u32 %v573, 7
        %v575 = vsub.s32 %v572, %v574
        %v576 = vrot.slane %v568, %v575
        %v578 = vunpack.c.l.s4 1966171168
        %v579 = vunpack.c.0.s8 %v578
        %v580 = vlaneseq
        %v581 = vshrl.u32 %v580, 7
        %v582 = vsub.s32 %v579, %v581
        %v583 = vrot.slane %v569, %v582
        %v584 = vcombine.low %v576, %v583
        %v586 = vunpack.c.l.s4 1966171168
        %v587 = vunpack.c.0.s8 %v586
        %v588 = vlaneseq
        %v589 = vshrl.u32 %v588, 7
        %v590 = vsub.s32 %v587, %v589
        %v591 = vrot.slane %v584, %v590
        %v593 = vadd.f32 %v535, %v591
        %v594 = vlaneseq
        %vm595 = vcmp.ge.s32.totalorder %v594, 0
        %vm596 = vcmp.lt.s32.totalorder %v594, 512
        %vm597 = vmand %vm595, %vm596
        %598 = vst.msk [vmem:[#allocation2] sm:$0xf] %vm597, %v593
        %v599 = vld [vmem:[#allocation3 + $0x10] sm:$0xff]
        %v600 = vld [vmem:[#allocation3 + $0x18] sm:$0xff]
        %v601 = vld [vmem:[#allocation3 + $0x50] sm:$0xff]
        %v602 = vld [vmem:[#allocation3 + $0x58] sm:$0xff]
        %v603 = vld [vmem:[#allocation3 + $0x90] sm:$0xff]
        %v604 = vld [vmem:[#allocation3 + $0x98] sm:$0xff]
        %v605 = vld [vmem:[#allocation3 + $0xd0] sm:$0xff]
        %v606 = vld [vmem:[#allocation3 + $0xd8] sm:$0xff]
        %v615 = vunpack.c.l.b16 %v599
        %v616 = vunpack.c.h.b16 %v599
        %v617 = vunpack.c.l.b16 %v600
        %v618 = vunpack.c.h.b16 %v600
        %v619 = vunpack.c.l.b16 %v601
        %v620 = vunpack.c.h.b16 %v601
        %v621 = vunpack.c.l.b16 %v602
        %v622 = vunpack.c.h.b16 %v602
        %v623 = vunpack.c.l.b16 %v603
        %v624 = vunpack.c.h.b16 %v603
        %v625 = vunpack.c.l.b16 %v604
        %v626 = vunpack.c.h.b16 %v604
        %v627 = vunpack.c.l.b16 %v605
        %v628 = vunpack.c.h.b16 %v605
        %v629 = vunpack.c.l.b16 %v606
        %v630 = vunpack.c.h.b16 %v606
        %v631 = vpack.c.b16 %v619, %v615
        %v632 = vpack.c.b16 %v620, %v616
        %v633 = vpack.c.b16 %v621, %v617
        %v634 = vpack.c.b16 %v622, %v618
        %v635 = vpack.c.b16 %v627, %v623
        %v636 = vpack.c.b16 %v628, %v624
        %v637 = vpack.c.b16 %v629, %v625
        %v638 = vpack.c.b16 %v630, %v626
        %647 = vmatprep.subr.bf16.mxu0 0
        %648 = vmatpush1.bf16.msra.mxu0 0
        %649 = vmatprep.subr.bf16.mxu0 0
        %650 = vmatpush1.bf16.msra.mxu0 0
        %651 = vmatprep.subr.bf16.mxu0 0
        %652 = vmatpush1.bf16.msra.mxu0 0
        %653 = vmatprep.subr.bf16.mxu0 0
        %654 = vmatpush1.bf16.msra.mxu0 0
        %655 = vmatprep.subr.bf16.mxu0 0
        %656 = vmatpush1.bf16.msra.mxu0 0
        %657 = vmatprep.subr.bf16.mxu0 0
        %658 = vmatpush1.bf16.msra.mxu0 0
        %659 = vmatprep.subr.bf16.mxu0 %v636
        %660 = vmatpush1.bf16.msra.mxu0 %v635
        %661 = vmatprep.subr.bf16.mxu0 %v632
        %662 = vmatpush1.bf16.msra.mxu0 %v631
        %663 = vmatprep.subr.bf16.mxu0 0
        %664 = vmatpush2.bf16.msra.mxu0 0
        %665 = vmatprep.subr.bf16.mxu0 0
        %666 = vmatpush2.bf16.msra.mxu0 0
        %667 = vmatprep.subr.bf16.mxu0 0
        %668 = vmatpush2.bf16.msra.mxu0 0
        %669 = vmatprep.subr.bf16.mxu0 0
        %670 = vmatpush2.bf16.msra.mxu0 0
        %671 = vmatprep.subr.bf16.mxu0 0
        %672 = vmatpush2.bf16.msra.mxu0 0
        %673 = vmatprep.subr.bf16.mxu0 0
        %674 = vmatpush2.bf16.msra.mxu0 0
        %675 = vmatprep.subr.bf16.mxu0 0
        %676 = vmatpush2.bf16.msra.mxu0 0
        %677 = vmatprep.subr.bf16.mxu0 0
        %678 = vmatpush2.bf16.msra.mxu0 0
        %679 = vmatprep.mubr.bf16.mxu0 0
        %680 = vmatmul.mubr.bf16.gmra.mxu0 %v439
        %v681 = vpop.f32.mrf.mxu0
        %v682 = vadd.f32 0.0, %v681
        %v683 = vpop.f32.mrf.mxu0
        %v684 = vadd.f32 0.0, %v683
        %v685 = vpop.f32.mrf.mxu0
        %v686 = vadd.f32 0.0, %v685
        %v687 = vpop.f32.mrf.mxu0
        %v688 = vadd.f32 0.0, %v687
        %689 = vdwg.mxu0
        %690 = vmatprep.subr.bf16.mxu0 0
        %691 = vmatpush1.bf16.msra.mxu0 0
        %692 = vmatprep.subr.bf16.mxu0 0
        %693 = vmatpush1.bf16.msra.mxu0 0
        %694 = vmatprep.subr.bf16.mxu0 0
        %695 = vmatpush1.bf16.msra.mxu0 0
        %696 = vmatprep.subr.bf16.mxu0 0
        %697 = vmatpush1.bf16.msra.mxu0 0
        %698 = vmatprep.subr.bf16.mxu0 0
        %699 = vmatpush1.bf16.msra.mxu0 0
        %700 = vmatprep.subr.bf16.mxu0 0
        %701 = vmatpush1.bf16.msra.mxu0 0
        %702 = vmatprep.subr.bf16.mxu0 %v638
        %703 = vmatpush1.bf16.msra.mxu0 %v637
        %704 = vmatprep.subr.bf16.mxu0 %v634
        %705 = vmatpush1.bf16.msra.mxu0 %v633
        %706 = vmatprep.subr.bf16.mxu0 0
        %707 = vmatpush2.bf16.msra.mxu0 0
        %708 = vmatprep.subr.bf16.mxu0 0
        %709 = vmatpush2.bf16.msra.mxu0 0
        %710 = vmatprep.subr.bf16.mxu0 0
        %711 = vmatpush2.bf16.msra.mxu0 0
        %712 = vmatprep.subr.bf16.mxu0 0
        %713 = vmatpush2.bf16.msra.mxu0 0
        %714 = vmatprep.subr.bf16.mxu0 0
        %715 = vmatpush2.bf16.msra.mxu0 0
        %716 = vmatprep.subr.bf16.mxu0 0
        %717 = vmatpush2.bf16.msra.mxu0 0
        %718 = vmatprep.subr.bf16.mxu0 0
        %719 = vmatpush2.bf16.msra.mxu0 0
        %720 = vmatprep.subr.bf16.mxu0 0
        %721 = vmatpush2.bf16.msra.mxu0 0
        %722 = vmatprep.mubr.bf16.mxu0 0
        %723 = vmatmul.mubr.bf16.gmra.mxu0 %v439
        %v724 = vpop.f32.mrf.mxu0
        %v725 = vadd.f32 0.0, %v724
        %v726 = vpop.f32.mrf.mxu0
        %v727 = vadd.f32 0.0, %v726
        %v728 = vpop.f32.mrf.mxu0
        %v729 = vadd.f32 0.0, %v728
        %v730 = vpop.f32.mrf.mxu0
        %v731 = vadd.f32 0.0, %v730
        %732 = vdwg.mxu0
        %v733 = vmax.f32 %v682, 0.0
        %v734 = vmax.f32 %v684, 0.0
        %v735 = vmax.f32 %v725, 0.0
        %v736 = vmax.f32 %v727, 0.0
        %v737 = vmax.f32 %v686, 0.0
        %v738 = vmax.f32 %v688, 0.0
        %v739 = vmax.f32 %v729, 0.0
        %v740 = vmax.f32 %v731, 0.0
        %v741 = vld [vmem:[#allocation2 + $0x4] sm:$0xf]
        %v742 = vadd.f32 %v733, %v737
        %v743 = vrot.slane %v742, 4
        %v744 = vadd.f32 %v742, %v743
        %v745 = vrot.slane %v744, 2
        %v746 = vadd.f32 %v744, %v745
        %v747 = vrot.slane %v746, 1
        %v748 = vadd.f32 %v746, %v747
        %v749 = vadd.f32 %v734, %v738
        %v750 = vrot.slane %v749, 4
        %v751 = vadd.f32 %v749, %v750
        %v752 = vrot.slane %v751, 2
        %v753 = vadd.f32 %v751, %v752
        %v754 = vrot.slane %v753, 1
        %v755 = vadd.f32 %v753, %v754
        %v756 = vadd.f32 %v735, %v739
        %v757 = vrot.slane %v756, 4
        %v758 = vadd.f32 %v756, %v757
        %v759 = vrot.slane %v758, 2
        %v760 = vadd.f32 %v758, %v759
        %v761 = vrot.slane %v760, 1
        %v762 = vadd.f32 %v760, %v761
        %v763 = vadd.f32 %v736, %v740
        %v764 = vrot.slane %v763, 4
        %v765 = vadd.f32 %v763, %v764
        %v766 = vrot.slane %v765, 2
        %v767 = vadd.f32 %v765, %v766
        %v768 = vrot.slane %v767, 1
        %v769 = vadd.f32 %v767, %v768
        %v774 = vcombine.low %v748, %v755
        %v775 = vcombine.low %v762, %v769
        %v777 = vunpack.c.l.s4 1966171168
        %v778 = vunpack.c.0.s8 %v777
        %v779 = vlaneseq
        %v780 = vshrl.u32 %v779, 7
        %v781 = vsub.s32 %v778, %v780
        %v782 = vrot.slane %v774, %v781
        %v784 = vunpack.c.l.s4 1966171168
        %v785 = vunpack.c.0.s8 %v784
        %v786 = vlaneseq
        %v787 = vshrl.u32 %v786, 7
        %v788 = vsub.s32 %v785, %v787
        %v789 = vrot.slane %v775, %v788
        %v790 = vcombine.low %v782, %v789
        %v792 = vunpack.c.l.s4 1966171168
        %v793 = vunpack.c.0.s8 %v792
        %v794 = vlaneseq
        %v795 = vshrl.u32 %v794, 7
        %v796 = vsub.s32 %v793, %v795
        %v797 = vrot.slane %v790, %v796
        %v799 = vadd.f32 %v741, %v797
        %800 = vst.msk [vmem:[#allocation2 + $0x4] sm:$0xf] %vm597, %v799
        %v801 = vld [vmem:[#allocation3 + $0x20] sm:$0xff]
        %v802 = vld [vmem:[#allocation3 + $0x28] sm:$0xff]
        %v803 = vld [vmem:[#allocation3 + $0x60] sm:$0xff]
        %v804 = vld [vmem:[#allocation3 + $0x68] sm:$0xff]
        %v805 = vld [vmem:[#allocation3 + $0xa0] sm:$0xff]
        %v806 = vld [vmem:[#allocation3 + $0xa8] sm:$0xff]
        %v807 = vld [vmem:[#allocation3 + $0xe0] sm:$0xff]
        %v808 = vld [vmem:[#allocation3 + $0xe8] sm:$0xff]
        %v817 = vunpack.c.l.b16 %v801
        %v818 = vunpack.c.h.b16 %v801
        %v819 = vunpack.c.l.b16 %v802
        %v820 = vunpack.c.h.b16 %v802
        %v821 = vunpack.c.l.b16 %v803
        %v822 = vunpack.c.h.b16 %v803
        %v823 = vunpack.c.l.b16 %v804
        %v824 = vunpack.c.h.b16 %v804
        %v825 = vunpack.c.l.b16 %v805
        %v826 = vunpack.c.h.b16 %v805
        %v827 = vunpack.c.l.b16 %v806
        %v828 = vunpack.c.h.b16 %v806
        %v829 = vunpack.c.l.b16 %v807
        %v830 = vunpack.c.h.b16 %v807
        %v831 = vunpack.c.l.b16 %v808
        %v832 = vunpack.c.h.b16 %v808
        %v833 = vpack.c.b16 %v821, %v817
        %v834 = vpack.c.b16 %v822, %v818
        %v835 = vpack.c.b16 %v823, %v819
        %v836 = vpack.c.b16 %v824, %v820
        %v837 = vpack.c.b16 %v829, %v825
        %v838 = vpack.c.b16 %v830, %v826
        %v839 = vpack.c.b16 %v831, %v827
        %v840 = vpack.c.b16 %v832, %v828
        %849 = vmatprep.subr.bf16.mxu0 0
        %850 = vmatpush1.bf16.msra.mxu0 0
        %851 = vmatprep.subr.bf16.mxu0 0
        %852 = vmatpush1.bf16.msra.mxu0 0
        %853 = vmatprep.subr.bf16.mxu0 0
        %854 = vmatpush1.bf16.msra.mxu0 0
        %855 = vmatprep.subr.bf16.mxu0 0
        %856 = vmatpush1.bf16.msra.mxu0 0
        %857 = vmatprep.subr.bf16.mxu0 0
        %858 = vmatpush1.bf16.msra.mxu0 0
        %859 = vmatprep.subr.bf16.mxu0 0
        %860 = vmatpush1.bf16.msra.mxu0 0
        %861 = vmatprep.subr.bf16.mxu0 %v838
        %862 = vmatpush1.bf16.msra.mxu0 %v837
        %863 = vmatprep.subr.bf16.mxu0 %v834
        %864 = vmatpush1.bf16.msra.mxu0 %v833
        %865 = vmatprep.subr.bf16.mxu0 0
        %866 = vmatpush2.bf16.msra.mxu0 0
        %867 = vmatprep.subr.bf16.mxu0 0
        %868 = vmatpush2.bf16.msra.mxu0 0
        %869 = vmatprep.subr.bf16.mxu0 0
        %870 = vmatpush2.bf16.msra.mxu0 0
        %871 = vmatprep.subr.bf16.mxu0 0
        %872 = vmatpush2.bf16.msra.mxu0 0
        %873 = vmatprep.subr.bf16.mxu0 0
        %874 = vmatpush2.bf16.msra.mxu0 0
        %875 = vmatprep.subr.bf16.mxu0 0
        %876 = vmatpush2.bf16.msra.mxu0 0
        %877 = vmatprep.subr.bf16.mxu0 0
        %878 = vmatpush2.bf16.msra.mxu0 0
        %879 = vmatprep.subr.bf16.mxu0 0
        %880 = vmatpush2.bf16.msra.mxu0 0
        %881 = vmatprep.mubr.bf16.mxu0 0
        %882 = vmatmul.mubr.bf16.gmra.mxu0 %v439
        %v883 = vpop.f32.mrf.mxu0
        %v884 = vadd.f32 0.0, %v883
        %v885 = vpop.f32.mrf.mxu0
        %v886 = vadd.f32 0.0, %v885
        %v887 = vpop.f32.mrf.mxu0
        %v888 = vadd.f32 0.0, %v887
        %v889 = vpop.f32.mrf.mxu0
        %v890 = vadd.f32 0.0, %v889
        %891 = vdwg.mxu0
        %892 = vmatprep.subr.bf16.mxu0 0
        %893 = vmatpush1.bf16.msra.mxu0 0
        %894 = vmatprep.subr.bf16.mxu0 0
        %895 = vmatpush1.bf16.msra.mxu0 0
        %896 = vmatprep.subr.bf16.mxu0 0
        %897 = vmatpush1.bf16.msra.mxu0 0
        %898 = vmatprep.subr.bf16.mxu0 0
        %899 = vmatpush1.bf16.msra.mxu0 0
        %900 = vmatprep.subr.bf16.mxu0 0
        %901 = vmatpush1.bf16.msra.mxu0 0
        %902 = vmatprep.subr.bf16.mxu0 0
        %903 = vmatpush1.bf16.msra.mxu0 0
        %904 = vmatprep.subr.bf16.mxu0 %v840
        %905 = vmatpush1.bf16.msra.mxu0 %v839
        %906 = vmatprep.subr.bf16.mxu0 %v836
        %907 = vmatpush1.bf16.msra.mxu0 %v835
        %908 = vmatprep.subr.bf16.mxu0 0
        %909 = vmatpush2.bf16.msra.mxu0 0
        %910 = vmatprep.subr.bf16.mxu0 0
        %911 = vmatpush2.bf16.msra.mxu0 0
        %912 = vmatprep.subr.bf16.mxu0 0
        %913 = vmatpush2.bf16.msra.mxu0 0
        %914 = vmatprep.subr.bf16.mxu0 0
        %915 = vmatpush2.bf16.msra.mxu0 0
        %916 = vmatprep.subr.bf16.mxu0 0
        %917 = vmatpush2.bf16.msra.mxu0 0
        %918 = vmatprep.subr.bf16.mxu0 0
        %919 = vmatpush2.bf16.msra.mxu0 0
        %920 = vmatprep.subr.bf16.mxu0 0
        %921 = vmatpush2.bf16.msra.mxu0 0
        %922 = vmatprep.subr.bf16.mxu0 0
        %923 = vmatpush2.bf16.msra.mxu0 0
        %924 = vmatprep.mubr.bf16.mxu0 0
        %925 = vmatmul.mubr.bf16.gmra.mxu0 %v439
        %v926 = vpop.f32.mrf.mxu0
        %v927 = vadd.f32 0.0, %v926
        %v928 = vpop.f32.mrf.mxu0
        %v929 = vadd.f32 0.0, %v928
        %v930 = vpop.f32.mrf.mxu0
        %v931 = vadd.f32 0.0, %v930
        %v932 = vpop.f32.mrf.mxu0
        %v933 = vadd.f32 0.0, %v932
        %934 = vdwg.mxu0
        %v935 = vmax.f32 %v884, 0.0
        %v936 = vmax.f32 %v886, 0.0
        %v937 = vmax.f32 %v927, 0.0
        %v938 = vmax.f32 %v929, 0.0
        %v939 = vmax.f32 %v888, 0.0
        %v940 = vmax.f32 %v890, 0.0
        %v941 = vmax.f32 %v931, 0.0
        %v942 = vmax.f32 %v933, 0.0
        %v943 = vld [vmem:[#allocation2 + $0x8] sm:$0xf]
        %v944 = vadd.f32 %v935, %v939
        %v945 = vrot.slane %v944, 4
        %v946 = vadd.f32 %v944, %v945
        %v947 = vrot.slane %v946, 2
        %v948 = vadd.f32 %v946, %v947
        %v949 = vrot.slane %v948, 1
        %v950 = vadd.f32 %v948, %v949
        %v951 = vadd.f32 %v936, %v940
        %v952 = vrot.slane %v951, 4
        %v953 = vadd.f32 %v951, %v952
        %v954 = vrot.slane %v953, 2
        %v955 = vadd.f32 %v953, %v954
        %v956 = vrot.slane %v955, 1
        %v957 = vadd.f32 %v955, %v956
        %v958 = vadd.f32 %v937, %v941
        %v959 = vrot.slane %v958, 4
        %v960 = vadd.f32 %v958, %v959
        %v961 = vrot.slane %v960, 2
        %v962 = vadd.f32 %v960, %v961
        %v963 = vrot.slane %v962, 1
        %v964 = vadd.f32 %v962, %v963
        %v965 = vadd.f32 %v938, %v942
        %v966 = vrot.slane %v965, 4
        %v967 = vadd.f32 %v965, %v966
        %v968 = vrot.slane %v967, 2
        %v969 = vadd.f32 %v967, %v968
        %v970 = vrot.slane %v969, 1
        %v971 = vadd.f32 %v969, %v970
        %v976 = vcombine.low %v950, %v957
        %v977 = vcombine.low %v964, %v971
        %v979 = vunpack.c.l.s4 1966171168
        %v980 = vunpack.c.0.s8 %v979
        %v981 = vlaneseq
        %v982 = vshrl.u32 %v981, 7
        %v983 = vsub.s32 %v980, %v982
        %v984 = vrot.slane %v976, %v983
        %v986 = vunpack.c.l.s4 1966171168
        %v987 = vunpack.c.0.s8 %v986
        %v988 = vlaneseq
        %v989 = vshrl.u32 %v988, 7
        %v990 = vsub.s32 %v987, %v989
        %v991 = vrot.slane %v977, %v990
        %v992 = vcombine.low %v984, %v991
        %v994 = vunpack.c.l.s4 1966171168
        %v995 = vunpack.c.0.s8 %v994
        %v996 = vlaneseq
        %v997 = vshrl.u32 %v996, 7
        %v998 = vsub.s32 %v995, %v997
        %v999 = vrot.slane %v992, %v998
        %v1001 = vadd.f32 %v943, %v999
        %1002 = vst.msk [vmem:[#allocation2 + $0x8] sm:$0xf] %vm597, %v1001
        %v1003 = vld [vmem:[#allocation3 + $0x30] sm:$0xff]
        %v1004 = vld [vmem:[#allocation3 + $0x38] sm:$0xff]
        %v1005 = vld [vmem:[#allocation3 + $0x70] sm:$0xff]
        %v1006 = vld [vmem:[#allocation3 + $0x78] sm:$0xff]
        %v1007 = vld [vmem:[#allocation3 + $0xb0] sm:$0xff]
        %v1008 = vld [vmem:[#allocation3 + $0xb8] sm:$0xff]
        %v1009 = vld [vmem:[#allocation3 + $0xf0] sm:$0xff]
        %v1010 = vld [vmem:[#allocation3 + $0xf8] sm:$0xff]
        %v1019 = vunpack.c.l.b16 %v1003
        %v1020 = vunpack.c.h.b16 %v1003
        %v1021 = vunpack.c.l.b16 %v1004
        %v1022 = vunpack.c.h.b16 %v1004
        %v1023 = vunpack.c.l.b16 %v1005
        %v1024 = vunpack.c.h.b16 %v1005
        %v1025 = vunpack.c.l.b16 %v1006
        %v1026 = vunpack.c.h.b16 %v1006
        %v1027 = vunpack.c.l.b16 %v1007
        %v1028 = vunpack.c.h.b16 %v1007
        %v1029 = vunpack.c.l.b16 %v1008
        %v1030 = vunpack.c.h.b16 %v1008
        %v1031 = vunpack.c.l.b16 %v1009
        %v1032 = vunpack.c.h.b16 %v1009
        %v1033 = vunpack.c.l.b16 %v1010
        %v1034 = vunpack.c.h.b16 %v1010
        %v1035 = vpack.c.b16 %v1023, %v1019
        %v1036 = vpack.c.b16 %v1024, %v1020
        %v1037 = vpack.c.b16 %v1025, %v1021
        %v1038 = vpack.c.b16 %v1026, %v1022
        %v1039 = vpack.c.b16 %v1031, %v1027
        %v1040 = vpack.c.b16 %v1032, %v1028
        %v1041 = vpack.c.b16 %v1033, %v1029
        %v1042 = vpack.c.b16 %v1034, %v1030
        %1051 = vmatprep.subr.bf16.mxu0 0
        %1052 = vmatpush1.bf16.msra.mxu0 0
        %1053 = vmatprep.subr.bf16.mxu0 0
        %1054 = vmatpush1.bf16.msra.mxu0 0
        %1055 = vmatprep.subr.bf16.mxu0 0
        %1056 = vmatpush1.bf16.msra.mxu0 0
        %1057 = vmatprep.subr.bf16.mxu0 0
        %1058 = vmatpush1.bf16.msra.mxu0 0
        %1059 = vmatprep.subr.bf16.mxu0 0
        %1060 = vmatpush1.bf16.msra.mxu0 0
        %1061 = vmatprep.subr.bf16.mxu0 0
        %1062 = vmatpush1.bf16.msra.mxu0 0
        %1063 = vmatprep.subr.bf16.mxu0 %v1040
        %1064 = vmatpush1.bf16.msra.mxu0 %v1039
        %1065 = vmatprep.subr.bf16.mxu0 %v1036
        %1066 = vmatpush1.bf16.msra.mxu0 %v1035
        %1067 = vmatprep.subr.bf16.mxu0 0
        %1068 = vmatpush2.bf16.msra.mxu0 0
        %1069 = vmatprep.subr.bf16.mxu0 0
        %1070 = vmatpush2.bf16.msra.mxu0 0
        %1071 = vmatprep.subr.bf16.mxu0 0
        %1072 = vmatpush2.bf16.msra.mxu0 0
        %1073 = vmatprep.subr.bf16.mxu0 0
        %1074 = vmatpush2.bf16.msra.mxu0 0
        %1075 = vmatprep.subr.bf16.mxu0 0
        %1076 = vmatpush2.bf16.msra.mxu0 0
        %1077 = vmatprep.subr.bf16.mxu0 0
        %1078 = vmatpush2.bf16.msra.mxu0 0
        %1079 = vmatprep.subr.bf16.mxu0 0
        %1080 = vmatpush2.bf16.msra.mxu0 0
        %1081 = vmatprep.subr.bf16.mxu0 0
        %1082 = vmatpush2.bf16.msra.mxu0 0
        %1083 = vmatprep.mubr.bf16.mxu0 0
        %1084 = vmatmul.mubr.bf16.gmra.mxu0 %v439
        %v1085 = vpop.f32.mrf.mxu0
        %v1086 = vadd.f32 0.0, %v1085
        %v1087 = vpop.f32.mrf.mxu0
        %v1088 = vadd.f32 0.0, %v1087
        %v1089 = vpop.f32.mrf.mxu0
        %v1090 = vadd.f32 0.0, %v1089
        %v1091 = vpop.f32.mrf.mxu0
        %v1092 = vadd.f32 0.0, %v1091
        %1093 = vdwg.mxu0
        %1094 = vmatprep.subr.bf16.mxu0 0
        %1095 = vmatpush1.bf16.msra.mxu0 0
        %1096 = vmatprep.subr.bf16.mxu0 0
        %1097 = vmatpush1.bf16.msra.mxu0 0
        %1098 = vmatprep.subr.bf16.mxu0 0
        %1099 = vmatpush1.bf16.msra.mxu0 0
        %1100 = vmatprep.subr.bf16.mxu0 0
        %1101 = vmatpush1.bf16.msra.mxu0 0
        %1102 = vmatprep.subr.bf16.mxu0 0
        %1103 = vmatpush1.bf16.msra.mxu0 0
        %1104 = vmatprep.subr.bf16.mxu0 0
        %1105 = vmatpush1.bf16.msra.mxu0 0
        %1106 = vmatprep.subr.bf16.mxu0 %v1042
        %1107 = vmatpush1.bf16.msra.mxu0 %v1041
        %1108 = vmatprep.subr.bf16.mxu0 %v1038
        %1109 = vmatpush1.bf16.msra.mxu0 %v1037
        %1110 = vmatprep.subr.bf16.mxu0 0
        %1111 = vmatpush2.bf16.msra.mxu0 0
        %1112 = vmatprep.subr.bf16.mxu0 0
        %1113 = vmatpush2.bf16.msra.mxu0 0
        %1114 = vmatprep.subr.bf16.mxu0 0
        %1115 = vmatpush2.bf16.msra.mxu0 0
        %1116 = vmatprep.subr.bf16.mxu0 0
        %1117 = vmatpush2.bf16.msra.mxu0 0
        %1118 = vmatprep.subr.bf16.mxu0 0
        %1119 = vmatpush2.bf16.msra.mxu0 0
        %1120 = vmatprep.subr.bf16.mxu0 0
        %1121 = vmatpush2.bf16.msra.mxu0 0
        %1122 = vmatprep.subr.bf16.mxu0 0
        %1123 = vmatpush2.bf16.msra.mxu0 0
        %1124 = vmatprep.subr.bf16.mxu0 0
        %1125 = vmatpush2.bf16.msra.mxu0 0
        %1126 = vmatprep.mubr.bf16.mxu0 0
        %1127 = vmatmul.mubr.bf16.gmra.mxu0 %v439
        %v1128 = vpop.f32.mrf.mxu0
        %v1129 = vadd.f32 0.0, %v1128
        %v1130 = vpop.f32.mrf.mxu0
        %v1131 = vadd.f32 0.0, %v1130
        %v1132 = vpop.f32.mrf.mxu0
        %v1133 = vadd.f32 0.0, %v1132
        %v1134 = vpop.f32.mrf.mxu0
        %v1135 = vadd.f32 0.0, %v1134
        %1136 = vdwg.mxu0
        %v1137 = vmax.f32 %v1086, 0.0
        %v1138 = vmax.f32 %v1088, 0.0
        %v1139 = vmax.f32 %v1129, 0.0
        %v1140 = vmax.f32 %v1131, 0.0
        %v1141 = vmax.f32 %v1090, 0.0
        %v1142 = vmax.f32 %v1092, 0.0
        %v1143 = vmax.f32 %v1133, 0.0
        %v1144 = vmax.f32 %v1135, 0.0
        %v1145 = vld [vmem:[#allocation2 + $0xc] sm:$0xf]
        %v1146 = vadd.f32 %v1137, %v1141
        %v1147 = vrot.slane %v1146, 4
        %v1148 = vadd.f32 %v1146, %v1147
        %v1149 = vrot.slane %v1148, 2
        %v1150 = vadd.f32 %v1148, %v1149
        %v1151 = vrot.slane %v1150, 1
        %v1152 = vadd.f32 %v1150, %v1151
        %v1153 = vadd.f32 %v1138, %v1142
        %v1154 = vrot.slane %v1153, 4
        %v1155 = vadd.f32 %v1153, %v1154
        %v1156 = vrot.slane %v1155, 2
        %v1157 = vadd.f32 %v1155, %v1156
        %v1158 = vrot.slane %v1157, 1
        %v1159 = vadd.f32 %v1157, %v1158
        %v1160 = vadd.f32 %v1139, %v1143
        %v1161 = vrot.slane %v1160, 4
        %v1162 = vadd.f32 %v1160, %v1161
        %v1163 = vrot.slane %v1162, 2
        %v1164 = vadd.f32 %v1162, %v1163
        %v1165 = vrot.slane %v1164, 1
        %v1166 = vadd.f32 %v1164, %v1165
        %v1167 = vadd.f32 %v1140, %v1144
        %v1168 = vrot.slane %v1167, 4
        %v1169 = vadd.f32 %v1167, %v1168
        %v1170 = vrot.slane %v1169, 2
        %v1171 = vadd.f32 %v1169, %v1170
        %v1172 = vrot.slane %v1171, 1
        %v1173 = vadd.f32 %v1171, %v1172
        %v1178 = vcombine.low %v1152, %v1159
        %v1179 = vcombine.low %v1166, %v1173
        %v1181 = vunpack.c.l.s4 1966171168
        %v1182 = vunpack.c.0.s8 %v1181
        %v1183 = vlaneseq
        %v1184 = vshrl.u32 %v1183, 7
        %v1185 = vsub.s32 %v1182, %v1184
        %v1186 = vrot.slane %v1178, %v1185
        %v1188 = vunpack.c.l.s4 1966171168
        %v1189 = vunpack.c.0.s8 %v1188
        %v1190 = vlaneseq
        %v1191 = vshrl.u32 %v1190, 7
        %v1192 = vsub.s32 %v1189, %v1191
        %v1193 = vrot.slane %v1179, %v1192
        %v1194 = vcombine.low %v1186, %v1193
        %v1196 = vunpack.c.l.s4 1966171168
        %v1197 = vunpack.c.0.s8 %v1196
        %v1198 = vlaneseq
        %v1199 = vshrl.u32 %v1198, 7
        %v1200 = vsub.s32 %v1197, %v1199
        %v1201 = vrot.slane %v1194, %v1200
        %v1203 = vadd.f32 %v1145, %v1201
        %1204 = vst.msk [vmem:[#allocation2 + $0xc] sm:$0xf] %vm597, %v1203
        %p1205 = scmp.eq.s32.totalorder %s29, 3
        // Predicated region
        $region69: #{tpu_custom_call.1} parent=51 // pred_check
          %p1206 = pneg %p1205
        $region70: #{tpu_custom_call.1} parent=51 // pred_check_branch
          %1208 = sbr.rel (%p1206) target = $region72
        $region71: #{tpu_custom_call.1} parent=51 // pred_region
          %v1209 = vld [vmem:[#allocation2] sm:$0xff]
          %v1210 = vld [vmem:[#allocation2 + $0x8] sm:$0xff]
          %v1211 = vmul.f32 %v1209, 0.020408163
          %v1212 = vmul.f32 %v1210, 0.020408163
          %v1215 = vlaneseq
          %v1216 = vshrl.u32 %v1215, 7
          %v1217 = vsub.s32 0, %v1216
          %v1218 = vrot.slane %v1211, %v1217
          %v1219 = vlaneseq
          %v1220 = vshrl.u32 %v1219, 7
          %v1221 = vsub.s32 1, %v1220
          %v1222 = vrot.slane %v1211, %v1221
          %v1223 = vlaneseq
          %v1224 = vshrl.u32 %v1223, 7
          %v1225 = vsub.s32 2, %v1224
          %v1226 = vrot.slane %v1211, %v1225
          %v1227 = vlaneseq
          %v1228 = vshrl.u32 %v1227, 7
          %v1229 = vsub.s32 3, %v1228
          %v1230 = vrot.slane %v1211, %v1229
          %v1231 = vlaneseq
          %v1232 = vshrl.u32 %v1231, 7
          %v1233 = vsub.s32 4, %v1232
          %v1234 = vrot.slane %v1211, %v1233
          %v1235 = vlaneseq
          %v1236 = vshrl.u32 %v1235, 7
          %v1237 = vsub.s32 5, %v1236
          %v1238 = vrot.slane %v1211, %v1237
          %v1239 = vlaneseq
          %v1240 = vshrl.u32 %v1239, 7
          %v1241 = vsub.s32 6, %v1240
          %v1242 = vrot.slane %v1211, %v1241
          %v1243 = vlaneseq
          %v1244 = vshrl.u32 %v1243, 7
          %v1245 = vsub.s32 7, %v1244
          %v1246 = vrot.slane %v1211, %v1245
          %v1247 = vlaneseq
          %v1248 = vshrl.u32 %v1247, 7
          %v1249 = vsub.s32 0, %v1248
          %v1250 = vrot.slane %v1212, %v1249
          %v1251 = vlaneseq
          %v1252 = vshrl.u32 %v1251, 7
          %v1253 = vsub.s32 1, %v1252
          %v1254 = vrot.slane %v1212, %v1253
          %v1255 = vlaneseq
          %v1256 = vshrl.u32 %v1255, 7
          %v1257 = vsub.s32 2, %v1256
          %v1258 = vrot.slane %v1212, %v1257
          %v1259 = vlaneseq
          %v1260 = vshrl.u32 %v1259, 7
          %v1261 = vsub.s32 3, %v1260
          %v1262 = vrot.slane %v1212, %v1261
          %v1263 = vlaneseq
          %v1264 = vshrl.u32 %v1263, 7
          %v1265 = vsub.s32 4, %v1264
          %v1266 = vrot.slane %v1212, %v1265
          %v1267 = vlaneseq
          %v1268 = vshrl.u32 %v1267, 7
          %v1269 = vsub.s32 5, %v1268
          %v1270 = vrot.slane %v1212, %v1269
          %v1271 = vlaneseq
          %v1272 = vshrl.u32 %v1271, 7
          %v1273 = vsub.s32 6, %v1272
          %v1274 = vrot.slane %v1212, %v1273
          %v1275 = vlaneseq
          %v1276 = vshrl.u32 %v1275, 7
          %v1277 = vsub.s32 7, %v1276
          %v1278 = vrot.slane %v1212, %v1277
          %v1295 = vpack.c.bf16 %v1218, %v1218
          %v1296 = vpack.c.bf16 %v1222, %v1222
          %v1297 = vpack.c.bf16 %v1226, %v1226
          %v1298 = vpack.c.bf16 %v1230, %v1230
          %v1299 = vpack.c.bf16 %v1234, %v1234
          %v1300 = vpack.c.bf16 %v1238, %v1238
          %v1301 = vpack.c.bf16 %v1242, %v1242
          %v1302 = vpack.c.bf16 %v1246, %v1246
          %v1303 = vpack.c.bf16 %v1250, %v1250
          %v1304 = vpack.c.bf16 %v1254, %v1254
          %v1305 = vpack.c.bf16 %v1258, %v1258
          %v1306 = vpack.c.bf16 %v1262, %v1262
          %v1307 = vpack.c.bf16 %v1266, %v1266
          %v1308 = vpack.c.bf16 %v1270, %v1270
          %v1309 = vpack.c.bf16 %v1274, %v1274
          %v1310 = vpack.c.bf16 %v1278, %v1278
          %v1311 = vld [vmem:[#allocation6] sm:$0xff]
          %v1312 = vld [vmem:[#allocation6 + $0x8] sm:$0xff]
          %v1313 = vld [vmem:[#allocation6 + $0x10] sm:$0xff]
          %v1314 = vld [vmem:[#allocation6 + $0x18] sm:$0xff]
          %v1315 = vld [vmem:[#allocation6 + $0x20] sm:$0xff]
          %v1316 = vld [vmem:[#allocation6 + $0x28] sm:$0xff]
          %v1317 = vld [vmem:[#allocation6 + $0x30] sm:$0xff]
          %v1318 = vld [vmem:[#allocation6 + $0x38] sm:$0xff]
          %v1319 = vld [vmem:[#allocation6 + $0x40] sm:$0xff]
          %v1320 = vld [vmem:[#allocation6 + $0x48] sm:$0xff]
          %v1321 = vld [vmem:[#allocation6 + $0x50] sm:$0xff]
          %v1322 = vld [vmem:[#allocation6 + $0x58] sm:$0xff]
          %v1323 = vld [vmem:[#allocation6 + $0x60] sm:$0xff]
          %v1324 = vld [vmem:[#allocation6 + $0x68] sm:$0xff]
          %v1325 = vld [vmem:[#allocation6 + $0x70] sm:$0xff]
          %v1326 = vld [vmem:[#allocation6 + $0x78] sm:$0xff]
          %v1327 = vld [vmem:[#allocation6 + $0x80] sm:$0xff]
          %v1328 = vld [vmem:[#allocation6 + $0x88] sm:$0xff]
          %v1329 = vld [vmem:[#allocation6 + $0x90] sm:$0xff]
          %v1330 = vld [vmem:[#allocation6 + $0x98] sm:$0xff]
          %v1331 = vld [vmem:[#allocation6 + $0xa0] sm:$0xff]
          %v1332 = vld [vmem:[#allocation6 + $0xa8] sm:$0xff]
          %v1333 = vld [vmem:[#allocation6 + $0xb0] sm:$0xff]
          %v1334 = vld [vmem:[#allocation6 + $0xb8] sm:$0xff]
          %v1335 = vld [vmem:[#allocation6 + $0xc0] sm:$0xff]
          %v1336 = vld [vmem:[#allocation6 + $0xc8] sm:$0xff]
          %v1337 = vld [vmem:[#allocation6 + $0xd0] sm:$0xff]
          %v1338 = vld [vmem:[#allocation6 + $0xd8] sm:$0xff]
          %v1339 = vld [vmem:[#allocation6 + $0xe0] sm:$0xff]
          %v1340 = vld [vmem:[#allocation6 + $0xe8] sm:$0xff]
          %v1341 = vld [vmem:[#allocation6 + $0xf0] sm:$0xff]
          %v1342 = vld [vmem:[#allocation6 + $0xf8] sm:$0xff]
          %v1343 = vld [vmem:[#allocation6 + $0x100] sm:$0xff]
          %v1344 = vld [vmem:[#allocation6 + $0x108] sm:$0xff]
          %v1345 = vld [vmem:[#allocation6 + $0x110] sm:$0xff]
          %v1346 = vld [vmem:[#allocation6 + $0x118] sm:$0xff]
          %v1347 = vld [vmem:[#allocation6 + $0x120] sm:$0xff]
          %v1348 = vld [vmem:[#allocation6 + $0x128] sm:$0xff]
          %v1349 = vld [vmem:[#allocation6 + $0x130] sm:$0xff]
          %v1350 = vld [vmem:[#allocation6 + $0x138] sm:$0xff]
          %v1351 = vld [vmem:[#allocation6 + $0x140] sm:$0xff]
          %v1352 = vld [vmem:[#allocation6 + $0x148] sm:$0xff]
          %v1353 = vld [vmem:[#allocation6 + $0x150] sm:$0xff]
          %v1354 = vld [vmem:[#allocation6 + $0x158] sm:$0xff]
          %v1355 = vld [vmem:[#allocation6 + $0x160] sm:$0xff]
          %v1356 = vld [vmem:[#allocation6 + $0x168] sm:$0xff]
          %v1357 = vld [vmem:[#allocation6 + $0x170] sm:$0xff]
          %v1358 = vld [vmem:[#allocation6 + $0x178] sm:$0xff]
          %v1359 = vld [vmem:[#allocation6 + $0x180] sm:$0xff]
          %v1360 = vld [vmem:[#allocation6 + $0x188] sm:$0xff]
          %v1361 = vld [vmem:[#allocation6 + $0x190] sm:$0xff]
          %v1362 = vld [vmem:[#allocation6 + $0x198] sm:$0xff]
          %v1363 = vld [vmem:[#allocation6 + $0x1a0] sm:$0xff]
          %v1364 = vld [vmem:[#allocation6 + $0x1a8] sm:$0xff]
          %v1365 = vld [vmem:[#allocation6 + $0x1b0] sm:$0xff]
          %v1366 = vld [vmem:[#allocation6 + $0x1b8] sm:$0xff]
          %v1367 = vld [vmem:[#allocation6 + $0x1c0] sm:$0xff]
          %v1368 = vld [vmem:[#allocation6 + $0x1c8] sm:$0xff]
          %v1369 = vld [vmem:[#allocation6 + $0x1d0] sm:$0xff]
          %v1370 = vld [vmem:[#allocation6 + $0x1d8] sm:$0xff]
          %v1371 = vld [vmem:[#allocation6 + $0x1e0] sm:$0xff]
          %v1372 = vld [vmem:[#allocation6 + $0x1e8] sm:$0xff]
          %v1373 = vld [vmem:[#allocation6 + $0x1f0] sm:$0xff]
          %v1374 = vld [vmem:[#allocation6 + $0x1f8] sm:$0xff]
          %v1375 = vld [vmem:[#allocation6 + $0x200] sm:$0xff]
          %v1376 = vld [vmem:[#allocation6 + $0x208] sm:$0xff]
          %v1377 = vld [vmem:[#allocation6 + $0x210] sm:$0xff]
          %v1378 = vld [vmem:[#allocation6 + $0x218] sm:$0xff]
          %v1379 = vld [vmem:[#allocation6 + $0x220] sm:$0xff]
          %v1380 = vld [vmem:[#allocation6 + $0x228] sm:$0xff]
          %v1381 = vld [vmem:[#allocation6 + $0x230] sm:$0xff]
          %v1382 = vld [vmem:[#allocation6 + $0x238] sm:$0xff]
          %v1383 = vld [vmem:[#allocation6 + $0x240] sm:$0xff]
          %v1384 = vld [vmem:[#allocation6 + $0x248] sm:$0xff]
          %v1385 = vld [vmem:[#allocation6 + $0x250] sm:$0xff]
          %v1386 = vld [vmem:[#allocation6 + $0x258] sm:$0xff]
          %v1387 = vld [vmem:[#allocation6 + $0x260] sm:$0xff]
          %v1388 = vld [vmem:[#allocation6 + $0x268] sm:$0xff]
          %v1389 = vld [vmem:[#allocation6 + $0x270] sm:$0xff]
          %v1390 = vld [vmem:[#allocation6 + $0x278] sm:$0xff]
          %v1391 = vld [vmem:[#allocation6 + $0x280] sm:$0xff]
          %v1392 = vld [vmem:[#allocation6 + $0x288] sm:$0xff]
          %v1393 = vld [vmem:[#allocation6 + $0x290] sm:$0xff]
          %v1394 = vld [vmem:[#allocation6 + $0x298] sm:$0xff]
          %v1395 = vld [vmem:[#allocation6 + $0x2a0] sm:$0xff]
          %v1396 = vld [vmem:[#allocation6 + $0x2a8] sm:$0xff]
          %v1397 = vld [vmem:[#allocation6 + $0x2b0] sm:$0xff]
          %v1398 = vld [vmem:[#allocation6 + $0x2b8] sm:$0xff]
          %v1399 = vld [vmem:[#allocation6 + $0x2c0] sm:$0xff]
          %v1400 = vld [vmem:[#allocation6 + $0x2c8] sm:$0xff]
          %v1401 = vld [vmem:[#allocation6 + $0x2d0] sm:$0xff]
          %v1402 = vld [vmem:[#allocation6 + $0x2d8] sm:$0xff]
          %v1403 = vld [vmem:[#allocation6 + $0x2e0] sm:$0xff]
          %v1404 = vld [vmem:[#allocation6 + $0x2e8] sm:$0xff]
          %v1405 = vld [vmem:[#allocation6 + $0x2f0] sm:$0xff]
          %v1406 = vld [vmem:[#allocation6 + $0x2f8] sm:$0xff]
          %v1407 = vld [vmem:[#allocation6 + $0x300] sm:$0xff]
          %v1408 = vld [vmem:[#allocation6 + $0x308] sm:$0xff]
          %v1409 = vld [vmem:[#allocation6 + $0x310] sm:$0xff]
          %v1410 = vld [vmem:[#allocation6 + $0x318] sm:$0xff]
          %v1411 = vld [vmem:[#allocation6 + $0x320] sm:$0xff]
          %v1412 = vld [vmem:[#allocation6 + $0x328] sm:$0xff]
          %v1413 = vld [vmem:[#allocation6 + $0x330] sm:$0xff]
          %v1414 = vld [vmem:[#allocation6 + $0x338] sm:$0xff]
          %v1415 = vld [vmem:[#allocation6 + $0x340] sm:$0xff]
          %v1416 = vld [vmem:[#allocation6 + $0x348] sm:$0xff]
          %v1417 = vld [vmem:[#allocation6 + $0x350] sm:$0xff]
          %v1418 = vld [vmem:[#allocation6 + $0x358] sm:$0xff]
          %v1419 = vld [vmem:[#allocation6 + $0x360] sm:$0xff]
          %v1420 = vld [vmem:[#allocation6 + $0x368] sm:$0xff]
          %v1421 = vld [vmem:[#allocation6 + $0x370] sm:$0xff]
          %v1422 = vld [vmem:[#allocation6 + $0x378] sm:$0xff]
          %v1423 = vld [vmem:[#allocation6 + $0x380] sm:$0xff]
          %v1424 = vld [vmem:[#allocation6 + $0x388] sm:$0xff]
          %v1425 = vld [vmem:[#allocation6 + $0x390] sm:$0xff]
          %v1426 = vld [vmem:[#allocation6 + $0x398] sm:$0xff]
          %v1427 = vld [vmem:[#allocation6 + $0x3a0] sm:$0xff]
          %v1428 = vld [vmem:[#allocation6 + $0x3a8] sm:$0xff]
          %v1429 = vld [vmem:[#allocation6 + $0x3b0] sm:$0xff]
          %v1430 = vld [vmem:[#allocation6 + $0x3b8] sm:$0xff]
          %v1431 = vld [vmem:[#allocation6 + $0x3c0] sm:$0xff]
          %v1432 = vld [vmem:[#allocation6 + $0x3c8] sm:$0xff]
          %v1433 = vld [vmem:[#allocation6 + $0x3d0] sm:$0xff]
          %v1434 = vld [vmem:[#allocation6 + $0x3d8] sm:$0xff]
          %v1435 = vld [vmem:[#allocation6 + $0x3e0] sm:$0xff]
          %v1436 = vld [vmem:[#allocation6 + $0x3e8] sm:$0xff]
          %v1437 = vld [vmem:[#allocation6 + $0x3f0] sm:$0xff]
          %v1438 = vld [vmem:[#allocation6 + $0x3f8] sm:$0xff]
          %v1439 = vld [vmem:[#allocation6 + $0x400] sm:$0xff]
          %v1440 = vld [vmem:[#allocation6 + $0x408] sm:$0xff]
          %v1441 = vld [vmem:[#allocation6 + $0x410] sm:$0xff]
          %v1442 = vld [vmem:[#allocation6 + $0x418] sm:$0xff]
          %v1443 = vld [vmem:[#allocation6 + $0x420] sm:$0xff]
          %v1444 = vld [vmem:[#allocation6 + $0x428] sm:$0xff]
          %v1445 = vld [vmem:[#allocation6 + $0x430] sm:$0xff]
          %v1446 = vld [vmem:[#allocation6 + $0x438] sm:$0xff]
          %v1447 = vld [vmem:[#allocation6 + $0x440] sm:$0xff]
          %v1448 = vld [vmem:[#allocation6 + $0x448] sm:$0xff]
          %v1449 = vld [vmem:[#allocation6 + $0x450] sm:$0xff]
          %v1450 = vld [vmem:[#allocation6 + $0x458] sm:$0xff]
          %v1451 = vld [vmem:[#allocation6 + $0x460] sm:$0xff]
          %v1452 = vld [vmem:[#allocation6 + $0x468] sm:$0xff]
          %v1453 = vld [vmem:[#allocation6 + $0x470] sm:$0xff]
          %v1454 = vld [vmem:[#allocation6 + $0x478] sm:$0xff]
          %v1455 = vld [vmem:[#allocation6 + $0x480] sm:$0xff]
          %v1456 = vld [vmem:[#allocation6 + $0x488] sm:$0xff]
          %v1457 = vld [vmem:[#allocation6 + $0x490] sm:$0xff]
          %v1458 = vld [vmem:[#allocation6 + $0x498] sm:$0xff]
          %v1459 = vld [vmem:[#allocation6 + $0x4a0] sm:$0xff]
          %v1460 = vld [vmem:[#allocation6 + $0x4a8] sm:$0xff]
          %v1461 = vld [vmem:[#allocation6 + $0x4b0] sm:$0xff]
          %v1462 = vld [vmem:[#allocation6 + $0x4b8] sm:$0xff]
          %v1463 = vld [vmem:[#allocation6 + $0x4c0] sm:$0xff]
          %v1464 = vld [vmem:[#allocation6 + $0x4c8] sm:$0xff]
          %v1465 = vld [vmem:[#allocation6 + $0x4d0] sm:$0xff]
          %v1466 = vld [vmem:[#allocation6 + $0x4d8] sm:$0xff]
          %v1467 = vld [vmem:[#allocation6 + $0x4e0] sm:$0xff]
          %v1468 = vld [vmem:[#allocation6 + $0x4e8] sm:$0xff]
          %v1469 = vld [vmem:[#allocation6 + $0x4f0] sm:$0xff]
          %v1470 = vld [vmem:[#allocation6 + $0x4f8] sm:$0xff]
          %v1471 = vld [vmem:[#allocation6 + $0x500] sm:$0xff]
          %v1472 = vld [vmem:[#allocation6 + $0x508] sm:$0xff]
          %v1473 = vld [vmem:[#allocation6 + $0x510] sm:$0xff]
          %v1474 = vld [vmem:[#allocation6 + $0x518] sm:$0xff]
          %v1475 = vld [vmem:[#allocation6 + $0x520] sm:$0xff]
          %v1476 = vld [vmem:[#allocation6 + $0x528] sm:$0xff]
          %v1477 = vld [vmem:[#allocation6 + $0x530] sm:$0xff]
          %v1478 = vld [vmem:[#allocation6 + $0x538] sm:$0xff]
          %v1479 = vld [vmem:[#allocation6 + $0x540] sm:$0xff]
          %v1480 = vld [vmem:[#allocation6 + $0x548] sm:$0xff]
          %v1481 = vld [vmem:[#allocation6 + $0x550] sm:$0xff]
          %v1482 = vld [vmem:[#allocation6 + $0x558] sm:$0xff]
          %v1483 = vld [vmem:[#allocation6 + $0x560] sm:$0xff]
          %v1484 = vld [vmem:[#allocation6 + $0x568] sm:$0xff]
          %v1485 = vld [vmem:[#allocation6 + $0x570] sm:$0xff]
          %v1486 = vld [vmem:[#allocation6 + $0x578] sm:$0xff]
          %v1487 = vld [vmem:[#allocation6 + $0x580] sm:$0xff]
          %v1488 = vld [vmem:[#allocation6 + $0x588] sm:$0xff]
          %v1489 = vld [vmem:[#allocation6 + $0x590] sm:$0xff]
          %v1490 = vld [vmem:[#allocation6 + $0x598] sm:$0xff]
          %v1491 = vld [vmem:[#allocation6 + $0x5a0] sm:$0xff]
          %v1492 = vld [vmem:[#allocation6 + $0x5a8] sm:$0xff]
          %v1493 = vld [vmem:[#allocation6 + $0x5b0] sm:$0xff]
          %v1494 = vld [vmem:[#allocation6 + $0x5b8] sm:$0xff]
          %v1495 = vld [vmem:[#allocation6 + $0x5c0] sm:$0xff]
          %v1496 = vld [vmem:[#allocation6 + $0x5c8] sm:$0xff]
          %v1497 = vld [vmem:[#allocation6 + $0x5d0] sm:$0xff]
          %v1498 = vld [vmem:[#allocation6 + $0x5d8] sm:$0xff]
          %v1499 = vld [vmem:[#allocation6 + $0x5e0] sm:$0xff]
          %v1500 = vld [vmem:[#allocation6 + $0x5e8] sm:$0xff]
          %v1501 = vld [vmem:[#allocation6 + $0x5f0] sm:$0xff]
          %v1502 = vld [vmem:[#allocation6 + $0x5f8] sm:$0xff]
          %v1503 = vld [vmem:[#allocation6 + $0x600] sm:$0xff]
          %v1504 = vld [vmem:[#allocation6 + $0x608] sm:$0xff]
          %v1505 = vld [vmem:[#allocation6 + $0x610] sm:$0xff]
          %v1506 = vld [vmem:[#allocation6 + $0x618] sm:$0xff]
          %v1507 = vld [vmem:[#allocation6 + $0x620] sm:$0xff]
          %v1508 = vld [vmem:[#allocation6 + $0x628] sm:$0xff]
          %v1509 = vld [vmem:[#allocation6 + $0x630] sm:$0xff]
          %v1510 = vld [vmem:[#allocation6 + $0x638] sm:$0xff]
          %v1511 = vld [vmem:[#allocation6 + $0x640] sm:$0xff]
          %v1512 = vld [vmem:[#allocation6 + $0x648] sm:$0xff]
          %v1513 = vld [vmem:[#allocation6 + $0x650] sm:$0xff]
          %v1514 = vld [vmem:[#allocation6 + $0x658] sm:$0xff]
          %v1515 = vld [vmem:[#allocation6 + $0x660] sm:$0xff]
          %v1516 = vld [vmem:[#allocation6 + $0x668] sm:$0xff]
          %v1517 = vld [vmem:[#allocation6 + $0x670] sm:$0xff]
          %v1518 = vld [vmem:[#allocation6 + $0x678] sm:$0xff]
          %v1519 = vld [vmem:[#allocation6 + $0x680] sm:$0xff]
          %v1520 = vld [vmem:[#allocation6 + $0x688] sm:$0xff]
          %v1521 = vld [vmem:[#allocation6 + $0x690] sm:$0xff]
          %v1522 = vld [vmem:[#allocation6 + $0x698] sm:$0xff]
          %v1523 = vld [vmem:[#allocation6 + $0x6a0] sm:$0xff]
          %v1524 = vld [vmem:[#allocation6 + $0x6a8] sm:$0xff]
          %v1525 = vld [vmem:[#allocation6 + $0x6b0] sm:$0xff]
          %v1526 = vld [vmem:[#allocation6 + $0x6b8] sm:$0xff]
          %v1527 = vld [vmem:[#allocation6 + $0x6c0] sm:$0xff]
          %v1528 = vld [vmem:[#allocation6 + $0x6c8] sm:$0xff]
          %v1529 = vld [vmem:[#allocation6 + $0x6d0] sm:$0xff]
          %v1530 = vld [vmem:[#allocation6 + $0x6d8] sm:$0xff]
          %v1531 = vld [vmem:[#allocation6 + $0x6e0] sm:$0xff]
          %v1532 = vld [vmem:[#allocation6 + $0x6e8] sm:$0xff]
          %v1533 = vld [vmem:[#allocation6 + $0x6f0] sm:$0xff]
          %v1534 = vld [vmem:[#allocation6 + $0x6f8] sm:$0xff]
          %v1535 = vld [vmem:[#allocation6 + $0x700] sm:$0xff]
          %v1536 = vld [vmem:[#allocation6 + $0x708] sm:$0xff]
          %v1537 = vld [vmem:[#allocation6 + $0x710] sm:$0xff]
          %v1538 = vld [vmem:[#allocation6 + $0x718] sm:$0xff]
          %v1539 = vld [vmem:[#allocation6 + $0x720] sm:$0xff]
          %v1540 = vld [vmem:[#allocation6 + $0x728] sm:$0xff]
          %v1541 = vld [vmem:[#allocation6 + $0x730] sm:$0xff]
          %v1542 = vld [vmem:[#allocation6 + $0x738] sm:$0xff]
          %v1543 = vld [vmem:[#allocation6 + $0x740] sm:$0xff]
          %v1544 = vld [vmem:[#allocation6 + $0x748] sm:$0xff]
          %v1545 = vld [vmem:[#allocation6 + $0x750] sm:$0xff]
          %v1546 = vld [vmem:[#allocation6 + $0x758] sm:$0xff]
          %v1547 = vld [vmem:[#allocation6 + $0x760] sm:$0xff]
          %v1548 = vld [vmem:[#allocation6 + $0x768] sm:$0xff]
          %v1549 = vld [vmem:[#allocation6 + $0x770] sm:$0xff]
          %v1550 = vld [vmem:[#allocation6 + $0x778] sm:$0xff]
          %v1551 = vld [vmem:[#allocation6 + $0x780] sm:$0xff]
          %v1552 = vld [vmem:[#allocation6 + $0x788] sm:$0xff]
          %v1553 = vld [vmem:[#allocation6 + $0x790] sm:$0xff]
          %v1554 = vld [vmem:[#allocation6 + $0x798] sm:$0xff]
          %v1555 = vld [vmem:[#allocation6 + $0x7a0] sm:$0xff]
          %v1556 = vld [vmem:[#allocation6 + $0x7a8] sm:$0xff]
          %v1557 = vld [vmem:[#allocation6 + $0x7b0] sm:$0xff]
          %v1558 = vld [vmem:[#allocation6 + $0x7b8] sm:$0xff]
          %v1559 = vld [vmem:[#allocation6 + $0x7c0] sm:$0xff]
          %v1560 = vld [vmem:[#allocation6 + $0x7c8] sm:$0xff]
          %v1561 = vld [vmem:[#allocation6 + $0x7d0] sm:$0xff]
          %v1562 = vld [vmem:[#allocation6 + $0x7d8] sm:$0xff]
          %v1563 = vld [vmem:[#allocation6 + $0x7e0] sm:$0xff]
          %v1564 = vld [vmem:[#allocation6 + $0x7e8] sm:$0xff]
          %v1565 = vld [vmem:[#allocation6 + $0x7f0] sm:$0xff]
          %v1566 = vld [vmem:[#allocation6 + $0x7f8] sm:$0xff]
          %v1567 = vld [vmem:[%s3] sm:$0x3]
          %v1824 = vunpack.c.l.b16 %v1311
          %v1825 = vunpack.c.h.b16 %v1311
          %v1826 = vunpack.c.l.b16 %v1312
          %v1827 = vunpack.c.h.b16 %v1312
          %v1828 = vunpack.c.l.b16 %v1313
          %v1829 = vunpack.c.h.b16 %v1313
          %v1830 = vunpack.c.l.b16 %v1314
          %v1831 = vunpack.c.h.b16 %v1314
          %v1832 = vunpack.c.l.b16 %v1315
          %v1833 = vunpack.c.h.b16 %v1315
          %v1834 = vunpack.c.l.b16 %v1316
          %v1835 = vunpack.c.h.b16 %v1316
          %v1836 = vunpack.c.l.b16 %v1317
          %v1837 = vunpack.c.h.b16 %v1317
          %v1838 = vunpack.c.l.b16 %v1318
          %v1839 = vunpack.c.h.b16 %v1318
          %v1840 = vunpack.c.l.b16 %v1319
          %v1841 = vunpack.c.h.b16 %v1319
          %v1842 = vunpack.c.l.b16 %v1320
          %v1843 = vunpack.c.h.b16 %v1320
          %v1844 = vunpack.c.l.b16 %v1321
          %v1845 = vunpack.c.h.b16 %v1321
          %v1846 = vunpack.c.l.b16 %v1322
          %v1847 = vunpack.c.h.b16 %v1322
          %v1848 = vunpack.c.l.b16 %v1323
          %v1849 = vunpack.c.h.b16 %v1323
          %v1850 = vunpack.c.l.b16 %v1324
          %v1851 = vunpack.c.h.b16 %v1324
          %v1852 = vunpack.c.l.b16 %v1325
          %v1853 = vunpack.c.h.b16 %v1325
          %v1854 = vunpack.c.l.b16 %v1326
          %v1855 = vunpack.c.h.b16 %v1326
          %v1856 = vunpack.c.l.b16 %v1327
          %v1857 = vunpack.c.h.b16 %v1327
          %v1858 = vunpack.c.l.b16 %v1328
          %v1859 = vunpack.c.h.b16 %v1328
          %v1860 = vunpack.c.l.b16 %v1329
          %v1861 = vunpack.c.h.b16 %v1329
          %v1862 = vunpack.c.l.b16 %v1330
          %v1863 = vunpack.c.h.b16 %v1330
          %v1864 = vunpack.c.l.b16 %v1331
          %v1865 = vunpack.c.h.b16 %v1331
          %v1866 = vunpack.c.l.b16 %v1332
          %v1867 = vunpack.c.h.b16 %v1332
          %v1868 = vunpack.c.l.b16 %v1333
          %v1869 = vunpack.c.h.b16 %v1333
          %v1870 = vunpack.c.l.b16 %v1334
          %v1871 = vunpack.c.h.b16 %v1334
          %v1872 = vunpack.c.l.b16 %v1335
          %v1873 = vunpack.c.h.b16 %v1335
          %v1874 = vunpack.c.l.b16 %v1336
          %v1875 = vunpack.c.h.b16 %v1336
          %v1876 = vunpack.c.l.b16 %v1337
          %v1877 = vunpack.c.h.b16 %v1337
          %v1878 = vunpack.c.l.b16 %v1338
          %v1879 = vunpack.c.h.b16 %v1338
          %v1880 = vunpack.c.l.b16 %v1339
          %v1881 = vunpack.c.h.b16 %v1339
          %v1882 = vunpack.c.l.b16 %v1340
          %v1883 = vunpack.c.h.b16 %v1340
          %v1884 = vunpack.c.l.b16 %v1341
          %v1885 = vunpack.c.h.b16 %v1341
          %v1886 = vunpack.c.l.b16 %v1342
          %v1887 = vunpack.c.h.b16 %v1342
          %v1888 = vunpack.c.l.b16 %v1343
          %v1889 = vunpack.c.h.b16 %v1343
          %v1890 = vunpack.c.l.b16 %v1344
          %v1891 = vunpack.c.h.b16 %v1344
          %v1892 = vunpack.c.l.b16 %v1345
          %v1893 = vunpack.c.h.b16 %v1345
          %v1894 = vunpack.c.l.b16 %v1346
          %v1895 = vunpack.c.h.b16 %v1346
          %v1896 = vunpack.c.l.b16 %v1347
          %v1897 = vunpack.c.h.b16 %v1347
          %v1898 = vunpack.c.l.b16 %v1348
          %v1899 = vunpack.c.h.b16 %v1348
          %v1900 = vunpack.c.l.b16 %v1349
          %v1901 = vunpack.c.h.b16 %v1349
          %v1902 = vunpack.c.l.b16 %v1350
          %v1903 = vunpack.c.h.b16 %v1350
          %v1904 = vunpack.c.l.b16 %v1351
          %v1905 = vunpack.c.h.b16 %v1351
          %v1906 = vunpack.c.l.b16 %v1352
          %v1907 = vunpack.c.h.b16 %v1352
          %v1908 = vunpack.c.l.b16 %v1353
          %v1909 = vunpack.c.h.b16 %v1353
          %v1910 = vunpack.c.l.b16 %v1354
          %v1911 = vunpack.c.h.b16 %v1354
          %v1912 = vunpack.c.l.b16 %v1355
          %v1913 = vunpack.c.h.b16 %v1355
          %v1914 = vunpack.c.l.b16 %v1356
          %v1915 = vunpack.c.h.b16 %v1356
          %v1916 = vunpack.c.l.b16 %v1357
          %v1917 = vunpack.c.h.b16 %v1357
          %v1918 = vunpack.c.l.b16 %v1358
          %v1919 = vunpack.c.h.b16 %v1358
          %v1920 = vunpack.c.l.b16 %v1359
          %v1921 = vunpack.c.h.b16 %v1359
          %v1922 = vunpack.c.l.b16 %v1360
          %v1923 = vunpack.c.h.b16 %v1360
          %v1924 = vunpack.c.l.b16 %v1361
          %v1925 = vunpack.c.h.b16 %v1361
          %v1926 = vunpack.c.l.b16 %v1362
          %v1927 = vunpack.c.h.b16 %v1362
          %v1928 = vunpack.c.l.b16 %v1363
          %v1929 = vunpack.c.h.b16 %v1363
          %v1930 = vunpack.c.l.b16 %v1364
          %v1931 = vunpack.c.h.b16 %v1364
          %v1932 = vunpack.c.l.b16 %v1365
          %v1933 = vunpack.c.h.b16 %v1365
          %v1934 = vunpack.c.l.b16 %v1366
          %v1935 = vunpack.c.h.b16 %v1366
          %v1936 = vunpack.c.l.b16 %v1367
          %v1937 = vunpack.c.h.b16 %v1367
          %v1938 = vunpack.c.l.b16 %v1368
          %v1939 = vunpack.c.h.b16 %v1368
          %v1940 = vunpack.c.l.b16 %v1369
          %v1941 = vunpack.c.h.b16 %v1369
          %v1942 = vunpack.c.l.b16 %v1370
          %v1943 = vunpack.c.h.b16 %v1370
          %v1944 = vunpack.c.l.b16 %v1371
          %v1945 = vunpack.c.h.b16 %v1371
          %v1946 = vunpack.c.l.b16 %v1372
          %v1947 = vunpack.c.h.b16 %v1372
          %v1948 = vunpack.c.l.b16 %v1373
          %v1949 = vunpack.c.h.b16 %v1373
          %v1950 = vunpack.c.l.b16 %v1374
          %v1951 = vunpack.c.h.b16 %v1374
          %v1952 = vunpack.c.l.b16 %v1375
          %v1953 = vunpack.c.h.b16 %v1375
          %v1954 = vunpack.c.l.b16 %v1376
          %v1955 = vunpack.c.h.b16 %v1376
          %v1956 = vunpack.c.l.b16 %v1377
          %v1957 = vunpack.c.h.b16 %v1377
          %v1958 = vunpack.c.l.b16 %v1378
          %v1959 = vunpack.c.h.b16 %v1378
          %v1960 = vunpack.c.l.b16 %v1379
          %v1961 = vunpack.c.h.b16 %v1379
          %v1962 = vunpack.c.l.b16 %v1380
          %v1963 = vunpack.c.h.b16 %v1380
          %v1964 = vunpack.c.l.b16 %v1381
          %v1965 = vunpack.c.h.b16 %v1381
          %v1966 = vunpack.c.l.b16 %v1382
          %v1967 = vunpack.c.h.b16 %v1382
          %v1968 = vunpack.c.l.b16 %v1383
          %v1969 = vunpack.c.h.b16 %v1383
          %v1970 = vunpack.c.l.b16 %v1384
          %v1971 = vunpack.c.h.b16 %v1384
          %v1972 = vunpack.c.l.b16 %v1385
          %v1973 = vunpack.c.h.b16 %v1385
          %v1974 = vunpack.c.l.b16 %v1386
          %v1975 = vunpack.c.h.b16 %v1386
          %v1976 = vunpack.c.l.b16 %v1387
          %v1977 = vunpack.c.h.b16 %v1387
          %v1978 = vunpack.c.l.b16 %v1388
          %v1979 = vunpack.c.h.b16 %v1388
          %v1980 = vunpack.c.l.b16 %v1389
          %v1981 = vunpack.c.h.b16 %v1389
          %v1982 = vunpack.c.l.b16 %v1390
          %v1983 = vunpack.c.h.b16 %v1390
          %v1984 = vunpack.c.l.b16 %v1391
          %v1985 = vunpack.c.h.b16 %v1391
          %v1986 = vunpack.c.l.b16 %v1392
          %v1987 = vunpack.c.h.b16 %v1392
          %v1988 = vunpack.c.l.b16 %v1393
          %v1989 = vunpack.c.h.b16 %v1393
          %v1990 = vunpack.c.l.b16 %v1394
          %v1991 = vunpack.c.h.b16 %v1394
          %v1992 = vunpack.c.l.b16 %v1395
          %v1993 = vunpack.c.h.b16 %v1395
          %v1994 = vunpack.c.l.b16 %v1396
          %v1995 = vunpack.c.h.b16 %v1396
          %v1996 = vunpack.c.l.b16 %v1397
          %v1997 = vunpack.c.h.b16 %v1397
          %v1998 = vunpack.c.l.b16 %v1398
          %v1999 = vunpack.c.h.b16 %v1398
          %v2000 = vunpack.c.l.b16 %v1399
          %v2001 = vunpack.c.h.b16 %v1399
          %v2002 = vunpack.c.l.b16 %v1400
          %v2003 = vunpack.c.h.b16 %v1400
          %v2004 = vunpack.c.l.b16 %v1401
          %v2005 = vunpack.c.h.b16 %v1401
          %v2006 = vunpack.c.l.b16 %v1402
          %v2007 = vunpack.c.h.b16 %v1402
          %v2008 = vunpack.c.l.b16 %v1403
          %v2009 = vunpack.c.h.b16 %v1403
          %v2010 = vunpack.c.l.b16 %v1404
          %v2011 = vunpack.c.h.b16 %v1404
          %v2012 = vunpack.c.l.b16 %v1405
          %v2013 = vunpack.c.h.b16 %v1405
          %v2014 = vunpack.c.l.b16 %v1406
          %v2015 = vunpack.c.h.b16 %v1406
          %v2016 = vunpack.c.l.b16 %v1407
          %v2017 = vunpack.c.h.b16 %v1407
          %v2018 = vunpack.c.l.b16 %v1408
          %v2019 = vunpack.c.h.b16 %v1408
          %v2020 = vunpack.c.l.b16 %v1409
          %v2021 = vunpack.c.h.b16 %v1409
          %v2022 = vunpack.c.l.b16 %v1410
          %v2023 = vunpack.c.h.b16 %v1410
          %v2024 = vunpack.c.l.b16 %v1411
          %v2025 = vunpack.c.h.b16 %v1411
          %v2026 = vunpack.c.l.b16 %v1412
          %v2027 = vunpack.c.h.b16 %v1412
          %v2028 = vunpack.c.l.b16 %v1413
          %v2029 = vunpack.c.h.b16 %v1413
          %v2030 = vunpack.c.l.b16 %v1414
          %v2031 = vunpack.c.h.b16 %v1414
          %v2032 = vunpack.c.l.b16 %v1415
          %v2033 = vunpack.c.h.b16 %v1415
          %v2034 = vunpack.c.l.b16 %v1416
          %v2035 = vunpack.c.h.b16 %v1416
          %v2036 = vunpack.c.l.b16 %v1417
          %v2037 = vunpack.c.h.b16 %v1417
          %v2038 = vunpack.c.l.b16 %v1418
          %v2039 = vunpack.c.h.b16 %v1418
          %v2040 = vunpack.c.l.b16 %v1419
          %v2041 = vunpack.c.h.b16 %v1419
          %v2042 = vunpack.c.l.b16 %v1420
          %v2043 = vunpack.c.h.b16 %v1420
          %v2044 = vunpack.c.l.b16 %v1421
          %v2045 = vunpack.c.h.b16 %v1421
          %v2046 = vunpack.c.l.b16 %v1422
          %v2047 = vunpack.c.h.b16 %v1422
          %v2048 = vunpack.c.l.b16 %v1423
          %v2049 = vunpack.c.h.b16 %v1423
          %v2050 = vunpack.c.l.b16 %v1424
          %v2051 = vunpack.c.h.b16 %v1424
          %v2052 = vunpack.c.l.b16 %v1425
          %v2053 = vunpack.c.h.b16 %v1425
          %v2054 = vunpack.c.l.b16 %v1426
          %v2055 = vunpack.c.h.b16 %v1426
          %v2056 = vunpack.c.l.b16 %v1427
          %v2057 = vunpack.c.h.b16 %v1427
          %v2058 = vunpack.c.l.b16 %v1428
          %v2059 = vunpack.c.h.b16 %v1428
          %v2060 = vunpack.c.l.b16 %v1429
          %v2061 = vunpack.c.h.b16 %v1429
          %v2062 = vunpack.c.l.b16 %v1430
          %v2063 = vunpack.c.h.b16 %v1430
          %v2064 = vunpack.c.l.b16 %v1431
          %v2065 = vunpack.c.h.b16 %v1431
          %v2066 = vunpack.c.l.b16 %v1432
          %v2067 = vunpack.c.h.b16 %v1432
          %v2068 = vunpack.c.l.b16 %v1433
          %v2069 = vunpack.c.h.b16 %v1433
          %v2070 = vunpack.c.l.b16 %v1434
          %v2071 = vunpack.c.h.b16 %v1434
          %v2072 = vunpack.c.l.b16 %v1435
          %v2073 = vunpack.c.h.b16 %v1435
          %v2074 = vunpack.c.l.b16 %v1436
          %v2075 = vunpack.c.h.b16 %v1436
          %v2076 = vunpack.c.l.b16 %v1437
          %v2077 = vunpack.c.h.b16 %v1437
          %v2078 = vunpack.c.l.b16 %v1438
          %v2079 = vunpack.c.h.b16 %v1438
          %v2080 = vunpack.c.l.b16 %v1439
          %v2081 = vunpack.c.h.b16 %v1439
          %v2082 = vunpack.c.l.b16 %v1440
          %v2083 = vunpack.c.h.b16 %v1440
          %v2084 = vunpack.c.l.b16 %v1441
          %v2085 = vunpack.c.h.b16 %v1441
          %v2086 = vunpack.c.l.b16 %v1442
          %v2087 = vunpack.c.h.b16 %v1442
          %v2088 = vunpack.c.l.b16 %v1443
          %v2089 = vunpack.c.h.b16 %v1443
          %v2090 = vunpack.c.l.b16 %v1444
          %v2091 = vunpack.c.h.b16 %v1444
          %v2092 = vunpack.c.l.b16 %v1445
          %v2093 = vunpack.c.h.b16 %v1445
          %v2094 = vunpack.c.l.b16 %v1446
          %v2095 = vunpack.c.h.b16 %v1446
          %v2096 = vunpack.c.l.b16 %v1447
          %v2097 = vunpack.c.h.b16 %v1447
          %v2098 = vunpack.c.l.b16 %v1448
          %v2099 = vunpack.c.h.b16 %v1448
          %v2100 = vunpack.c.l.b16 %v1449
          %v2101 = vunpack.c.h.b16 %v1449
          %v2102 = vunpack.c.l.b16 %v1450
          %v2103 = vunpack.c.h.b16 %v1450
          %v2104 = vunpack.c.l.b16 %v1451
          %v2105 = vunpack.c.h.b16 %v1451
          %v2106 = vunpack.c.l.b16 %v1452
          %v2107 = vunpack.c.h.b16 %v1452
          %v2108 = vunpack.c.l.b16 %v1453
          %v2109 = vunpack.c.h.b16 %v1453
          %v2110 = vunpack.c.l.b16 %v1454
          %v2111 = vunpack.c.h.b16 %v1454
          %v2112 = vunpack.c.l.b16 %v1455
          %v2113 = vunpack.c.h.b16 %v1455
          %v2114 = vunpack.c.l.b16 %v1456
          %v2115 = vunpack.c.h.b16 %v1456
          %v2116 = vunpack.c.l.b16 %v1457
          %v2117 = vunpack.c.h.b16 %v1457
          %v2118 = vunpack.c.l.b16 %v1458
          %v2119 = vunpack.c.h.b16 %v1458
          %v2120 = vunpack.c.l.b16 %v1459
          %v2121 = vunpack.c.h.b16 %v1459
          %v2122 = vunpack.c.l.b16 %v1460
          %v2123 = vunpack.c.h.b16 %v1460
          %v2124 = vunpack.c.l.b16 %v1461
          %v2125 = vunpack.c.h.b16 %v1461
          %v2126 = vunpack.c.l.b16 %v1462
          %v2127 = vunpack.c.h.b16 %v1462
          %v2128 = vunpack.c.l.b16 %v1463
          %v2129 = vunpack.c.h.b16 %v1463
          %v2130 = vunpack.c.l.b16 %v1464
          %v2131 = vunpack.c.h.b16 %v1464
          %v2132 = vunpack.c.l.b16 %v1465
          %v2133 = vunpack.c.h.b16 %v1465
          %v2134 = vunpack.c.l.b16 %v1466
          %v2135 = vunpack.c.h.b16 %v1466
          %v2136 = vunpack.c.l.b16 %v1467
          %v2137 = vunpack.c.h.b16 %v1467
          %v2138 = vunpack.c.l.b16 %v1468
          %v2139 = vunpack.c.h.b16 %v1468
          %v2140 = vunpack.c.l.b16 %v1469
          %v2141 = vunpack.c.h.b16 %v1469
          %v2142 = vunpack.c.l.b16 %v1470
          %v2143 = vunpack.c.h.b16 %v1470
          %v2144 = vunpack.c.l.b16 %v1471
          %v2145 = vunpack.c.h.b16 %v1471
          %v2146 = vunpack.c.l.b16 %v1472
          %v2147 = vunpack.c.h.b16 %v1472
          %v2148 = vunpack.c.l.b16 %v1473
          %v2149 = vunpack.c.h.b16 %v1473
          %v2150 = vunpack.c.l.b16 %v1474
          %v2151 = vunpack.c.h.b16 %v1474
          %v2152 = vunpack.c.l.b16 %v1475
          %v2153 = vunpack.c.h.b16 %v1475
          %v2154 = vunpack.c.l.b16 %v1476
          %v2155 = vunpack.c.h.b16 %v1476
          %v2156 = vunpack.c.l.b16 %v1477
          %v2157 = vunpack.c.h.b16 %v1477
          %v2158 = vunpack.c.l.b16 %v1478
          %v2159 = vunpack.c.h.b16 %v1478
          %v2160 = vunpack.c.l.b16 %v1479
          %v2161 = vunpack.c.h.b16 %v1479
          %v2162 = vunpack.c.l.b16 %v1480
          %v2163 = vunpack.c.h.b16 %v1480
          %v2164 = vunpack.c.l.b16 %v1481
          %v2165 = vunpack.c.h.b16 %v1481
          %v2166 = vunpack.c.l.b16 %v1482
          %v2167 = vunpack.c.h.b16 %v1482
          %v2168 = vunpack.c.l.b16 %v1483
          %v2169 = vunpack.c.h.b16 %v1483
          %v2170 = vunpack.c.l.b16 %v1484
          %v2171 = vunpack.c.h.b16 %v1484
          %v2172 = vunpack.c.l.b16 %v1485
          %v2173 = vunpack.c.h.b16 %v1485
          %v2174 = vunpack.c.l.b16 %v1486
          %v2175 = vunpack.c.h.b16 %v1486
          %v2176 = vunpack.c.l.b16 %v1487
          %v2177 = vunpack.c.h.b16 %v1487
          %v2178 = vunpack.c.l.b16 %v1488
          %v2179 = vunpack.c.h.b16 %v1488
          %v2180 = vunpack.c.l.b16 %v1489
          %v2181 = vunpack.c.h.b16 %v1489
          %v2182 = vunpack.c.l.b16 %v1490
          %v2183 = vunpack.c.h.b16 %v1490
          %v2184 = vunpack.c.l.b16 %v1491
          %v2185 = vunpack.c.h.b16 %v1491
          %v2186 = vunpack.c.l.b16 %v1492
          %v2187 = vunpack.c.h.b16 %v1492
          %v2188 = vunpack.c.l.b16 %v1493
          %v2189 = vunpack.c.h.b16 %v1493
          %v2190 = vunpack.c.l.b16 %v1494
          %v2191 = vunpack.c.h.b16 %v1494
          %v2192 = vunpack.c.l.b16 %v1495
          %v2193 = vunpack.c.h.b16 %v1495
          %v2194 = vunpack.c.l.b16 %v1496
          %v2195 = vunpack.c.h.b16 %v1496
          %v2196 = vunpack.c.l.b16 %v1497
          %v2197 = vunpack.c.h.b16 %v1497
          %v2198 = vunpack.c.l.b16 %v1498
          %v2199 = vunpack.c.h.b16 %v1498
          %v2200 = vunpack.c.l.b16 %v1499
          %v2201 = vunpack.c.h.b16 %v1499
          %v2202 = vunpack.c.l.b16 %v1500
          %v2203 = vunpack.c.h.b16 %v1500
          %v2204 = vunpack.c.l.b16 %v1501
          %v2205 = vunpack.c.h.b16 %v1501
          %v2206 = vunpack.c.l.b16 %v1502
          %v2207 = vunpack.c.h.b16 %v1502
          %v2208 = vunpack.c.l.b16 %v1503
          %v2209 = vunpack.c.h.b16 %v1503
          %v2210 = vunpack.c.l.b16 %v1504
          %v2211 = vunpack.c.h.b16 %v1504
          %v2212 = vunpack.c.l.b16 %v1505
          %v2213 = vunpack.c.h.b16 %v1505
          %v2214 = vunpack.c.l.b16 %v1506
          %v2215 = vunpack.c.h.b16 %v1506
          %v2216 = vunpack.c.l.b16 %v1507
          %v2217 = vunpack.c.h.b16 %v1507
          %v2218 = vunpack.c.l.b16 %v1508
          %v2219 = vunpack.c.h.b16 %v1508
          %v2220 = vunpack.c.l.b16 %v1509
          %v2221 = vunpack.c.h.b16 %v1509
          %v2222 = vunpack.c.l.b16 %v1510
          %v2223 = vunpack.c.h.b16 %v1510
          %v2224 = vunpack.c.l.b16 %v1511
          %v2225 = vunpack.c.h.b16 %v1511
          %v2226 = vunpack.c.l.b16 %v1512
          %v2227 = vunpack.c.h.b16 %v1512
          %v2228 = vunpack.c.l.b16 %v1513
          %v2229 = vunpack.c.h.b16 %v1513
          %v2230 = vunpack.c.l.b16 %v1514
          %v2231 = vunpack.c.h.b16 %v1514
          %v2232 = vunpack.c.l.b16 %v1515
          %v2233 = vunpack.c.h.b16 %v1515
          %v2234 = vunpack.c.l.b16 %v1516
          %v2235 = vunpack.c.h.b16 %v1516
          %v2236 = vunpack.c.l.b16 %v1517
          %v2237 = vunpack.c.h.b16 %v1517
          %v2238 = vunpack.c.l.b16 %v1518
          %v2239 = vunpack.c.h.b16 %v1518
          %v2240 = vunpack.c.l.b16 %v1519
          %v2241 = vunpack.c.h.b16 %v1519
          %v2242 = vunpack.c.l.b16 %v1520
          %v2243 = vunpack.c.h.b16 %v1520
          %v2244 = vunpack.c.l.b16 %v1521
          %v2245 = vunpack.c.h.b16 %v1521
          %v2246 = vunpack.c.l.b16 %v1522
          %v2247 = vunpack.c.h.b16 %v1522
          %v2248 = vunpack.c.l.b16 %v1523
          %v2249 = vunpack.c.h.b16 %v1523
          %v2250 = vunpack.c.l.b16 %v1524
          %v2251 = vunpack.c.h.b16 %v1524
          %v2252 = vunpack.c.l.b16 %v1525
          %v2253 = vunpack.c.h.b16 %v1525
          %v2254 = vunpack.c.l.b16 %v1526
          %v2255 = vunpack.c.h.b16 %v1526
          %v2256 = vunpack.c.l.b16 %v1527
          %v2257 = vunpack.c.h.b16 %v1527
          %v2258 = vunpack.c.l.b16 %v1528
          %v2259 = vunpack.c.h.b16 %v1528
          %v2260 = vunpack.c.l.b16 %v1529
          %v2261 = vunpack.c.h.b16 %v1529
          %v2262 = vunpack.c.l.b16 %v1530
          %v2263 = vunpack.c.h.b16 %v1530
          %v2264 = vunpack.c.l.b16 %v1531
          %v2265 = vunpack.c.h.b16 %v1531
          %v2266 = vunpack.c.l.b16 %v1532
          %v2267 = vunpack.c.h.b16 %v1532
          %v2268 = vunpack.c.l.b16 %v1533
          %v2269 = vunpack.c.h.b16 %v1533
          %v2270 = vunpack.c.l.b16 %v1534
          %v2271 = vunpack.c.h.b16 %v1534
          %v2272 = vunpack.c.l.b16 %v1535
          %v2273 = vunpack.c.h.b16 %v1535
          %v2274 = vunpack.c.l.b16 %v1536
          %v2275 = vunpack.c.h.b16 %v1536
          %v2276 = vunpack.c.l.b16 %v1537
          %v2277 = vunpack.c.h.b16 %v1537
          %v2278 = vunpack.c.l.b16 %v1538
          %v2279 = vunpack.c.h.b16 %v1538
          %v2280 = vunpack.c.l.b16 %v1539
          %v2281 = vunpack.c.h.b16 %v1539
          %v2282 = vunpack.c.l.b16 %v1540
          %v2283 = vunpack.c.h.b16 %v1540
          %v2284 = vunpack.c.l.b16 %v1541
          %v2285 = vunpack.c.h.b16 %v1541
          %v2286 = vunpack.c.l.b16 %v1542
          %v2287 = vunpack.c.h.b16 %v1542
          %v2288 = vunpack.c.l.b16 %v1543
          %v2289 = vunpack.c.h.b16 %v1543
          %v2290 = vunpack.c.l.b16 %v1544
          %v2291 = vunpack.c.h.b16 %v1544
          %v2292 = vunpack.c.l.b16 %v1545
          %v2293 = vunpack.c.h.b16 %v1545
          %v2294 = vunpack.c.l.b16 %v1546
          %v2295 = vunpack.c.h.b16 %v1546
          %v2296 = vunpack.c.l.b16 %v1547
          %v2297 = vunpack.c.h.b16 %v1547
          %v2298 = vunpack.c.l.b16 %v1548
          %v2299 = vunpack.c.h.b16 %v1548
          %v2300 = vunpack.c.l.b16 %v1549
          %v2301 = vunpack.c.h.b16 %v1549
          %v2302 = vunpack.c.l.b16 %v1550
          %v2303 = vunpack.c.h.b16 %v1550
          %v2304 = vunpack.c.l.b16 %v1551
          %v2305 = vunpack.c.h.b16 %v1551
          %v2306 = vunpack.c.l.b16 %v1552
          %v2307 = vunpack.c.h.b16 %v1552
          %v2308 = vunpack.c.l.b16 %v1553
          %v2309 = vunpack.c.h.b16 %v1553
          %v2310 = vunpack.c.l.b16 %v1554
          %v2311 = vunpack.c.h.b16 %v1554
          %v2312 = vunpack.c.l.b16 %v1555
          %v2313 = vunpack.c.h.b16 %v1555
          %v2314 = vunpack.c.l.b16 %v1556
          %v2315 = vunpack.c.h.b16 %v1556
          %v2316 = vunpack.c.l.b16 %v1557
          %v2317 = vunpack.c.h.b16 %v1557
          %v2318 = vunpack.c.l.b16 %v1558
          %v2319 = vunpack.c.h.b16 %v1558
          %v2320 = vunpack.c.l.b16 %v1559
          %v2321 = vunpack.c.h.b16 %v1559
          %v2322 = vunpack.c.l.b16 %v1560
          %v2323 = vunpack.c.h.b16 %v1560
          %v2324 = vunpack.c.l.b16 %v1561
          %v2325 = vunpack.c.h.b16 %v1561
          %v2326 = vunpack.c.l.b16 %v1562
          %v2327 = vunpack.c.h.b16 %v1562
          %v2328 = vunpack.c.l.b16 %v1563
          %v2329 = vunpack.c.h.b16 %v1563
          %v2330 = vunpack.c.l.b16 %v1564
          %v2331 = vunpack.c.h.b16 %v1564
          %v2332 = vunpack.c.l.b16 %v1565
          %v2333 = vunpack.c.h.b16 %v1565
          %v2334 = vunpack.c.l.b16 %v1566
          %v2335 = vunpack.c.h.b16 %v1566
          %v2336 = vpack.c.b16 %v1826, %v1824
          %v2337 = vpack.c.b16 %v1827, %v1825
          %v2338 = vpack.c.b16 %v1830, %v1828
          %v2339 = vpack.c.b16 %v1831, %v1829
          %v2340 = vpack.c.b16 %v1834, %v1832
          %v2341 = vpack.c.b16 %v1835, %v1833
          %v2342 = vpack.c.b16 %v1838, %v1836
          %v2343 = vpack.c.b16 %v1839, %v1837
          %v2344 = vpack.c.b16 %v1842, %v1840
          %v2345 = vpack.c.b16 %v1843, %v1841
          %v2346 = vpack.c.b16 %v1846, %v1844
          %v2347 = vpack.c.b16 %v1847, %v1845
          %v2348 = vpack.c.b16 %v1850, %v1848
          %v2349 = vpack.c.b16 %v1851, %v1849
          %v2350 = vpack.c.b16 %v1854, %v1852
          %v2351 = vpack.c.b16 %v1855, %v1853
          %v2352 = vpack.c.b16 %v1858, %v1856
          %v2353 = vpack.c.b16 %v1859, %v1857
          %v2354 = vpack.c.b16 %v1862, %v1860
          %v2355 = vpack.c.b16 %v1863, %v1861
          %v2356 = vpack.c.b16 %v1866, %v1864
          %v2357 = vpack.c.b16 %v1867, %v1865
          %v2358 = vpack.c.b16 %v1870, %v1868
          %v2359 = vpack.c.b16 %v1871, %v1869
          %v2360 = vpack.c.b16 %v1874, %v1872
          %v2361 = vpack.c.b16 %v1875, %v1873
          %v2362 = vpack.c.b16 %v1878, %v1876
          %v2363 = vpack.c.b16 %v1879, %v1877
          %v2364 = vpack.c.b16 %v1882, %v1880
          %v2365 = vpack.c.b16 %v1883, %v1881
          %v2366 = vpack.c.b16 %v1886, %v1884
          %v2367 = vpack.c.b16 %v1887, %v1885
          %v2368 = vpack.c.b16 %v1890, %v1888
          %v2369 = vpack.c.b16 %v1891, %v1889
          %v2370 = vpack.c.b16 %v1894, %v1892
          %v2371 = vpack.c.b16 %v1895, %v1893
          %v2372 = vpack.c.b16 %v1898, %v1896
          %v2373 = vpack.c.b16 %v1899, %v1897
          %v2374 = vpack.c.b16 %v1902, %v1900
          %v2375 = vpack.c.b16 %v1903, %v1901
          %v2376 = vpack.c.b16 %v1906, %v1904
          %v2377 = vpack.c.b16 %v1907, %v1905
          %v2378 = vpack.c.b16 %v1910, %v1908
          %v2379 = vpack.c.b16 %v1911, %v1909
          %v2380 = vpack.c.b16 %v1914, %v1912
          %v2381 = vpack.c.b16 %v1915, %v1913
          %v2382 = vpack.c.b16 %v1918, %v1916
          %v2383 = vpack.c.b16 %v1919, %v1917
          %v2384 = vpack.c.b16 %v1922, %v1920
          %v2385 = vpack.c.b16 %v1923, %v1921
          %v2386 = vpack.c.b16 %v1926, %v1924
          %v2387 = vpack.c.b16 %v1927, %v1925
          %v2388 = vpack.c.b16 %v1930, %v1928
          %v2389 = vpack.c.b16 %v1931, %v1929
          %v2390 = vpack.c.b16 %v1934, %v1932
          %v2391 = vpack.c.b16 %v1935, %v1933
          %v2392 = vpack.c.b16 %v1938, %v1936
          %v2393 = vpack.c.b16 %v1939, %v1937
          %v2394 = vpack.c.b16 %v1942, %v1940
          %v2395 = vpack.c.b16 %v1943, %v1941
          %v2396 = vpack.c.b16 %v1946, %v1944
          %v2397 = vpack.c.b16 %v1947, %v1945
          %v2398 = vpack.c.b16 %v1950, %v1948
          %v2399 = vpack.c.b16 %v1951, %v1949
          %v2400 = vpack.c.b16 %v1954, %v1952
          %v2401 = vpack.c.b16 %v1955, %v1953
          %v2402 = vpack.c.b16 %v1958, %v1956
          %v2403 = vpack.c.b16 %v1959, %v1957
          %v2404 = vpack.c.b16 %v1962, %v1960
          %v2405 = vpack.c.b16 %v1963, %v1961
          %v2406 = vpack.c.b16 %v1966, %v1964
          %v2407 = vpack.c.b16 %v1967, %v1965
          %v2408 = vpack.c.b16 %v1970, %v1968
          %v2409 = vpack.c.b16 %v1971, %v1969
          %v2410 = vpack.c.b16 %v1974, %v1972
          %v2411 = vpack.c.b16 %v1975, %v1973
          %v2412 = vpack.c.b16 %v1978, %v1976
          %v2413 = vpack.c.b16 %v1979, %v1977
          %v2414 = vpack.c.b16 %v1982, %v1980
          %v2415 = vpack.c.b16 %v1983, %v1981
          %v2416 = vpack.c.b16 %v1986, %v1984
          %v2417 = vpack.c.b16 %v1987, %v1985
          %v2418 = vpack.c.b16 %v1990, %v1988
          %v2419 = vpack.c.b16 %v1991, %v1989
          %v2420 = vpack.c.b16 %v1994, %v1992
          %v2421 = vpack.c.b16 %v1995, %v1993
          %v2422 = vpack.c.b16 %v1998, %v1996
          %v2423 = vpack.c.b16 %v1999, %v1997
          %v2424 = vpack.c.b16 %v2002, %v2000
          %v2425 = vpack.c.b16 %v2003, %v2001
          %v2426 = vpack.c.b16 %v2006, %v2004
          %v2427 = vpack.c.b16 %v2007, %v2005
          %v2428 = vpack.c.b16 %v2010, %v2008
          %v2429 = vpack.c.b16 %v2011, %v2009
          %v2430 = vpack.c.b16 %v2014, %v2012
          %v2431 = vpack.c.b16 %v2015, %v2013
          %v2432 = vpack.c.b16 %v2018, %v2016
          %v2433 = vpack.c.b16 %v2019, %v2017
          %v2434 = vpack.c.b16 %v2022, %v2020
          %v2435 = vpack.c.b16 %v2023, %v2021
          %v2436 = vpack.c.b16 %v2026, %v2024
          %v2437 = vpack.c.b16 %v2027, %v2025
          %v2438 = vpack.c.b16 %v2030, %v2028
          %v2439 = vpack.c.b16 %v2031, %v2029
          %v2440 = vpack.c.b16 %v2034, %v2032
          %v2441 = vpack.c.b16 %v2035, %v2033
          %v2442 = vpack.c.b16 %v2038, %v2036
          %v2443 = vpack.c.b16 %v2039, %v2037
          %v2444 = vpack.c.b16 %v2042, %v2040
          %v2445 = vpack.c.b16 %v2043, %v2041
          %v2446 = vpack.c.b16 %v2046, %v2044
          %v2447 = vpack.c.b16 %v2047, %v2045
          %v2448 = vpack.c.b16 %v2050, %v2048
          %v2449 = vpack.c.b16 %v2051, %v2049
          %v2450 = vpack.c.b16 %v2054, %v2052
          %v2451 = vpack.c.b16 %v2055, %v2053
          %v2452 = vpack.c.b16 %v2058, %v2056
          %v2453 = vpack.c.b16 %v2059, %v2057
          %v2454 = vpack.c.b16 %v2062, %v2060
          %v2455 = vpack.c.b16 %v2063, %v2061
          %v2456 = vpack.c.b16 %v2066, %v2064
          %v2457 = vpack.c.b16 %v2067, %v2065
          %v2458 = vpack.c.b16 %v2070, %v2068
          %v2459 = vpack.c.b16 %v2071, %v2069
          %v2460 = vpack.c.b16 %v2074, %v2072
          %v2461 = vpack.c.b16 %v2075, %v2073
          %v2462 = vpack.c.b16 %v2078, %v2076
          %v2463 = vpack.c.b16 %v2079, %v2077
          %v2464 = vpack.c.b16 %v2082, %v2080
          %v2465 = vpack.c.b16 %v2083, %v2081
          %v2466 = vpack.c.b16 %v2086, %v2084
          %v2467 = vpack.c.b16 %v2087, %v2085
          %v2468 = vpack.c.b16 %v2090, %v2088
          %v2469 = vpack.c.b16 %v2091, %v2089
          %v2470 = vpack.c.b16 %v2094, %v2092
          %v2471 = vpack.c.b16 %v2095, %v2093
          %v2472 = vpack.c.b16 %v2098, %v2096
          %v2473 = vpack.c.b16 %v2099, %v2097
          %v2474 = vpack.c.b16 %v2102, %v2100
          %v2475 = vpack.c.b16 %v2103, %v2101
          %v2476 = vpack.c.b16 %v2106, %v2104
          %v2477 = vpack.c.b16 %v2107, %v2105
          %v2478 = vpack.c.b16 %v2110, %v2108
          %v2479 = vpack.c.b16 %v2111, %v2109
          %v2480 = vpack.c.b16 %v2114, %v2112
          %v2481 = vpack.c.b16 %v2115, %v2113
          %v2482 = vpack.c.b16 %v2118, %v2116
          %v2483 = vpack.c.b16 %v2119, %v2117
          %v2484 = vpack.c.b16 %v2122, %v2120
          %v2485 = vpack.c.b16 %v2123, %v2121
          %v2486 = vpack.c.b16 %v2126, %v2124
          %v2487 = vpack.c.b16 %v2127, %v2125
          %v2488 = vpack.c.b16 %v2130, %v2128
          %v2489 = vpack.c.b16 %v2131, %v2129
          %v2490 = vpack.c.b16 %v2134, %v2132
          %v2491 = vpack.c.b16 %v2135, %v2133
          %v2492 = vpack.c.b16 %v2138, %v2136
          %v2493 = vpack.c.b16 %v2139, %v2137
          %v2494 = vpack.c.b16 %v2142, %v2140
          %v2495 = vpack.c.b16 %v2143, %v2141
          %v2496 = vpack.c.b16 %v2146, %v2144
          %v2497 = vpack.c.b16 %v2147, %v2145
          %v2498 = vpack.c.b16 %v2150, %v2148
          %v2499 = vpack.c.b16 %v2151, %v2149
          %v2500 = vpack.c.b16 %v2154, %v2152
          %v2501 = vpack.c.b16 %v2155, %v2153
          %v2502 = vpack.c.b16 %v2158, %v2156
          %v2503 = vpack.c.b16 %v2159, %v2157
          %v2504 = vpack.c.b16 %v2162, %v2160
          %v2505 = vpack.c.b16 %v2163, %v2161
          %v2506 = vpack.c.b16 %v2166, %v2164
          %v2507 = vpack.c.b16 %v2167, %v2165
          %v2508 = vpack.c.b16 %v2170, %v2168
          %v2509 = vpack.c.b16 %v2171, %v2169
          %v2510 = vpack.c.b16 %v2174, %v2172
          %v2511 = vpack.c.b16 %v2175, %v2173
          %v2512 = vpack.c.b16 %v2178, %v2176
          %v2513 = vpack.c.b16 %v2179, %v2177
          %v2514 = vpack.c.b16 %v2182, %v2180
          %v2515 = vpack.c.b16 %v2183, %v2181
          %v2516 = vpack.c.b16 %v2186, %v2184
          %v2517 = vpack.c.b16 %v2187, %v2185
          %v2518 = vpack.c.b16 %v2190, %v2188
          %v2519 = vpack.c.b16 %v2191, %v2189
          %v2520 = vpack.c.b16 %v2194, %v2192
          %v2521 = vpack.c.b16 %v2195, %v2193
          %v2522 = vpack.c.b16 %v2198, %v2196
          %v2523 = vpack.c.b16 %v2199, %v2197
          %v2524 = vpack.c.b16 %v2202, %v2200
          %v2525 = vpack.c.b16 %v2203, %v2201
          %v2526 = vpack.c.b16 %v2206, %v2204
          %v2527 = vpack.c.b16 %v2207, %v2205
          %v2528 = vpack.c.b16 %v2210, %v2208
          %v2529 = vpack.c.b16 %v2211, %v2209
          %v2530 = vpack.c.b16 %v2214, %v2212
          %v2531 = vpack.c.b16 %v2215, %v2213
          %v2532 = vpack.c.b16 %v2218, %v2216
          %v2533 = vpack.c.b16 %v2219, %v2217
          %v2534 = vpack.c.b16 %v2222, %v2220
          %v2535 = vpack.c.b16 %v2223, %v2221
          %v2536 = vpack.c.b16 %v2226, %v2224
          %v2537 = vpack.c.b16 %v2227, %v2225
          %v2538 = vpack.c.b16 %v2230, %v2228
          %v2539 = vpack.c.b16 %v2231, %v2229
          %v2540 = vpack.c.b16 %v2234, %v2232
          %v2541 = vpack.c.b16 %v2235, %v2233
          %v2542 = vpack.c.b16 %v2238, %v2236
          %v2543 = vpack.c.b16 %v2239, %v2237
          %v2544 = vpack.c.b16 %v2242, %v2240
          %v2545 = vpack.c.b16 %v2243, %v2241
          %v2546 = vpack.c.b16 %v2246, %v2244
          %v2547 = vpack.c.b16 %v2247, %v2245
          %v2548 = vpack.c.b16 %v2250, %v2248
          %v2549 = vpack.c.b16 %v2251, %v2249
          %v2550 = vpack.c.b16 %v2254, %v2252
          %v2551 = vpack.c.b16 %v2255, %v2253
          %v2552 = vpack.c.b16 %v2258, %v2256
          %v2553 = vpack.c.b16 %v2259, %v2257
          %v2554 = vpack.c.b16 %v2262, %v2260
          %v2555 = vpack.c.b16 %v2263, %v2261
          %v2556 = vpack.c.b16 %v2266, %v2264
          %v2557 = vpack.c.b16 %v2267, %v2265
          %v2558 = vpack.c.b16 %v2270, %v2268
          %v2559 = vpack.c.b16 %v2271, %v2269
          %v2560 = vpack.c.b16 %v2274, %v2272
          %v2561 = vpack.c.b16 %v2275, %v2273
          %v2562 = vpack.c.b16 %v2278, %v2276
          %v2563 = vpack.c.b16 %v2279, %v2277
          %v2564 = vpack.c.b16 %v2282, %v2280
          %v2565 = vpack.c.b16 %v2283, %v2281
          %v2566 = vpack.c.b16 %v2286, %v2284
          %v2567 = vpack.c.b16 %v2287, %v2285
          %v2568 = vpack.c.b16 %v2290, %v2288
          %v2569 = vpack.c.b16 %v2291, %v2289
          %v2570 = vpack.c.b16 %v2294, %v2292
          %v2571 = vpack.c.b16 %v2295, %v2293
          %v2572 = vpack.c.b16 %v2298, %v2296
          %v2573 = vpack.c.b16 %v2299, %v2297
          %v2574 = vpack.c.b16 %v2302, %v2300
          %v2575 = vpack.c.b16 %v2303, %v2301
          %v2576 = vpack.c.b16 %v2306, %v2304
          %v2577 = vpack.c.b16 %v2307, %v2305
          %v2578 = vpack.c.b16 %v2310, %v2308
          %v2579 = vpack.c.b16 %v2311, %v2309
          %v2580 = vpack.c.b16 %v2314, %v2312
          %v2581 = vpack.c.b16 %v2315, %v2313
          %v2582 = vpack.c.b16 %v2318, %v2316
          %v2583 = vpack.c.b16 %v2319, %v2317
          %v2584 = vpack.c.b16 %v2322, %v2320
          %v2585 = vpack.c.b16 %v2323, %v2321
          %v2586 = vpack.c.b16 %v2326, %v2324
          %v2587 = vpack.c.b16 %v2327, %v2325
          %v2588 = vpack.c.b16 %v2330, %v2328
          %v2589 = vpack.c.b16 %v2331, %v2329
          %v2590 = vpack.c.b16 %v2334, %v2332
          %v2591 = vpack.c.b16 %v2335, %v2333
          %v2849 = vlaneseq
          %v2850 = vshrl.u32 %v2849, 7
          %v2851 = vsub.s32 0, %v2850
          %v2852 = vrot.slane %v1567, %v2851
          %v2853 = vlaneseq
          %v2854 = vshrl.u32 %v2853, 7
          %v2855 = vsub.s32 1, %v2854
          %v2856 = vrot.slane %v1567, %v2855
          %2859 = vmatprep.subr.bf16.mxu0 %v2351
          %2860 = vmatpush1.bf16.msra.mxu0 %v2350
          %2861 = vmatprep.subr.bf16.mxu0 %v2349
          %2862 = vmatpush1.bf16.msra.mxu0 %v2348
          %2863 = vmatprep.subr.bf16.mxu0 %v2347
          %2864 = vmatpush1.bf16.msra.mxu0 %v2346
          %2865 = vmatprep.subr.bf16.mxu0 %v2345
          %2866 = vmatpush1.bf16.msra.mxu0 %v2344
          %2867 = vmatprep.subr.bf16.mxu0 %v2343
          %2868 = vmatpush1.bf16.msra.mxu0 %v2342
          %2869 = vmatprep.subr.bf16.mxu0 %v2341
          %2870 = vmatpush1.bf16.msra.mxu0 %v2340
          %2871 = vmatprep.subr.bf16.mxu0 %v2339
          %2872 = vmatpush1.bf16.msra.mxu0 %v2338
          %2873 = vmatprep.subr.bf16.mxu0 %v2337
          %2874 = vmatpush1.bf16.msra.mxu0 %v2336
          %2875 = vmatprep.subr.bf16.mxu0 %v2367
          %2876 = vmatpush2.bf16.msra.mxu0 %v2366
          %2877 = vmatprep.subr.bf16.mxu0 %v2365
          %2878 = vmatpush2.bf16.msra.mxu0 %v2364
          %2879 = vmatprep.subr.bf16.mxu0 %v2363
          %2880 = vmatpush2.bf16.msra.mxu0 %v2362
          %2881 = vmatprep.subr.bf16.mxu0 %v2361
          %2882 = vmatpush2.bf16.msra.mxu0 %v2360
          %2883 = vmatprep.subr.bf16.mxu0 %v2359
          %2884 = vmatpush2.bf16.msra.mxu0 %v2358
          %2885 = vmatprep.subr.bf16.mxu0 %v2357
          %2886 = vmatpush2.bf16.msra.mxu0 %v2356
          %2887 = vmatprep.subr.bf16.mxu0 %v2355
          %2888 = vmatpush2.bf16.msra.mxu0 %v2354
          %2889 = vmatprep.subr.bf16.mxu0 %v2353
          %2890 = vmatpush2.bf16.msra.mxu0 %v2352
          %2891 = vmatprep.mubr.bf16.mxu0 %v1296
          %2892 = vmatmul.mubr.bf16.gmra.mxu0 %v1295
          %v2893 = vpop.f32.mrf.mxu0
          %v2894 = vadd.f32 %v2852, %v2893
          %v2895 = vpop.f32.mrf.mxu0
          %v2896 = vadd.f32 %v2856, %v2895
          %v2897 = vpop.f32.mrf.mxu0
          %v2898 = vpop.f32.mrf.mxu0
          %2899 = vdwg.mxu0
          %2900 = vmatprep.subr.bf16.mxu0 %v2383
          %2901 = vmatpush1.bf16.msra.mxu0 %v2382
          %2902 = vmatprep.subr.bf16.mxu0 %v2381
          %2903 = vmatpush1.bf16.msra.mxu0 %v2380
          %2904 = vmatprep.subr.bf16.mxu0 %v2379
          %2905 = vmatpush1.bf16.msra.mxu0 %v2378
          %2906 = vmatprep.subr.bf16.mxu0 %v2377
          %2907 = vmatpush1.bf16.msra.mxu0 %v2376
          %2908 = vmatprep.subr.bf16.mxu0 %v2375
          %2909 = vmatpush1.bf16.msra.mxu0 %v2374
          %2910 = vmatprep.subr.bf16.mxu0 %v2373
          %2911 = vmatpush1.bf16.msra.mxu0 %v2372
          %2912 = vmatprep.subr.bf16.mxu0 %v2371
          %2913 = vmatpush1.bf16.msra.mxu0 %v2370
          %2914 = vmatprep.subr.bf16.mxu0 %v2369
          %2915 = vmatpush1.bf16.msra.mxu0 %v2368
          %2916 = vmatprep.subr.bf16.mxu0 %v2399
          %2917 = vmatpush2.bf16.msra.mxu0 %v2398
          %2918 = vmatprep.subr.bf16.mxu0 %v2397
          %2919 = vmatpush2.bf16.msra.mxu0 %v2396
          %2920 = vmatprep.subr.bf16.mxu0 %v2395
          %2921 = vmatpush2.bf16.msra.mxu0 %v2394
          %2922 = vmatprep.subr.bf16.mxu0 %v2393
          %2923 = vmatpush2.bf16.msra.mxu0 %v2392
          %2924 = vmatprep.subr.bf16.mxu0 %v2391
          %2925 = vmatpush2.bf16.msra.mxu0 %v2390
          %2926 = vmatprep.subr.bf16.mxu0 %v2389
          %2927 = vmatpush2.bf16.msra.mxu0 %v2388
          %2928 = vmatprep.subr.bf16.mxu0 %v2387
          %2929 = vmatpush2.bf16.msra.mxu0 %v2386
          %2930 = vmatprep.subr.bf16.mxu0 %v2385
          %2931 = vmatpush2.bf16.msra.mxu0 %v2384
          %2932 = vmatprep.mubr.bf16.mxu0 %v1298
          %2933 = vmatmul.mubr.bf16.gmra.mxu0 %v1297
          %v2934 = vpop.f32.mrf.mxu0
          %v2935 = vadd.f32 %v2894, %v2934
          %v2936 = vpop.f32.mrf.mxu0
          %v2937 = vadd.f32 %v2896, %v2936
          %v2938 = vpop.f32.mrf.mxu0
          %v2939 = vpop.f32.mrf.mxu0
          %2940 = vdwg.mxu0
          %2941 = vmatprep.subr.bf16.mxu0 %v2415
          %2942 = vmatpush1.bf16.msra.mxu0 %v2414
          %2943 = vmatprep.subr.bf16.mxu0 %v2413
          %2944 = vmatpush1.bf16.msra.mxu0 %v2412
          %2945 = vmatprep.subr.bf16.mxu0 %v2411
          %2946 = vmatpush1.bf16.msra.mxu0 %v2410
          %2947 = vmatprep.subr.bf16.mxu0 %v2409
          %2948 = vmatpush1.bf16.msra.mxu0 %v2408
          %2949 = vmatprep.subr.bf16.mxu0 %v2407
          %2950 = vmatpush1.bf16.msra.mxu0 %v2406
          %2951 = vmatprep.subr.bf16.mxu0 %v2405
          %2952 = vmatpush1.bf16.msra.mxu0 %v2404
          %2953 = vmatprep.subr.bf16.mxu0 %v2403
          %2954 = vmatpush1.bf16.msra.mxu0 %v2402
          %2955 = vmatprep.subr.bf16.mxu0 %v2401
          %2956 = vmatpush1.bf16.msra.mxu0 %v2400
          %2957 = vmatprep.subr.bf16.mxu0 %v2431
          %2958 = vmatpush2.bf16.msra.mxu0 %v2430
          %2959 = vmatprep.subr.bf16.mxu0 %v2429
          %2960 = vmatpush2.bf16.msra.mxu0 %v2428
          %2961 = vmatprep.subr.bf16.mxu0 %v2427
          %2962 = vmatpush2.bf16.msra.mxu0 %v2426
          %2963 = vmatprep.subr.bf16.mxu0 %v2425
          %2964 = vmatpush2.bf16.msra.mxu0 %v2424
          %2965 = vmatprep.subr.bf16.mxu0 %v2423
          %2966 = vmatpush2.bf16.msra.mxu0 %v2422
          %2967 = vmatprep.subr.bf16.mxu0 %v2421
          %2968 = vmatpush2.bf16.msra.mxu0 %v2420
          %2969 = vmatprep.subr.bf16.mxu0 %v2419
          %2970 = vmatpush2.bf16.msra.mxu0 %v2418
          %2971 = vmatprep.subr.bf16.mxu0 %v2417
          %2972 = vmatpush2.bf16.msra.mxu0 %v2416
          %2973 = vmatprep.mubr.bf16.mxu0 %v1300
          %2974 = vmatmul.mubr.bf16.gmra.mxu0 %v1299
          %v2975 = vpop.f32.mrf.mxu0
          %v2976 = vadd.f32 %v2935, %v2975
          %v2977 = vpop.f32.mrf.mxu0
          %v2978 = vadd.f32 %v2937, %v2977
          %v2979 = vpop.f32.mrf.mxu0
          %v2980 = vpop.f32.mrf.mxu0
          %2981 = vdwg.mxu0
          %2982 = vmatprep.subr.bf16.mxu0 %v2447
          %2983 = vmatpush1.bf16.msra.mxu0 %v2446
          %2984 = vmatprep.subr.bf16.mxu0 %v2445
          %2985 = vmatpush1.bf16.msra.mxu0 %v2444
          %2986 = vmatprep.subr.bf16.mxu0 %v2443
          %2987 = vmatpush1.bf16.msra.mxu0 %v2442
          %2988 = vmatprep.subr.bf16.mxu0 %v2441
          %2989 = vmatpush1.bf16.msra.mxu0 %v2440
          %2990 = vmatprep.subr.bf16.mxu0 %v2439
          %2991 = vmatpush1.bf16.msra.mxu0 %v2438
          %2992 = vmatprep.subr.bf16.mxu0 %v2437
          %2993 = vmatpush1.bf16.msra.mxu0 %v2436
          %2994 = vmatprep.subr.bf16.mxu0 %v2435
          %2995 = vmatpush1.bf16.msra.mxu0 %v2434
          %2996 = vmatprep.subr.bf16.mxu0 %v2433
          %2997 = vmatpush1.bf16.msra.mxu0 %v2432
          %2998 = vmatprep.subr.bf16.mxu0 %v2463
          %2999 = vmatpush2.bf16.msra.mxu0 %v2462
          %3000 = vmatprep.subr.bf16.mxu0 %v2461
          %3001 = vmatpush2.bf16.msra.mxu0 %v2460
          %3002 = vmatprep.subr.bf16.mxu0 %v2459
          %3003 = vmatpush2.bf16.msra.mxu0 %v2458
          %3004 = vmatprep.subr.bf16.mxu0 %v2457
          %3005 = vmatpush2.bf16.msra.mxu0 %v2456
          %3006 = vmatprep.subr.bf16.mxu0 %v2455
          %3007 = vmatpush2.bf16.msra.mxu0 %v2454
          %3008 = vmatprep.subr.bf16.mxu0 %v2453
          %3009 = vmatpush2.bf16.msra.mxu0 %v2452
          %3010 = vmatprep.subr.bf16.mxu0 %v2451
          %3011 = vmatpush2.bf16.msra.mxu0 %v2450
          %3012 = vmatprep.subr.bf16.mxu0 %v2449
          %3013 = vmatpush2.bf16.msra.mxu0 %v2448
          %3014 = vmatprep.mubr.bf16.mxu0 %v1302
          %3015 = vmatmul.mubr.bf16.gmra.mxu0 %v1301
          %v3016 = vpop.f32.mrf.mxu0
          %v3017 = vadd.f32 %v2976, %v3016
          %v3018 = vpop.f32.mrf.mxu0
          %v3019 = vadd.f32 %v2978, %v3018
          %v3020 = vpop.f32.mrf.mxu0
          %v3021 = vpop.f32.mrf.mxu0
          %3022 = vdwg.mxu0
          %3023 = vmatprep.subr.bf16.mxu0 %v2479
          %3024 = vmatpush1.bf16.msra.mxu0 %v2478
          %3025 = vmatprep.subr.bf16.mxu0 %v2477
          %3026 = vmatpush1.bf16.msra.mxu0 %v2476
          %3027 = vmatprep.subr.bf16.mxu0 %v2475
          %3028 = vmatpush1.bf16.msra.mxu0 %v2474
          %3029 = vmatprep.subr.bf16.mxu0 %v2473
          %3030 = vmatpush1.bf16.msra.mxu0 %v2472
          %3031 = vmatprep.subr.bf16.mxu0 %v2471
          %3032 = vmatpush1.bf16.msra.mxu0 %v2470
          %3033 = vmatprep.subr.bf16.mxu0 %v2469
          %3034 = vmatpush1.bf16.msra.mxu0 %v2468
          %3035 = vmatprep.subr.bf16.mxu0 %v2467
          %3036 = vmatpush1.bf16.msra.mxu0 %v2466
          %3037 = vmatprep.subr.bf16.mxu0 %v2465
          %3038 = vmatpush1.bf16.msra.mxu0 %v2464
          %3039 = vmatprep.subr.bf16.mxu0 %v2495
          %3040 = vmatpush2.bf16.msra.mxu0 %v2494
          %3041 = vmatprep.subr.bf16.mxu0 %v2493
          %3042 = vmatpush2.bf16.msra.mxu0 %v2492
          %3043 = vmatprep.subr.bf16.mxu0 %v2491
          %3044 = vmatpush2.bf16.msra.mxu0 %v2490
          %3045 = vmatprep.subr.bf16.mxu0 %v2489
          %3046 = vmatpush2.bf16.msra.mxu0 %v2488
          %3047 = vmatprep.subr.bf16.mxu0 %v2487
          %3048 = vmatpush2.bf16.msra.mxu0 %v2486
          %3049 = vmatprep.subr.bf16.mxu0 %v2485
          %3050 = vmatpush2.bf16.msra.mxu0 %v2484
          %3051 = vmatprep.subr.bf16.mxu0 %v2483
          %3052 = vmatpush2.bf16.msra.mxu0 %v2482
          %3053 = vmatprep.subr.bf16.mxu0 %v2481
          %3054 = vmatpush2.bf16.msra.mxu0 %v2480
          %3055 = vmatprep.mubr.bf16.mxu0 %v1304
          %3056 = vmatmul.mubr.bf16.gmra.mxu0 %v1303
          %v3057 = vpop.f32.mrf.mxu0
          %v3058 = vadd.f32 %v3017, %v3057
          %v3059 = vpop.f32.mrf.mxu0
          %v3060 = vadd.f32 %v3019, %v3059
          %v3061 = vpop.f32.mrf.mxu0
          %v3062 = vpop.f32.mrf.mxu0
          %3063 = vdwg.mxu0
          %3064 = vmatprep.subr.bf16.mxu0 %v2511
          %3065 = vmatpush1.bf16.msra.mxu0 %v2510
          %3066 = vmatprep.subr.bf16.mxu0 %v2509
          %3067 = vmatpush1.bf16.msra.mxu0 %v2508
          %3068 = vmatprep.subr.bf16.mxu0 %v2507
          %3069 = vmatpush1.bf16.msra.mxu0 %v2506
          %3070 = vmatprep.subr.bf16.mxu0 %v2505
          %3071 = vmatpush1.bf16.msra.mxu0 %v2504
          %3072 = vmatprep.subr.bf16.mxu0 %v2503
          %3073 = vmatpush1.bf16.msra.mxu0 %v2502
          %3074 = vmatprep.subr.bf16.mxu0 %v2501
          %3075 = vmatpush1.bf16.msra.mxu0 %v2500
          %3076 = vmatprep.subr.bf16.mxu0 %v2499
          %3077 = vmatpush1.bf16.msra.mxu0 %v2498
          %3078 = vmatprep.subr.bf16.mxu0 %v2497
          %3079 = vmatpush1.bf16.msra.mxu0 %v2496
          %3080 = vmatprep.subr.bf16.mxu0 %v2527
          %3081 = vmatpush2.bf16.msra.mxu0 %v2526
          %3082 = vmatprep.subr.bf16.mxu0 %v2525
          %3083 = vmatpush2.bf16.msra.mxu0 %v2524
          %3084 = vmatprep.subr.bf16.mxu0 %v2523
          %3085 = vmatpush2.bf16.msra.mxu0 %v2522
          %3086 = vmatprep.subr.bf16.mxu0 %v2521
          %3087 = vmatpush2.bf16.msra.mxu0 %v2520
          %3088 = vmatprep.subr.bf16.mxu0 %v2519
          %3089 = vmatpush2.bf16.msra.mxu0 %v2518
          %3090 = vmatprep.subr.bf16.mxu0 %v2517
          %3091 = vmatpush2.bf16.msra.mxu0 %v2516
          %3092 = vmatprep.subr.bf16.mxu0 %v2515
          %3093 = vmatpush2.bf16.msra.mxu0 %v2514
          %3094 = vmatprep.subr.bf16.mxu0 %v2513
          %3095 = vmatpush2.bf16.msra.mxu0 %v2512
          %3096 = vmatprep.mubr.bf16.mxu0 %v1306
          %3097 = vmatmul.mubr.bf16.gmra.mxu0 %v1305
          %v3098 = vpop.f32.mrf.mxu0
          %v3099 = vadd.f32 %v3058, %v3098
          %v3100 = vpop.f32.mrf.mxu0
          %v3101 = vadd.f32 %v3060, %v3100
          %v3102 = vpop.f32.mrf.mxu0
          %v3103 = vpop.f32.mrf.mxu0
          %3104 = vdwg.mxu0
          %3105 = vmatprep.subr.bf16.mxu0 %v2543
          %3106 = vmatpush1.bf16.msra.mxu0 %v2542
          %3107 = vmatprep.subr.bf16.mxu0 %v2541
          %3108 = vmatpush1.bf16.msra.mxu0 %v2540
          %3109 = vmatprep.subr.bf16.mxu0 %v2539
          %3110 = vmatpush1.bf16.msra.mxu0 %v2538
          %3111 = vmatprep.subr.bf16.mxu0 %v2537
          %3112 = vmatpush1.bf16.msra.mxu0 %v2536
          %3113 = vmatprep.subr.bf16.mxu0 %v2535
          %3114 = vmatpush1.bf16.msra.mxu0 %v2534
          %3115 = vmatprep.subr.bf16.mxu0 %v2533
          %3116 = vmatpush1.bf16.msra.mxu0 %v2532
          %3117 = vmatprep.subr.bf16.mxu0 %v2531
          %3118 = vmatpush1.bf16.msra.mxu0 %v2530
          %3119 = vmatprep.subr.bf16.mxu0 %v2529
          %3120 = vmatpush1.bf16.msra.mxu0 %v2528
          %3121 = vmatprep.subr.bf16.mxu0 %v2559
          %3122 = vmatpush2.bf16.msra.mxu0 %v2558
          %3123 = vmatprep.subr.bf16.mxu0 %v2557
          %3124 = vmatpush2.bf16.msra.mxu0 %v2556
          %3125 = vmatprep.subr.bf16.mxu0 %v2555
          %3126 = vmatpush2.bf16.msra.mxu0 %v2554
          %3127 = vmatprep.subr.bf16.mxu0 %v2553
          %3128 = vmatpush2.bf16.msra.mxu0 %v2552
          %3129 = vmatprep.subr.bf16.mxu0 %v2551
          %3130 = vmatpush2.bf16.msra.mxu0 %v2550
          %3131 = vmatprep.subr.bf16.mxu0 %v2549
          %3132 = vmatpush2.bf16.msra.mxu0 %v2548
          %3133 = vmatprep.subr.bf16.mxu0 %v2547
          %3134 = vmatpush2.bf16.msra.mxu0 %v2546
          %3135 = vmatprep.subr.bf16.mxu0 %v2545
          %3136 = vmatpush2.bf16.msra.mxu0 %v2544
          %3137 = vmatprep.mubr.bf16.mxu0 %v1308
          %3138 = vmatmul.mubr.bf16.gmra.mxu0 %v1307
          %v3139 = vpop.f32.mrf.mxu0
          %v3140 = vadd.f32 %v3099, %v3139
          %v3141 = vpop.f32.mrf.mxu0
          %v3142 = vadd.f32 %v3101, %v3141
          %v3143 = vpop.f32.mrf.mxu0
          %v3144 = vpop.f32.mrf.mxu0
          %3145 = vdwg.mxu0
          %3146 = vmatprep.subr.bf16.mxu0 %v2575
          %3147 = vmatpush1.bf16.msra.mxu0 %v2574
          %3148 = vmatprep.subr.bf16.mxu0 %v2573
          %3149 = vmatpush1.bf16.msra.mxu0 %v2572
          %3150 = vmatprep.subr.bf16.mxu0 %v2571
          %3151 = vmatpush1.bf16.msra.mxu0 %v2570
          %3152 = vmatprep.subr.bf16.mxu0 %v2569
          %3153 = vmatpush1.bf16.msra.mxu0 %v2568
          %3154 = vmatprep.subr.bf16.mxu0 %v2567
          %3155 = vmatpush1.bf16.msra.mxu0 %v2566
          %3156 = vmatprep.subr.bf16.mxu0 %v2565
          %3157 = vmatpush1.bf16.msra.mxu0 %v2564
          %3158 = vmatprep.subr.bf16.mxu0 %v2563
          %3159 = vmatpush1.bf16.msra.mxu0 %v2562
          %3160 = vmatprep.subr.bf16.mxu0 %v2561
          %3161 = vmatpush1.bf16.msra.mxu0 %v2560
          %3162 = vmatprep.subr.bf16.mxu0 %v2591
          %3163 = vmatpush2.bf16.msra.mxu0 %v2590
          %3164 = vmatprep.subr.bf16.mxu0 %v2589
          %3165 = vmatpush2.bf16.msra.mxu0 %v2588
          %3166 = vmatprep.subr.bf16.mxu0 %v2587
          %3167 = vmatpush2.bf16.msra.mxu0 %v2586
          %3168 = vmatprep.subr.bf16.mxu0 %v2585
          %3169 = vmatpush2.bf16.msra.mxu0 %v2584
          %3170 = vmatprep.subr.bf16.mxu0 %v2583
          %3171 = vmatpush2.bf16.msra.mxu0 %v2582
          %3172 = vmatprep.subr.bf16.mxu0 %v2581
          %3173 = vmatpush2.bf16.msra.mxu0 %v2580
          %3174 = vmatprep.subr.bf16.mxu0 %v2579
          %3175 = vmatpush2.bf16.msra.mxu0 %v2578
          %3176 = vmatprep.subr.bf16.mxu0 %v2577
          %3177 = vmatpush2.bf16.msra.mxu0 %v2576
          %3178 = vmatprep.mubr.bf16.mxu0 %v1310
          %3179 = vmatmul.mubr.bf16.gmra.mxu0 %v1309
          %v3180 = vpop.f32.mrf.mxu0
          %v3181 = vadd.f32 %v3140, %v3180
          %v3182 = vpop.f32.mrf.mxu0
          %v3183 = vadd.f32 %v3142, %v3182
          %v3184 = vpop.f32.mrf.mxu0
          %v3185 = vpop.f32.mrf.mxu0
          %3186 = vdwg.mxu0
          %v3187 = vmax.f32 %v3181, 0.0
          %v3188 = vmax.f32 %v3183, 0.0
          %v3189 = vpack.c.bf16 %v3187, %v3187
          %v3190 = vpack.c.bf16 %v3188, %v3188
          %v3191 = vld [vmem:[#allocation8] sm:$0xf]
          %v3192 = vld [vmem:[#allocation8 + $0x4] sm:$0xf]
          %v3193 = vld [vmem:[#allocation8 + $0x8] sm:$0xf]
          %v3194 = vld [vmem:[#allocation8 + $0xc] sm:$0xf]
          %v3195 = vld [vmem:[#allocation8 + $0x10] sm:$0xf]
          %v3196 = vld [vmem:[#allocation8 + $0x14] sm:$0xf]
          %v3197 = vld [vmem:[#allocation8 + $0x18] sm:$0xf]
          %v3198 = vld [vmem:[#allocation8 + $0x1c] sm:$0xf]
          %v3199 = vld [vmem:[#allocation8 + $0x20] sm:$0xf]
          %v3200 = vld [vmem:[#allocation8 + $0x24] sm:$0xf]
          %v3201 = vld [vmem:[#allocation8 + $0x28] sm:$0xf]
          %v3202 = vld [vmem:[#allocation8 + $0x2c] sm:$0xf]
          %v3203 = vld [vmem:[#allocation8 + $0x30] sm:$0xf]
          %v3204 = vld [vmem:[#allocation8 + $0x34] sm:$0xf]
          %v3205 = vld [vmem:[#allocation8 + $0x38] sm:$0xf]
          %v3206 = vld [vmem:[#allocation8 + $0x3c] sm:$0xf]
          %v3207 = vld [vmem:[#allocation8 + $0x40] sm:$0xf]
          %v3208 = vld [vmem:[#allocation8 + $0x44] sm:$0xf]
          %v3209 = vld [vmem:[#allocation8 + $0x48] sm:$0xf]
          %v3210 = vld [vmem:[#allocation8 + $0x4c] sm:$0xf]
          %v3211 = vld [vmem:[#allocation8 + $0x50] sm:$0xf]
          %v3212 = vld [vmem:[#allocation8 + $0x54] sm:$0xf]
          %v3213 = vld [vmem:[#allocation8 + $0x58] sm:$0xf]
          %v3214 = vld [vmem:[#allocation8 + $0x5c] sm:$0xf]
          %v3215 = vld [vmem:[#allocation8 + $0x60] sm:$0xf]
          %v3216 = vld [vmem:[#allocation8 + $0x64] sm:$0xf]
          %v3217 = vld [vmem:[#allocation8 + $0x68] sm:$0xf]
          %v3218 = vld [vmem:[#allocation8 + $0x6c] sm:$0xf]
          %v3219 = vld [vmem:[#allocation8 + $0x70] sm:$0xf]
          %v3220 = vld [vmem:[#allocation8 + $0x74] sm:$0xf]
          %v3221 = vld [vmem:[#allocation8 + $0x78] sm:$0xf]
          %v3222 = vld [vmem:[#allocation8 + $0x7c] sm:$0xf]
          %v3223 = vld [vmem:[%s5] sm:$0x1]
          %v3256 = vunpack.c.l.b16 %v3191
          %v3257 = vunpack.c.l.b16 %v3192
          %v3258 = vunpack.c.l.b16 %v3193
          %v3259 = vunpack.c.l.b16 %v3194
          %v3260 = vunpack.c.l.b16 %v3195
          %v3261 = vunpack.c.l.b16 %v3196
          %v3262 = vunpack.c.l.b16 %v3197
          %v3263 = vunpack.c.l.b16 %v3198
          %v3264 = vunpack.c.l.b16 %v3199
          %v3265 = vunpack.c.l.b16 %v3200
          %v3266 = vunpack.c.l.b16 %v3201
          %v3267 = vunpack.c.l.b16 %v3202
          %v3268 = vunpack.c.l.b16 %v3203
          %v3269 = vunpack.c.l.b16 %v3204
          %v3270 = vunpack.c.l.b16 %v3205
          %v3271 = vunpack.c.l.b16 %v3206
          %v3272 = vunpack.c.l.b16 %v3207
          %v3273 = vunpack.c.l.b16 %v3208
          %v3274 = vunpack.c.l.b16 %v3209
          %v3275 = vunpack.c.l.b16 %v3210
          %v3276 = vunpack.c.l.b16 %v3211
          %v3277 = vunpack.c.l.b16 %v3212
          %v3278 = vunpack.c.l.b16 %v3213
          %v3279 = vunpack.c.l.b16 %v3214
          %v3280 = vunpack.c.l.b16 %v3215
          %v3281 = vunpack.c.l.b16 %v3216
          %v3282 = vunpack.c.l.b16 %v3217
          %v3283 = vunpack.c.l.b16 %v3218
          %v3284 = vunpack.c.l.b16 %v3219
          %v3285 = vunpack.c.l.b16 %v3220
          %v3286 = vunpack.c.l.b16 %v3221
          %v3287 = vunpack.c.l.b16 %v3222
          %v3288 = vpack.c.b16 %v3257, %v3256
          %v3289 = vpack.c.b16 %v3259, %v3258
          %v3290 = vpack.c.b16 %v3261, %v3260
          %v3291 = vpack.c.b16 %v3263, %v3262
          %v3292 = vpack.c.b16 %v3265, %v3264
          %v3293 = vpack.c.b16 %v3267, %v3266
          %v3294 = vpack.c.b16 %v3269, %v3268
          %v3295 = vpack.c.b16 %v3271, %v3270
          %v3296 = vpack.c.b16 %v3273, %v3272
          %v3297 = vpack.c.b16 %v3275, %v3274
          %v3298 = vpack.c.b16 %v3277, %v3276
          %v3299 = vpack.c.b16 %v3279, %v3278
          %v3300 = vpack.c.b16 %v3281, %v3280
          %v3301 = vpack.c.b16 %v3283, %v3282
          %v3302 = vpack.c.b16 %v3285, %v3284
          %v3303 = vpack.c.b16 %v3287, %v3286
          %3320 = vmatprep.subr.bf16.mxu0 0
          %3321 = vmatpush1.bf16.msra.mxu0 %v3295
          %3322 = vmatprep.subr.bf16.mxu0 0
          %3323 = vmatpush1.bf16.msra.mxu0 %v3294
          %3324 = vmatprep.subr.bf16.mxu0 0
          %3325 = vmatpush1.bf16.msra.mxu0 %v3293
          %3326 = vmatprep.subr.bf16.mxu0 0
          %3327 = vmatpush1.bf16.msra.mxu0 %v3292
          %3328 = vmatprep.subr.bf16.mxu0 0
          %3329 = vmatpush1.bf16.msra.mxu0 %v3291
          %3330 = vmatprep.subr.bf16.mxu0 0
          %3331 = vmatpush1.bf16.msra.mxu0 %v3290
          %3332 = vmatprep.subr.bf16.mxu0 0
          %3333 = vmatpush1.bf16.msra.mxu0 %v3289
          %3334 = vmatprep.subr.bf16.mxu0 0
          %3335 = vmatpush1.bf16.msra.mxu0 %v3288
          %3336 = vmatprep.subr.bf16.mxu0 0
          %3337 = vmatpush2.bf16.msra.mxu0 %v3303
          %3338 = vmatprep.subr.bf16.mxu0 0
          %3339 = vmatpush2.bf16.msra.mxu0 %v3302
          %3340 = vmatprep.subr.bf16.mxu0 0
          %3341 = vmatpush2.bf16.msra.mxu0 %v3301
          %3342 = vmatprep.subr.bf16.mxu0 0
          %3343 = vmatpush2.bf16.msra.mxu0 %v3300
          %3344 = vmatprep.subr.bf16.mxu0 0
          %3345 = vmatpush2.bf16.msra.mxu0 %v3299
          %3346 = vmatprep.subr.bf16.mxu0 0
          %3347 = vmatpush2.bf16.msra.mxu0 %v3298
          %3348 = vmatprep.subr.bf16.mxu0 0
          %3349 = vmatpush2.bf16.msra.mxu0 %v3297
          %3350 = vmatprep.subr.bf16.mxu0 0
          %3351 = vmatpush2.bf16.msra.mxu0 %v3296
          %3352 = vmatprep.mubr.bf16.mxu0 %v3190
          %3353 = vmatmul.mubr.bf16.gmra.mxu0 %v3189
          %v3354 = vpop.f32.mrf.mxu0
          %v3355 = vadd.f32 %v3223, %v3354
          %v3356 = vpop.f32.mrf.mxu0
          %v3357 = vpop.f32.mrf.mxu0
          %v3358 = vpop.f32.mrf.mxu0
          %3359 = vdwg.mxu0
          %v3360 = vpack.c.bf16 %v3355, %v3355
          %v3361 = vld [vmem:[%s6] sm:$0xf]
          %v3362 = vld [vmem:[%s6 + $0x4] sm:$0xf]
          %v3363 = vld [vmem:[%s6 + $0x8] sm:$0xf]
          %v3364 = vld [vmem:[%s6 + $0xc] sm:$0xf]
          %v3365 = vld [vmem:[%s6 + $0x10] sm:$0xf]
          %v3366 = vld [vmem:[%s6 + $0x14] sm:$0xf]
          %v3367 = vld [vmem:[%s6 + $0x18] sm:$0xf]
          %v3368 = vld [vmem:[%s6 + $0x1c] sm:$0xf]
          %v3369 = vld [vmem:[%s6 + $0x20] sm:$0xf]
          %v3370 = vld [vmem:[%s6 + $0x24] sm:$0xf]
          %v3371 = vld [vmem:[%s6 + $0x28] sm:$0xf]
          %v3372 = vld [vmem:[%s6 + $0x2c] sm:$0xf]
          %v3373 = vld [vmem:[%s6 + $0x30] sm:$0xf]
          %v3374 = vld [vmem:[%s6 + $0x34] sm:$0xf]
          %v3375 = vld [vmem:[%s6 + $0x38] sm:$0xf]
          %v3376 = vld [vmem:[%s6 + $0x3c] sm:$0xf]
          %v3377 = vld [vmem:[%s7] sm:$0x1]
          %v3394 = vunpack.c.l.b16 %v3361
          %v3395 = vunpack.c.l.b16 %v3362
          %v3396 = vunpack.c.l.b16 %v3363
          %v3397 = vunpack.c.l.b16 %v3364
          %v3398 = vunpack.c.l.b16 %v3365
          %v3399 = vunpack.c.l.b16 %v3366
          %v3400 = vunpack.c.l.b16 %v3367
          %v3401 = vunpack.c.l.b16 %v3368
          %v3402 = vunpack.c.l.b16 %v3369
          %v3403 = vunpack.c.l.b16 %v3370
          %v3404 = vunpack.c.l.b16 %v3371
          %v3405 = vunpack.c.l.b16 %v3372
          %v3406 = vunpack.c.l.b16 %v3373
          %v3407 = vunpack.c.l.b16 %v3374
          %v3408 = vunpack.c.l.b16 %v3375
          %v3409 = vunpack.c.l.b16 %v3376
          %v3410 = vpack.c.b16 %v3395, %v3394
          %v3411 = vpack.c.b16 %v3397, %v3396
          %v3412 = vpack.c.b16 %v3399, %v3398
          %v3413 = vpack.c.b16 %v3401, %v3400
          %v3414 = vpack.c.b16 %v3403, %v3402
          %v3415 = vpack.c.b16 %v3405, %v3404
          %v3416 = vpack.c.b16 %v3407, %v3406
          %v3417 = vpack.c.b16 %v3409, %v3408
          %3426 = vmatprep.subr.bf16.mxu0 0
          %3427 = vmatpush1.bf16.msra.mxu0 %v3417
          %3428 = vmatprep.subr.bf16.mxu0 0
          %3429 = vmatpush1.bf16.msra.mxu0 %v3416
          %3430 = vmatprep.subr.bf16.mxu0 0
          %3431 = vmatpush1.bf16.msra.mxu0 %v3415
          %3432 = vmatprep.subr.bf16.mxu0 0
          %3433 = vmatpush1.bf16.msra.mxu0 %v3414
          %3434 = vmatprep.subr.bf16.mxu0 0
          %3435 = vmatpush1.bf16.msra.mxu0 %v3413
          %3436 = vmatprep.subr.bf16.mxu0 0
          %3437 = vmatpush1.bf16.msra.mxu0 %v3412
          %3438 = vmatprep.subr.bf16.mxu0 0
          %3439 = vmatpush1.bf16.msra.mxu0 %v3411
          %3440 = vmatprep.subr.bf16.mxu0 0
          %3441 = vmatpush1.bf16.msra.mxu0 %v3410
          %3442 = vmatprep.subr.bf16.mxu0 0
          %3443 = vmatpush2.bf16.msra.mxu0 0
          %3444 = vmatprep.subr.bf16.mxu0 0
          %3445 = vmatpush2.bf16.msra.mxu0 0
          %3446 = vmatprep.subr.bf16.mxu0 0
          %3447 = vmatpush2.bf16.msra.mxu0 0
          %3448 = vmatprep.subr.bf16.mxu0 0
          %3449 = vmatpush2.bf16.msra.mxu0 0
          %3450 = vmatprep.subr.bf16.mxu0 0
          %3451 = vmatpush2.bf16.msra.mxu0 0
          %3452 = vmatprep.subr.bf16.mxu0 0
          %3453 = vmatpush2.bf16.msra.mxu0 0
          %3454 = vmatprep.subr.bf16.mxu0 0
          %3455 = vmatpush2.bf16.msra.mxu0 0
          %3456 = vmatprep.subr.bf16.mxu0 0
          %3457 = vmatpush2.bf16.msra.mxu0 0
          %3458 = vmatprep.mubr.bf16.mxu0 0
          %3459 = vmatmul.mubr.bf16.gmra.mxu0 %v3360
          %v3460 = vpop.f32.mrf.mxu0
          %v3461 = vadd.f32 %v3377, %v3460
          %v3462 = vpop.f32.mrf.mxu0
          %v3463 = vpop.f32.mrf.mxu0
          %v3464 = vpop.f32.mrf.mxu0
          %3465 = vdwg.mxu0
          %3466 = vst [vmem:[%s364] sm:$0x1] %v3461
        $region72: #{tpu_custom_call.1} parent=51 // pred_fallthru
          _
        %s3467 = sand.u32 %s219, 1
        %s3468 = scalar_lea.sflag [#allocation5], %s3467
        %s3469 = sand.u32 %s219, 1
        %s3470 = scalar_lea.vmem [#allocation9], %s3469
        // Predicated region
        $region73: #{tpu_custom_call.1} parent=51 // pred_check
          %p3471 = pneg %p229
        $region74: #{tpu_custom_call.1} parent=51 // pred_check_branch
          %3473 = sbr.rel (%p3471) target = $region76
        $region75: #{tpu_custom_call.1} parent=51 // pred_region
          %s3475 = ssub.s32 16, 16
          %3476 = vsyncadd %s3468, %s3475
          %s3477 = smul.addr %s28, 16
          %s3478 = scalar_lea.hbm %s8, %s3477
          %s3480 = sshll.u32 %s3470, 4
          %s3481 = int_to_ptr.vmem [resolvable:$true] %s3480
          %3483 = dma.vmem_to_hbm [thread:$0]  %s3481, 16, %s3478, %s3468
        $region76: #{tpu_custom_call.1} parent=51 // pred_fallthru
          _
      $region52: #{tpu_custom_call.1} parent=5 // pred_fallthru
        _
      %p3484 = scmp.le.s32.totalorder 2, %s19
      // Predicated region
      $region77: #{tpu_custom_call.1} parent=5 // pred_check
        %p3485 = pneg %p3484
      $region78: #{tpu_custom_call.1} parent=5 // pred_check_branch
        %3487 = sbr.rel (%p3485) target = $region80
      $region79: #{tpu_custom_call.1} parent=5 // pred_region
        %s3488 = ssub.s32 %s19, 2
        // Predicated region
        $region81: #{tpu_custom_call.1} parent=79 // pred_check
          %p3489 = pneg %p235
        $region82: #{tpu_custom_call.1} parent=79 // pred_check_branch
          %3491 = sbr.rel (%p3489) target = $region84
        $region83: #{tpu_custom_call.1} parent=79 // pred_region
          %s3492 = sand.u32 %s220, 1
          %s3493 = scalar_lea.sflag [#allocation5], %s3492
          %s3494 = sand.u32 %s220, 1
          %s3495 = scalar_lea.vmem [#allocation9], %s3494
          %3496 = dma.done %s3493, 16
        $region84: #{tpu_custom_call.1} parent=79 // pred_fallthru
          _
      $region80: #{tpu_custom_call.1} parent=5 // pred_fallthru
        _
    $region6: #{tpu_custom_call.1} parent=1 // loop_footer
      %s23 = sadd.s32 1, %s19
    $region7: #{tpu_custom_call.1} parent=1 // loop_footer_branch
      %18 = sbr.rel target = $region3
    $region8: #{tpu_custom_call.1} parent=1 // loop_exit
      _
    %3497 = vsyncpa [#allocation4], 1
    %s3498 = scalar_lea.sflag [#allocation4], 1
    %3499 = vsyncpa %s3498, 1
    %3500 = vsyncpa [#allocation7], 1
    %3501 = vsyncpa [#allocation5], 1
    %s3502 = scalar_lea.sflag [#allocation5], 1
    %3503 = vsyncpa %s3502, 1

</llo_original>
